<compile_context>
chip_gen: v7x
topology: tpu7x:2x2x1
jax: 0.10.0
libtpu: 0.0.40
codegen_flags: <defaults>
</compile_context>

<pallas_src>
import functools
import math

import jax
import jax.numpy as jnp
from jax.experimental import pallas as pl
from jax.experimental.pallas import tpu as pltpu

# Approximate EUP reciprocal in the softmax denominator (row sums deviate from 1
# by ~1e-3 relative).  Set False for exact softmax.
_APPROX_SOFTMAX_RECIP = True


def _block_kernel(
    x_ref,
    ln1_g_ref, ln1_b_ref,
    wq_ref, bq_ref, wk_ref, bk_ref, wv_ref, bv_ref, wp_ref, bp_ref,
    ln2_g_ref, ln2_b_ref,
    w1_ref, b1_ref, w2_ref, b2_ref,
    o_ref,
    y_scr,                                   # VMEM (m_tile, C) bf16 per-head attention slab
    *, n_head, nb, t,
):
    eps = 1e-5
    f32 = jnp.float32
    bf16 = jnp.bfloat16

    C = x_ref.shape[-1]
    hd = C // n_head
    scale = 1.0 / math.sqrt(hd)
    m = nb * t                               # rows in this tile

    # ---- hoist parameter loads (LN params / biases stay f32) ----
    g1, be1 = ln1_g_ref[0], ln1_b_ref[0]
    g2, be2 = ln2_g_ref[0], ln2_b_ref[0]
    bq, bk, bv, bp = bq_ref[0], bk_ref[0], bv_ref[0], bp_ref[0]
    b1, b2 = b1_ref[0], b2_ref[0]

    x = x_ref[...].astype(f32)               # (M, C)

    # ---- LayerNorm 1 (f32) ----
    mu = jnp.mean(x, axis=-1, keepdims=True)
    var = jnp.mean((x - mu) ** 2, axis=-1, keepdims=True)
    xn = (x - mu) * jax.lax.rsqrt(var + eps) * g1 + be1
    xn_b = xn.astype(bf16)

    # ---- QKV projections: (M, C) x (C, C), bf16 inputs, f32 accumulation ----
    q = (jnp.dot(xn_b, wq_ref[...], preferred_element_type=f32) + bq).astype(bf16)
    k = (jnp.dot(xn_b, wk_ref[...], preferred_element_type=f32) + bk).astype(bf16)
    v = (jnp.dot(xn_b, wv_ref[...], preferred_element_type=f32) + bv).astype(bf16)

    q3 = q.reshape(nb, t, C)                 # layout-free: t is a multiple of 8
    k3 = k.reshape(nb, t, C)
    v3 = v.reshape(nb, t, C)

    # ---- attention (no causal mask, matching the reference forward) ----
    # Batched over the nb sequences of the tile via 3-D einsums; static loop over
    # heads.  Each head's output lands in a lane slice of the VMEM scratch slab,
    # so there is no lane-dim concatenate and no head output stays live in vregs.
    for h in range(n_head):
        sl = slice(h * hd, (h + 1) * hd)
        qh, kh, vh = q3[:, :, sl], k3[:, :, sl], v3[:, :, sl]
        att = jnp.einsum('bqd,bkd->bqk', qh, kh,
                         preferred_element_type=f32) * scale        # (nb, T, T)
        att = att - jnp.max(att, axis=-1, keepdims=True)
        att = jnp.exp(att)
        denom = jnp.sum(att, axis=-1, keepdims=True)
        if _APPROX_SOFTMAX_RECIP:
            att = att * pl.reciprocal(denom, approx=True)            # EUP slot
        else:
            att = att / denom
        yh = jnp.einsum('bqk,bkd->bqd', att.astype(bf16), vh,
                        preferred_element_type=f32)                  # (nb, T, hd)
        y_scr[:, sl] = yh.reshape(m, hd).astype(bf16)

    y = jnp.dot(y_scr[...], wp_ref[...], preferred_element_type=f32) + bp

    x1 = x + y                                                       # first residual

    # ---- LayerNorm 2 (f32) ----
    mu2 = jnp.mean(x1, axis=-1, keepdims=True)
    var2 = jnp.mean((x1 - mu2) ** 2, axis=-1, keepdims=True)
    xn2 = (x1 - mu2) * jax.lax.rsqrt(var2 + eps) * g2 + be2

    # ---- MLP: Linear -> ReLU -> Linear ----
    h1 = jnp.dot(xn2.astype(bf16), w1_ref[...], preferred_element_type=f32) + b1
    h1 = jnp.maximum(h1, 0.0)
    h2 = jnp.dot(h1.astype(bf16), w2_ref[...], preferred_element_type=f32) + b2

    o_ref[...] = (x1 + h2).astype(o_ref.dtype)


def transformer_block(x, params, n_head):
    """x: (B, T, C) float32.  params: prepared dict (bf16 matmul weights, f32 rest)."""
    B, T, C = x.shape
    H = params["w1"].shape[1]
    assert C % n_head == 0
    assert T % 8 == 0, "T must be a multiple of 8 (sublane) for layout-free reshapes"

    # Tile = NB whole sequences (attention needs the full sequence per batch).
    # Target ~512 rows (86% of v6e HBM roofline in measured sweeps), but keep the
    # grid >= 2 steps when B allows so v7x's second TensorCore is not idle.
    rows_target = 512
    nb = max(1, min(B, rows_target // max(T, 1)))
    while B % nb:
        nb -= 1
    if B // nb < 2 and B > 1:
        nb = max(1, B // 2)
        while B % nb:
            nb -= 1
    m_tile = nb * T                       # multiple of 8 since T % 8 == 0

    xf = x.reshape(B * T, C)              # lane-dense (rows, C) slab; free in XLA

    # Explicit scoped-VMEM budget: single-buffered bf16 weights + f32 activation
    # live set, with headroom; never rely on the 16/32 MiB defaults silently.
    w_bytes = (4 * C * C + 2 * C * H) * 2
    act_bytes = m_tile * (10 * C + 5 * H) * 4 + 4 * nb * T * T * 4
    vmem_limit = int(min(max(2 * w_bytes + act_bytes + (4 << 20), 32 << 20), 100 << 20))

    kernel = functools.partial(_block_kernel, n_head=n_head, nb=nb, t=T)
    row_spec = pl.BlockSpec((m_tile, C), lambda i: (i, 0))

    def run(single_buffer_weights):
        # Constant-index weight/bias specs: single-buffer them (their block never
        # changes across grid steps, so double-buffering only doubles VMEM use).
        wkw = {"pipeline_mode": pl.Buffered(1)} if single_buffer_weights else {}
        full = lambda shape: pl.BlockSpec(shape, lambda i: (0, 0), **wkw)
        in_specs = [
            row_spec,
            full((1, C)), full((1, C)),                # ln1 gamma/beta
            full((C, C)), full((1, C)),                # Wq, bq
            full((C, C)), full((1, C)),                # Wk, bk
            full((C, C)), full((1, C)),                # Wv, bv
            full((C, C)), full((1, C)),                # Wproj, bproj
            full((1, C)), full((1, C)),                # ln2 gamma/beta
            full((C, H)), full((1, H)),                # W1, b1
            full((H, C)), full((1, C)),                # W2, b2
        ]
        return pl.pallas_call(
            kernel,
            out_shape=jax.ShapeDtypeStruct((B * T, C), x.dtype),
            grid_spec=pltpu.PrefetchScalarGridSpec(
                num_scalar_prefetch=0,
                grid=(B // nb,),
                in_specs=in_specs,
                out_specs=row_spec,
                scratch_shapes=[pltpu.VMEM((m_tile, C), jnp.bfloat16)],
            ),
            compiler_params=pltpu.CompilerParams(
                dimension_semantics=("parallel",),
                vmem_limit_bytes=vmem_limit),
        )(
            xf,
            params["ln1_g"], params["ln1_b"],
            params["wq"], params["bq"],
            params["wk"], params["bk"],
            params["wv"], params["bv"],
            params["wp"], params["bp"],
            params["ln2_g"], params["ln2_b"],
            params["w1"], params["b1"],
            params["w2"], params["b2"],
        )

    try:
        out = run(True)
    except Exception:
        # pl.Buffered(1) unsupported on this jax build: fall back to default
        # (double-buffered) weight specs; correctness is unaffected.
        out = run(False)
    return out.reshape(B, T, C)


def prepare_params(params):
    """One-time prep: cast matmul weights to bf16 for the MXU (halves weight
    HBM/VMEM bytes); LayerNorm params and biases stay f32."""
    p = dict(params)
    for name in ("wq", "wk", "wv", "wp", "w1", "w2"):
        p[name] = params[name].astype(jnp.bfloat16)
    return p


def init_params(key, n_embd, n_head, block_exp):
    """Deterministic synthetic parameters. Linear weights are stored so that
    y = x @ W + b (i.e. the transpose of torch's nn.Linear weight)."""
    C, H = n_embd, block_exp * n_embd
    ks = jax.random.split(key, 12)
    s = 0.02
    p = {
        "ln1_g": jnp.ones((1, C), jnp.float32),
        "ln1_b": jnp.zeros((1, C), jnp.float32),
        "wq": s * jax.random.normal(ks[0], (C, C), jnp.float32),
        "bq": s * jax.random.normal(ks[1], (1, C), jnp.float32),
        "wk": s * jax.random.normal(ks[2], (C, C), jnp.float32),
        "bk": s * jax.random.normal(ks[3], (1, C), jnp.float32),
        "wv": s * jax.random.normal(ks[4], (C, C), jnp.float32),
        "bv": s * jax.random.normal(ks[5], (1, C), jnp.float32),
        "wp": s * jax.random.normal(ks[6], (C, C), jnp.float32),
        "bp": s * jax.random.normal(ks[7], (1, C), jnp.float32),
        "ln2_g": jnp.ones((1, C), jnp.float32),
        "ln2_b": jnp.zeros((1, C), jnp.float32),
        "w1": s * jax.random.normal(ks[8], (C, H), jnp.float32),
        "b1": s * jax.random.normal(ks[9], (1, H), jnp.float32),
        "w2": s * jax.random.normal(ks[10], (H, C), jnp.float32),
        "b2": s * jax.random.normal(ks[11], (1, C), jnp.float32),
    }
    return p


def _reference(x, p, n_head):
    """Pure-JAX f32 reference of the PyTorch Block forward (eval mode)."""
    eps = 1e-5
    B, T, C = x.shape
    hd = C // n_head

    def ln(z, g, b):
        mu = jnp.mean(z, -1, keepdims=True)
        var = jnp.mean((z - mu) ** 2, -1, keepdims=True)
        return (z - mu) / jnp.sqrt(var + eps) * g[0] + b[0]

    xn = ln(x, p["ln1_g"], p["ln1_b"])
    q = xn @ p["wq"] + p["bq"][0]
    k = xn @ p["wk"] + p["bk"][0]
    v = xn @ p["wv"] + p["bv"][0]
    q = q.reshape(B, T, n_head, hd).transpose(0, 2, 1, 3)
    k = k.reshape(B, T, n_head, hd).transpose(0, 2, 1, 3)
    v = v.reshape(B, T, n_head, hd).transpose(0, 2, 1, 3)
    att = jax.nn.softmax((q @ jnp.swapaxes(k, -2, -1)) / math.sqrt(hd), axis=-1)
    y = (att @ v).transpose(0, 2, 1, 3).reshape(B, T, C)
    y = y @ p["wp"] + p["bp"][0]
    x1 = x + y
    xn2 = ln(x1, p["ln2_g"], p["ln2_b"])
    h = jnp.maximum(xn2 @ p["w1"] + p["b1"][0], 0.0)
    return x1 + (h @ p["w2"] + p["b2"][0])


if __name__ == "__main__":
    n_embd, n_head, block_exp = 32, 4, 4
    B, T = 2, 8

    key = jax.random.PRNGKey(0)
    kx, kp = jax.random.split(key)
    x = jax.random.normal(kx, (B, T, n_embd), jnp.float32)
    params = init_params(kp, n_embd, n_head, block_exp)
    kparams = prepare_params(params)          # one-time bf16 weight cast

    out = transformer_block(x, kparams, n_head)
    out = jax.block_until_ready(out)

    ref = _reference(x, params, n_head)
    assert out.shape == (B, T, n_embd)
    # Tolerance accounts for bf16 MXU inputs (weights/activations) with f32 accumulation.
    assert jnp.allclose(out, ref, atol=2e-2, rtol=2e-2), "mismatch vs reference"

    print("KERNEL_OK")
</pallas_src>

<mosaic_0001>
module attributes {stable_mosaic.version = 11 : i64} {
  func.func @_block_kernel(%arg0: i32, %arg1: memref<8x32xf32, #tpu.memory_space<vmem>>, %arg2: memref<1x32xf32, #tpu.memory_space<vmem>>, %arg3: memref<1x32xf32, #tpu.memory_space<vmem>>, %arg4: memref<32x32xbf16, #tpu.memory_space<vmem>>, %arg5: memref<1x32xf32, #tpu.memory_space<vmem>>, %arg6: memref<32x32xbf16, #tpu.memory_space<vmem>>, %arg7: memref<1x32xf32, #tpu.memory_space<vmem>>, %arg8: memref<32x32xbf16, #tpu.memory_space<vmem>>, %arg9: memref<1x32xf32, #tpu.memory_space<vmem>>, %arg10: memref<32x32xbf16, #tpu.memory_space<vmem>>, %arg11: memref<1x32xf32, #tpu.memory_space<vmem>>, %arg12: memref<1x32xf32, #tpu.memory_space<vmem>>, %arg13: memref<1x32xf32, #tpu.memory_space<vmem>>, %arg14: memref<32x128xbf16, #tpu.memory_space<vmem>>, %arg15: memref<1x128xf32, #tpu.memory_space<vmem>>, %arg16: memref<128x32xbf16, #tpu.memory_space<vmem>>, %arg17: memref<1x32xf32, #tpu.memory_space<vmem>>, %arg18: memref<8x32xf32, #tpu.memory_space<vmem>>, %arg19: memref<8x32xbf16, #tpu.memory_space<vmem>>) attributes {dimension_semantics = [#tpu.dimension_semantics<parallel>], iteration_bounds = array<i64: 2>, scalar_prefetch = 0 : i64, scratch_operands = 1 : i64, tpu.core_type = #tpu.core_type<tc>, window_params = [{transform_indices = @transform_0, window_bounds = array<i64: 8, 32>}, {pipeline_mode = #tpu.pipeline_mode<synchronous>, transform_indices = @transform_1, window_bounds = array<i64: 1, 32>}, {pipeline_mode = #tpu.pipeline_mode<synchronous>, transform_indices = @transform_2, window_bounds = array<i64: 1, 32>}, {pipeline_mode = #tpu.pipeline_mode<synchronous>, transform_indices = @transform_3, window_bounds = array<i64: 32, 32>}, {pipeline_mode = #tpu.pipeline_mode<synchronous>, transform_indices = @transform_4, window_bounds = array<i64: 1, 32>}, {pipeline_mode = #tpu.pipeline_mode<synchronous>, transform_indices = @transform_5, window_bounds = array<i64: 32, 32>}, {pipeline_mode = #tpu.pipeline_mode<synchronous>, transform_indices = @transform_6, window_bounds = array<i64: 1, 32>}, {pipeline_mode = #tpu.pipeline_mode<synchronous>, transform_indices = @transform_7, window_bounds = array<i64: 32, 32>}, {pipeline_mode = #tpu.pipeline_mode<synchronous>, transform_indices = @transform_8, window_bounds = array<i64: 1, 32>}, {pipeline_mode = #tpu.pipeline_mode<synchronous>, transform_indices = @transform_9, window_bounds = array<i64: 32, 32>}, {pipeline_mode = #tpu.pipeline_mode<synchronous>, transform_indices = @transform_10, window_bounds = array<i64: 1, 32>}, {pipeline_mode = #tpu.pipeline_mode<synchronous>, transform_indices = @transform_11, window_bounds = array<i64: 1, 32>}, {pipeline_mode = #tpu.pipeline_mode<synchronous>, transform_indices = @transform_12, window_bounds = array<i64: 1, 32>}, {pipeline_mode = #tpu.pipeline_mode<synchronous>, transform_indices = @transform_13, window_bounds = array<i64: 32, 128>}, {pipeline_mode = #tpu.pipeline_mode<synchronous>, transform_indices = @transform_14, window_bounds = array<i64: 1, 128>}, {pipeline_mode = #tpu.pipeline_mode<synchronous>, transform_indices = @transform_15, window_bounds = array<i64: 128, 32>}, {pipeline_mode = #tpu.pipeline_mode<synchronous>, transform_indices = @transform_16, window_bounds = array<i64: 1, 32>}, {transform_indices = @transform_17, window_bounds = array<i64: 8, 32>}]} {
    %c0 = arith.constant 0 : index
    %c0_0 = arith.constant 0 : index
    %0 = vector.load %arg2[%c0, %c0_0] : memref<1x32xf32, #tpu.memory_space<vmem>>, vector<1x32xf32>
    %1 = vector.shape_cast %0 : vector<1x32xf32> to vector<32xf32>
    %c0_1 = arith.constant 0 : index
    %c0_2 = arith.constant 0 : index
    %2 = vector.load %arg3[%c0_1, %c0_2] : memref<1x32xf32, #tpu.memory_space<vmem>>, vector<1x32xf32>
    %3 = vector.shape_cast %2 : vector<1x32xf32> to vector<32xf32>
    %c0_3 = arith.constant 0 : index
    %c0_4 = arith.constant 0 : index
    %4 = vector.load %arg12[%c0_3, %c0_4] : memref<1x32xf32, #tpu.memory_space<vmem>>, vector<1x32xf32>
    %5 = vector.shape_cast %4 : vector<1x32xf32> to vector<32xf32>
    %c0_5 = arith.constant 0 : index
    %c0_6 = arith.constant 0 : index
    %6 = vector.load %arg13[%c0_5, %c0_6] : memref<1x32xf32, #tpu.memory_space<vmem>>, vector<1x32xf32>
    %7 = vector.shape_cast %6 : vector<1x32xf32> to vector<32xf32>
    %c0_7 = arith.constant 0 : index
    %c0_8 = arith.constant 0 : index
    %8 = vector.load %arg5[%c0_7, %c0_8] : memref<1x32xf32, #tpu.memory_space<vmem>>, vector<1x32xf32>
    %9 = vector.shape_cast %8 : vector<1x32xf32> to vector<32xf32>
    %c0_9 = arith.constant 0 : index
    %c0_10 = arith.constant 0 : index
    %10 = vector.load %arg7[%c0_9, %c0_10] : memref<1x32xf32, #tpu.memory_space<vmem>>, vector<1x32xf32>
    %11 = vector.shape_cast %10 : vector<1x32xf32> to vector<32xf32>
    %c0_11 = arith.constant 0 : index
    %c0_12 = arith.constant 0 : index
    %12 = vector.load %arg9[%c0_11, %c0_12] : memref<1x32xf32, #tpu.memory_space<vmem>>, vector<1x32xf32>
    %13 = vector.shape_cast %12 : vector<1x32xf32> to vector<32xf32>
    %c0_13 = arith.constant 0 : index
    %c0_14 = arith.constant 0 : index
    %14 = vector.load %arg11[%c0_13, %c0_14] : memref<1x32xf32, #tpu.memory_space<vmem>>, vector<1x32xf32>
    %15 = vector.shape_cast %14 : vector<1x32xf32> to vector<32xf32>
    %c0_15 = arith.constant 0 : index
    %c0_16 = arith.constant 0 : index
    %16 = vector.load %arg15[%c0_15, %c0_16] : memref<1x128xf32, #tpu.memory_space<vmem>>, vector<1x128xf32>
    %17 = vector.shape_cast %16 : vector<1x128xf32> to vector<128xf32>
    %c0_17 = arith.constant 0 : index
    %c0_18 = arith.constant 0 : index
    %18 = vector.load %arg17[%c0_17, %c0_18] : memref<1x32xf32, #tpu.memory_space<vmem>>, vector<1x32xf32>
    %19 = vector.shape_cast %18 : vector<1x32xf32> to vector<32xf32>
    %c0_19 = arith.constant 0 : index
    %c0_20 = arith.constant 0 : index
    %20 = vector.load %arg1[%c0_19, %c0_20] : memref<8x32xf32, #tpu.memory_space<vmem>>, vector<8x32xf32>
    %cst = arith.constant dense<0.000000e+00> : vector<8xf32>
    %21 = vector.multi_reduction <add>, %20, %cst [1] : vector<8x32xf32> to vector<8xf32>
    %22 = vector.shape_cast %21 : vector<8xf32> to vector<8x1xf32>
    %cst_21 = arith.constant 3.200000e+01 : f32
    %23 = vector.broadcast %cst_21 : f32 to vector<8x1xf32>
    %24 = arith.divf %22, %23 : vector<8x1xf32>
    %25 = vector.broadcast %24 : vector<8x1xf32> to vector<8x32xf32>
    %26 = arith.subf %20, %25 : vector<8x32xf32>
    %27 = arith.mulf %26, %26 : vector<8x32xf32>
    %cst_22 = arith.constant dense<0.000000e+00> : vector<8xf32>
    %28 = vector.multi_reduction <add>, %27, %cst_22 [1] : vector<8x32xf32> to vector<8xf32>
    %29 = vector.shape_cast %28 : vector<8xf32> to vector<8x1xf32>
    %cst_23 = arith.constant 3.200000e+01 : f32
    %30 = vector.broadcast %cst_23 : f32 to vector<8x1xf32>
    %31 = arith.divf %29, %30 : vector<8x1xf32>
    %32 = vector.broadcast %24 : vector<8x1xf32> to vector<8x32xf32>
    %33 = arith.subf %20, %32 : vector<8x32xf32>
    %cst_24 = arith.constant 9.99999974E-6 : f32
    %34 = vector.broadcast %cst_24 : f32 to vector<8x1xf32>
    %35 = arith.addf %31, %34 : vector<8x1xf32>
    %36 = math.rsqrt %35 : vector<8x1xf32>
    %37 = vector.broadcast %36 : vector<8x1xf32> to vector<8x32xf32>
    %38 = arith.mulf %33, %37 : vector<8x32xf32>
    %39 = vector.shape_cast %1 : vector<32xf32> to vector<1x32xf32>
    %40 = vector.broadcast %39 : vector<1x32xf32> to vector<8x32xf32>
    %41 = arith.mulf %38, %40 : vector<8x32xf32>
    %42 = vector.shape_cast %3 : vector<32xf32> to vector<1x32xf32>
    %43 = vector.broadcast %42 : vector<1x32xf32> to vector<8x32xf32>
    %44 = arith.addf %41, %43 : vector<8x32xf32>
    %45 = arith.truncf %44 : vector<8x32xf32> to vector<8x32xbf16>
    %c0_25 = arith.constant 0 : index
    %c0_26 = arith.constant 0 : index
    %46 = vector.load %arg4[%c0_25, %c0_26] : memref<32x32xbf16, #tpu.memory_space<vmem>>, vector<32x32xbf16>
    %cst_27 = arith.constant dense<0.000000e+00> : vector<8x32xf32>
    %47 = tpu.matmul %45, %46, %cst_27 {dimension_numbers = #tpu.dot_dimension_numbers<[1], [0], [0], [1], [0, 0, 1, 1], [], []>} : vector<8x32xbf16>, vector<32x32xbf16>, vector<8x32xf32> -> vector<8x32xf32>
    %48 = vector.shape_cast %9 : vector<32xf32> to vector<1x32xf32>
    %49 = vector.broadcast %48 : vector<1x32xf32> to vector<8x32xf32>
    %50 = arith.addf %47, %49 : vector<8x32xf32>
    %51 = arith.truncf %50 : vector<8x32xf32> to vector<8x32xbf16>
    %c0_28 = arith.constant 0 : index
    %c0_29 = arith.constant 0 : index
    %52 = vector.load %arg6[%c0_28, %c0_29] : memref<32x32xbf16, #tpu.memory_space<vmem>>, vector<32x32xbf16>
    %cst_30 = arith.constant dense<0.000000e+00> : vector<8x32xf32>
    %53 = tpu.matmul %45, %52, %cst_30 {dimension_numbers = #tpu.dot_dimension_numbers<[1], [0], [0], [1], [0, 0, 1, 1], [], []>} : vector<8x32xbf16>, vector<32x32xbf16>, vector<8x32xf32> -> vector<8x32xf32>
    %54 = vector.shape_cast %11 : vector<32xf32> to vector<1x32xf32>
    %55 = vector.broadcast %54 : vector<1x32xf32> to vector<8x32xf32>
    %56 = arith.addf %53, %55 : vector<8x32xf32>
    %57 = arith.truncf %56 : vector<8x32xf32> to vector<8x32xbf16>
    %c0_31 = arith.constant 0 : index
    %c0_32 = arith.constant 0 : index
    %58 = vector.load %arg8[%c0_31, %c0_32] : memref<32x32xbf16, #tpu.memory_space<vmem>>, vector<32x32xbf16>
    %cst_33 = arith.constant dense<0.000000e+00> : vector<8x32xf32>
    %59 = tpu.matmul %45, %58, %cst_33 {dimension_numbers = #tpu.dot_dimension_numbers<[1], [0], [0], [1], [0, 0, 1, 1], [], []>} : vector<8x32xbf16>, vector<32x32xbf16>, vector<8x32xf32> -> vector<8x32xf32>
    %60 = vector.shape_cast %13 : vector<32xf32> to vector<1x32xf32>
    %61 = vector.broadcast %60 : vector<1x32xf32> to vector<8x32xf32>
    %62 = arith.addf %59, %61 : vector<8x32xf32>
    %63 = arith.truncf %62 : vector<8x32xf32> to vector<8x32xbf16>
    %64 = vector.shape_cast %51 : vector<8x32xbf16> to vector<1x8x32xbf16>
    %65 = vector.shape_cast %57 : vector<8x32xbf16> to vector<1x8x32xbf16>
    %66 = vector.shape_cast %63 : vector<8x32xbf16> to vector<1x8x32xbf16>
    %67 = vector.extract_strided_slice %64 {offsets = [0, 0, 0], sizes = [1, 8, 8], strides = [1, 1, 1]} : vector<1x8x32xbf16> to vector<1x8x8xbf16>
    %68 = vector.extract_strided_slice %65 {offsets = [0, 0, 0], sizes = [1, 8, 8], strides = [1, 1, 1]} : vector<1x8x32xbf16> to vector<1x8x8xbf16>
    %69 = vector.extract_strided_slice %66 {offsets = [0, 0, 0], sizes = [1, 8, 8], strides = [1, 1, 1]} : vector<1x8x32xbf16> to vector<1x8x8xbf16>
    "tpu.trace_start"() <{level = 10 : i32, message = "bqd,bkd->bqk"}> : () -> ()
    %cst_34 = arith.constant dense<0.000000e+00> : vector<1x8x8xf32>
    %70 = tpu.matmul %67, %68, %cst_34 {dimension_numbers = #tpu.dot_dimension_numbers<[2], [2], [1], [1], [0, 0, 0, 1, 1, 1], [0], [0]>} : vector<1x8x8xbf16>, vector<1x8x8xbf16>, vector<1x8x8xf32> -> vector<1x8x8xf32>
    "tpu.trace_stop"() : () -> ()
    %cst_35 = arith.constant 0.353553385 : f32
    %71 = vector.broadcast %cst_35 : f32 to vector<1x8x8xf32>
    %72 = arith.mulf %70, %71 : vector<1x8x8xf32>
    %cst_36 = arith.constant dense<0xFF800000> : vector<1x8xf32>
    %73 = vector.multi_reduction <maximumf>, %72, %cst_36 [2] : vector<1x8x8xf32> to vector<1x8xf32>
    %74 = vector.shape_cast %73 : vector<1x8xf32> to vector<1x8x1xf32>
    %75 = vector.broadcast %74 : vector<1x8x1xf32> to vector<1x8x8xf32>
    %76 = arith.subf %72, %75 : vector<1x8x8xf32>
    %77 = math.exp %76 : vector<1x8x8xf32>
    %cst_37 = arith.constant dense<0.000000e+00> : vector<1x8xf32>
    %78 = vector.multi_reduction <add>, %77, %cst_37 [2] : vector<1x8x8xf32> to vector<1x8xf32>
    %79 = vector.shape_cast %78 : vector<1x8xf32> to vector<1x8x1xf32>
    %80 = tpu.reciprocal %79 {approx = true} : vector<1x8x1xf32> -> vector<1x8x1xf32>
    %81 = vector.broadcast %80 : vector<1x8x1xf32> to vector<1x8x8xf32>
    %82 = arith.mulf %77, %81 : vector<1x8x8xf32>
    %83 = arith.truncf %82 : vector<1x8x8xf32> to vector<1x8x8xbf16>
    "tpu.trace_start"() <{level = 10 : i32, message = "bqk,bkd->bqd"}> : () -> ()
    %cst_38 = arith.constant dense<0.000000e+00> : vector<1x8x8xf32>
    %84 = tpu.matmul %83, %69, %cst_38 {dimension_numbers = #tpu.dot_dimension_numbers<[2], [1], [1], [2], [0, 0, 0, 1, 1, 2], [0], [0]>} : vector<1x8x8xbf16>, vector<1x8x8xbf16>, vector<1x8x8xf32> -> vector<1x8x8xf32>
    "tpu.trace_stop"() : () -> ()
    %85 = vector.shape_cast %84 : vector<1x8x8xf32> to vector<8x8xf32>
    %86 = arith.truncf %85 : vector<8x8xf32> to vector<8x8xbf16>
    %c0_39 = arith.constant 0 : index
    %c0_40 = arith.constant 0 : index
    %87 = vector.load %arg19[%c0_39, %c0_40] : memref<8x32xbf16, #tpu.memory_space<vmem>>, vector<8x8xbf16>
    tpu.vector_store %arg19[%c0_39, %c0_40], %86 {strides = array<i32>} : memref<8x32xbf16, #tpu.memory_space<vmem>>, vector<8x8xbf16>,
    %88 = vector.extract_strided_slice %64 {offsets = [0, 0, 8], sizes = [1, 8, 8], strides = [1, 1, 1]} : vector<1x8x32xbf16> to vector<1x8x8xbf16>
    %89 = vector.extract_strided_slice %65 {offsets = [0, 0, 8], sizes = [1, 8, 8], strides = [1, 1, 1]} : vector<1x8x32xbf16> to vector<1x8x8xbf16>
    %90 = vector.extract_strided_slice %66 {offsets = [0, 0, 8], sizes = [1, 8, 8], strides = [1, 1, 1]} : vector<1x8x32xbf16> to vector<1x8x8xbf16>
    "tpu.trace_start"() <{level = 10 : i32, message = "bqd,bkd->bqk"}> : () -> ()
    %cst_41 = arith.constant dense<0.000000e+00> : vector<1x8x8xf32>
    %91 = tpu.matmul %88, %89, %cst_41 {dimension_numbers = #tpu.dot_dimension_numbers<[2], [2], [1], [1], [0, 0, 0, 1, 1, 1], [0], [0]>} : vector<1x8x8xbf16>, vector<1x8x8xbf16>, vector<1x8x8xf32> -> vector<1x8x8xf32>
    "tpu.trace_stop"() : () -> ()
    %cst_42 = arith.constant 0.353553385 : f32
    %92 = vector.broadcast %cst_42 : f32 to vector<1x8x8xf32>
    %93 = arith.mulf %91, %92 : vector<1x8x8xf32>
    %cst_43 = arith.constant dense<0xFF800000> : vector<1x8xf32>
    %94 = vector.multi_reduction <maximumf>, %93, %cst_43 [2] : vector<1x8x8xf32> to vector<1x8xf32>
    %95 = vector.shape_cast %94 : vector<1x8xf32> to vector<1x8x1xf32>
    %96 = vector.broadcast %95 : vector<1x8x1xf32> to vector<1x8x8xf32>
    %97 = arith.subf %93, %96 : vector<1x8x8xf32>
    %98 = math.exp %97 : vector<1x8x8xf32>
    %cst_44 = arith.constant dense<0.000000e+00> : vector<1x8xf32>
    %99 = vector.multi_reduction <add>, %98, %cst_44 [2] : vector<1x8x8xf32> to vector<1x8xf32>
    %100 = vector.shape_cast %99 : vector<1x8xf32> to vector<1x8x1xf32>
    %101 = tpu.reciprocal %100 {approx = true} : vector<1x8x1xf32> -> vector<1x8x1xf32>
    %102 = vector.broadcast %101 : vector<1x8x1xf32> to vector<1x8x8xf32>
    %103 = arith.mulf %98, %102 : vector<1x8x8xf32>
    %104 = arith.truncf %103 : vector<1x8x8xf32> to vector<1x8x8xbf16>
    "tpu.trace_start"() <{level = 10 : i32, message = "bqk,bkd->bqd"}> : () -> ()
    %cst_45 = arith.constant dense<0.000000e+00> : vector<1x8x8xf32>
    %105 = tpu.matmul %104, %90, %cst_45 {dimension_numbers = #tpu.dot_dimension_numbers<[2], [1], [1], [2], [0, 0, 0, 1, 1, 2], [0], [0]>} : vector<1x8x8xbf16>, vector<1x8x8xbf16>, vector<1x8x8xf32> -> vector<1x8x8xf32>
    "tpu.trace_stop"() : () -> ()
    %106 = vector.shape_cast %105 : vector<1x8x8xf32> to vector<8x8xf32>
    %107 = arith.truncf %106 : vector<8x8xf32> to vector<8x8xbf16>
    %c0_46 = arith.constant 0 : index
    %c8 = arith.constant 8 : index
    %108 = vector.load %arg19[%c0_46, %c8] : memref<8x32xbf16, #tpu.memory_space<vmem>>, vector<8x8xbf16>
    tpu.vector_store %arg19[%c0_46, %c8], %107 {strides = array<i32>} : memref<8x32xbf16, #tpu.memory_space<vmem>>, vector<8x8xbf16>,
    %109 = vector.extract_strided_slice %64 {offsets = [0, 0, 16], sizes = [1, 8, 8], strides = [1, 1, 1]} : vector<1x8x32xbf16> to vector<1x8x8xbf16>
    %110 = vector.extract_strided_slice %65 {offsets = [0, 0, 16], sizes = [1, 8, 8], strides = [1, 1, 1]} : vector<1x8x32xbf16> to vector<1x8x8xbf16>
    %111 = vector.extract_strided_slice %66 {offsets = [0, 0, 16], sizes = [1, 8, 8], strides = [1, 1, 1]} : vector<1x8x32xbf16> to vector<1x8x8xbf16>
    "tpu.trace_start"() <{level = 10 : i32, message = "bqd,bkd->bqk"}> : () -> ()
    %cst_47 = arith.constant dense<0.000000e+00> : vector<1x8x8xf32>
    %112 = tpu.matmul %109, %110, %cst_47 {dimension_numbers = #tpu.dot_dimension_numbers<[2], [2], [1], [1], [0, 0, 0, 1, 1, 1], [0], [0]>} : vector<1x8x8xbf16>, vector<1x8x8xbf16>, vector<1x8x8xf32> -> vector<1x8x8xf32>
    "tpu.trace_stop"() : () -> ()
    %cst_48 = arith.constant 0.353553385 : f32
    %113 = vector.broadcast %cst_48 : f32 to vector<1x8x8xf32>
    %114 = arith.mulf %112, %113 : vector<1x8x8xf32>
    %cst_49 = arith.constant dense<0xFF800000> : vector<1x8xf32>
    %115 = vector.multi_reduction <maximumf>, %114, %cst_49 [2] : vector<1x8x8xf32> to vector<1x8xf32>
    %116 = vector.shape_cast %115 : vector<1x8xf32> to vector<1x8x1xf32>
    %117 = vector.broadcast %116 : vector<1x8x1xf32> to vector<1x8x8xf32>
    %118 = arith.subf %114, %117 : vector<1x8x8xf32>
    %119 = math.exp %118 : vector<1x8x8xf32>
    %cst_50 = arith.constant dense<0.000000e+00> : vector<1x8xf32>
    %120 = vector.multi_reduction <add>, %119, %cst_50 [2] : vector<1x8x8xf32> to vector<1x8xf32>
    %121 = vector.shape_cast %120 : vector<1x8xf32> to vector<1x8x1xf32>
    %122 = tpu.reciprocal %121 {approx = true} : vector<1x8x1xf32> -> vector<1x8x1xf32>
    %123 = vector.broadcast %122 : vector<1x8x1xf32> to vector<1x8x8xf32>
    %124 = arith.mulf %119, %123 : vector<1x8x8xf32>
    %125 = arith.truncf %124 : vector<1x8x8xf32> to vector<1x8x8xbf16>
    "tpu.trace_start"() <{level = 10 : i32, message = "bqk,bkd->bqd"}> : () -> ()
    %cst_51 = arith.constant dense<0.000000e+00> : vector<1x8x8xf32>
    %126 = tpu.matmul %125, %111, %cst_51 {dimension_numbers = #tpu.dot_dimension_numbers<[2], [1], [1], [2], [0, 0, 0, 1, 1, 2], [0], [0]>} : vector<1x8x8xbf16>, vector<1x8x8xbf16>, vector<1x8x8xf32> -> vector<1x8x8xf32>
    "tpu.trace_stop"() : () -> ()
    %127 = vector.shape_cast %126 : vector<1x8x8xf32> to vector<8x8xf32>
    %128 = arith.truncf %127 : vector<8x8xf32> to vector<8x8xbf16>
    %c0_52 = arith.constant 0 : index
    %c16 = arith.constant 16 : index
    %129 = vector.load %arg19[%c0_52, %c16] : memref<8x32xbf16, #tpu.memory_space<vmem>>, vector<8x8xbf16>
    tpu.vector_store %arg19[%c0_52, %c16], %128 {strides = array<i32>} : memref<8x32xbf16, #tpu.memory_space<vmem>>, vector<8x8xbf16>,
    %130 = vector.extract_strided_slice %64 {offsets = [0, 0, 24], sizes = [1, 8, 8], strides = [1, 1, 1]} : vector<1x8x32xbf16> to vector<1x8x8xbf16>
    %131 = vector.extract_strided_slice %65 {offsets = [0, 0, 24], sizes = [1, 8, 8], strides = [1, 1, 1]} : vector<1x8x32xbf16> to vector<1x8x8xbf16>
    %132 = vector.extract_strided_slice %66 {offsets = [0, 0, 24], sizes = [1, 8, 8], strides = [1, 1, 1]} : vector<1x8x32xbf16> to vector<1x8x8xbf16>
    "tpu.trace_start"() <{level = 10 : i32, message = "bqd,bkd->bqk"}> : () -> ()
    %cst_53 = arith.constant dense<0.000000e+00> : vector<1x8x8xf32>
    %133 = tpu.matmul %130, %131, %cst_53 {dimension_numbers = #tpu.dot_dimension_numbers<[2], [2], [1], [1], [0, 0, 0, 1, 1, 1], [0], [0]>} : vector<1x8x8xbf16>, vector<1x8x8xbf16>, vector<1x8x8xf32> -> vector<1x8x8xf32>
    "tpu.trace_stop"() : () -> ()
    %cst_54 = arith.constant 0.353553385 : f32
    %134 = vector.broadcast %cst_54 : f32 to vector<1x8x8xf32>
    %135 = arith.mulf %133, %134 : vector<1x8x8xf32>
    %cst_55 = arith.constant dense<0xFF800000> : vector<1x8xf32>
    %136 = vector.multi_reduction <maximumf>, %135, %cst_55 [2] : vector<1x8x8xf32> to vector<1x8xf32>
    %137 = vector.shape_cast %136 : vector<1x8xf32> to vector<1x8x1xf32>
    %138 = vector.broadcast %137 : vector<1x8x1xf32> to vector<1x8x8xf32>
    %139 = arith.subf %135, %138 : vector<1x8x8xf32>
    %140 = math.exp %139 : vector<1x8x8xf32>
    %cst_56 = arith.constant dense<0.000000e+00> : vector<1x8xf32>
    %141 = vector.multi_reduction <add>, %140, %cst_56 [2] : vector<1x8x8xf32> to vector<1x8xf32>
    %142 = vector.shape_cast %141 : vector<1x8xf32> to vector<1x8x1xf32>
    %143 = tpu.reciprocal %142 {approx = true} : vector<1x8x1xf32> -> vector<1x8x1xf32>
    %144 = vector.broadcast %143 : vector<1x8x1xf32> to vector<1x8x8xf32>
    %145 = arith.mulf %140, %144 : vector<1x8x8xf32>
    %146 = arith.truncf %145 : vector<1x8x8xf32> to vector<1x8x8xbf16>
    "tpu.trace_start"() <{level = 10 : i32, message = "bqk,bkd->bqd"}> : () -> ()
    %cst_57 = arith.constant dense<0.000000e+00> : vector<1x8x8xf32>
    %147 = tpu.matmul %146, %132, %cst_57 {dimension_numbers = #tpu.dot_dimension_numbers<[2], [1], [1], [2], [0, 0, 0, 1, 1, 2], [0], [0]>} : vector<1x8x8xbf16>, vector<1x8x8xbf16>, vector<1x8x8xf32> -> vector<1x8x8xf32>
    "tpu.trace_stop"() : () -> ()
    %148 = vector.shape_cast %147 : vector<1x8x8xf32> to vector<8x8xf32>
    %149 = arith.truncf %148 : vector<8x8xf32> to vector<8x8xbf16>
    %c0_58 = arith.constant 0 : index
    %c24 = arith.constant 24 : index
    %150 = vector.load %arg19[%c0_58, %c24] : memref<8x32xbf16, #tpu.memory_space<vmem>>, vector<8x8xbf16>
    tpu.vector_store %arg19[%c0_58, %c24], %149 {strides = array<i32>} : memref<8x32xbf16, #tpu.memory_space<vmem>>, vector<8x8xbf16>,
    %c0_59 = arith.constant 0 : index
    %c0_60 = arith.constant 0 : index
    %151 = vector.load %arg19[%c0_59, %c0_60] : memref<8x32xbf16, #tpu.memory_space<vmem>>, vector<8x32xbf16>
    %c0_61 = arith.constant 0 : index
    %c0_62 = arith.constant 0 : index
    %152 = vector.load %arg10[%c0_61, %c0_62] : memref<32x32xbf16, #tpu.memory_space<vmem>>, vector<32x32xbf16>
    %cst_63 = arith.constant dense<0.000000e+00> : vector<8x32xf32>
    %153 = tpu.matmul %151, %152, %cst_63 {dimension_numbers = #tpu.dot_dimension_numbers<[1], [0], [0], [1], [0, 0, 1, 1], [], []>} : vector<8x32xbf16>, vector<32x32xbf16>, vector<8x32xf32> -> vector<8x32xf32>
    %154 = vector.shape_cast %15 : vector<32xf32> to vector<1x32xf32>
    %155 = vector.broadcast %154 : vector<1x32xf32> to vector<8x32xf32>
    %156 = arith.addf %153, %155 : vector<8x32xf32>
    %157 = arith.addf %20, %156 : vector<8x32xf32>
    %cst_64 = arith.constant dense<0.000000e+00> : vector<8xf32>
    %158 = vector.multi_reduction <add>, %157, %cst_64 [1] : vector<8x32xf32> to vector<8xf32>
    %159 = vector.shape_cast %158 : vector<8xf32> to vector<8x1xf32>
    %cst_65 = arith.constant 3.200000e+01 : f32
    %160 = vector.broadcast %cst_65 : f32 to vector<8x1xf32>
    %161 = arith.divf %159, %160 : vector<8x1xf32>
    %162 = vector.broadcast %161 : vector<8x1xf32> to vector<8x32xf32>
    %163 = arith.subf %157, %162 : vector<8x32xf32>
    %164 = arith.mulf %163, %163 : vector<8x32xf32>
    %cst_66 = arith.constant dense<0.000000e+00> : vector<8xf32>
    %165 = vector.multi_reduction <add>, %164, %cst_66 [1] : vector<8x32xf32> to vector<8xf32>
    %166 = vector.shape_cast %165 : vector<8xf32> to vector<8x1xf32>
    %cst_67 = arith.constant 3.200000e+01 : f32
    %167 = vector.broadcast %cst_67 : f32 to vector<8x1xf32>
    %168 = arith.divf %166, %167 : vector<8x1xf32>
    %169 = vector.broadcast %161 : vector<8x1xf32> to vector<8x32xf32>
    %170 = arith.subf %157, %169 : vector<8x32xf32>
    %cst_68 = arith.constant 9.99999974E-6 : f32
    %171 = vector.broadcast %cst_68 : f32 to vector<8x1xf32>
    %172 = arith.addf %168, %171 : vector<8x1xf32>
    %173 = math.rsqrt %172 : vector<8x1xf32>
    %174 = vector.broadcast %173 : vector<8x1xf32> to vector<8x32xf32>
    %175 = arith.mulf %170, %174 : vector<8x32xf32>
    %176 = vector.shape_cast %5 : vector<32xf32> to vector<1x32xf32>
    %177 = vector.broadcast %176 : vector<1x32xf32> to vector<8x32xf32>
    %178 = arith.mulf %175, %177 : vector<8x32xf32>
    %179 = vector.shape_cast %7 : vector<32xf32> to vector<1x32xf32>
    %180 = vector.broadcast %179 : vector<1x32xf32> to vector<8x32xf32>
    %181 = arith.addf %178, %180 : vector<8x32xf32>
    %182 = arith.truncf %181 : vector<8x32xf32> to vector<8x32xbf16>
    %c0_69 = arith.constant 0 : index
    %c0_70 = arith.constant 0 : index
    %183 = vector.load %arg14[%c0_69, %c0_70] : memref<32x128xbf16, #tpu.memory_space<vmem>>, vector<32x128xbf16>
    %cst_71 = arith.constant dense<0.000000e+00> : vector<8x128xf32>
    %184 = tpu.matmul %182, %183, %cst_71 {dimension_numbers = #tpu.dot_dimension_numbers<[1], [0], [0], [1], [0, 0, 1, 1], [], []>} : vector<8x32xbf16>, vector<32x128xbf16>, vector<8x128xf32> -> vector<8x128xf32>
    %185 = vector.shape_cast %17 : vector<128xf32> to vector<1x128xf32>
    %186 = vector.broadcast %185 : vector<1x128xf32> to vector<8x128xf32>
    %187 = arith.addf %184, %186 : vector<8x128xf32>
    %cst_72 = arith.constant 0.000000e+00 : f32
    %188 = vector.broadcast %cst_72 : f32 to vector<8x128xf32>
    %189 = arith.maximumf %187, %188 : vector<8x128xf32>
    %190 = arith.truncf %189 : vector<8x128xf32> to vector<8x128xbf16>
    %c0_73 = arith.constant 0 : index
    %c0_74 = arith.constant 0 : index
    %191 = vector.load %arg16[%c0_73, %c0_74] : memref<128x32xbf16, #tpu.memory_space<vmem>>, vector<128x32xbf16>
    %cst_75 = arith.constant dense<0.000000e+00> : vector<8x32xf32>
    %192 = tpu.matmul %190, %191, %cst_75 {dimension_numbers = #tpu.dot_dimension_numbers<[1], [0], [0], [1], [0, 0, 1, 1], [], []>} : vector<8x128xbf16>, vector<128x32xbf16>, vector<8x32xf32> -> vector<8x32xf32>
    %193 = vector.shape_cast %19 : vector<32xf32> to vector<1x32xf32>
    %194 = vector.broadcast %193 : vector<1x32xf32> to vector<8x32xf32>
    %195 = arith.addf %192, %194 : vector<8x32xf32>
    %196 = arith.addf %157, %195 : vector<8x32xf32>
    %c0_76 = arith.constant 0 : index
    %c0_77 = arith.constant 0 : index
    %197 = vector.load %arg18[%c0_76, %c0_77] : memref<8x32xf32, #tpu.memory_space<vmem>>, vector<8x32xf32>
    tpu.vector_store %arg18[%c0_76, %c0_77], %196 {strides = array<i32>} : memref<8x32xf32, #tpu.memory_space<vmem>>, vector<8x32xf32>,
    return
  }
  func.func @transform_0(%arg0: i32) -> (i32, i32) {
    %c0_i32 = arith.constant 0 : i32
    %c0_i32_0 = arith.constant 0 : i32
    return %arg0, %c0_i32 : i32, i32
  }
  func.func @transform_1(%arg0: i32) -> (i32, i32) {
    %c0_i32 = arith.constant 0 : i32
    %c0_i32_0 = arith.constant 0 : i32
    %c0_i32_1 = arith.constant 0 : i32
    return %c0_i32, %c0_i32_0 : i32, i32
  }
  func.func @transform_2(%arg0: i32) -> (i32, i32) {
    %c0_i32 = arith.constant 0 : i32
    %c0_i32_0 = arith.constant 0 : i32
    %c0_i32_1 = arith.constant 0 : i32
    return %c0_i32, %c0_i32_0 : i32, i32
  }
  func.func @transform_3(%arg0: i32) -> (i32, i32) {
    %c0_i32 = arith.constant 0 : i32
    %c0_i32_0 = arith.constant 0 : i32
    %c0_i32_1 = arith.constant 0 : i32
    return %c0_i32, %c0_i32_0 : i32, i32
  }
  func.func @transform_4(%arg0: i32) -> (i32, i32) {
    %c0_i32 = arith.constant 0 : i32
    %c0_i32_0 = arith.constant 0 : i32
    %c0_i32_1 = arith.constant 0 : i32
    return %c0_i32, %c0_i32_0 : i32, i32
  }
  func.func @transform_5(%arg0: i32) -> (i32, i32) {
    %c0_i32 = arith.constant 0 : i32
    %c0_i32_0 = arith.constant 0 : i32
    %c0_i32_1 = arith.constant 0 : i32
    return %c0_i32, %c0_i32_0 : i32, i32
  }
  func.func @transform_6(%arg0: i32) -> (i32, i32) {
    %c0_i32 = arith.constant 0 : i32
    %c0_i32_0 = arith.constant 0 : i32
    %c0_i32_1 = arith.constant 0 : i32
    return %c0_i32, %c0_i32_0 : i32, i32
  }
  func.func @transform_7(%arg0: i32) -> (i32, i32) {
    %c0_i32 = arith.constant 0 : i32
    %c0_i32_0 = arith.constant 0 : i32
    %c0_i32_1 = arith.constant 0 : i32
    return %c0_i32, %c0_i32_0 : i32, i32
  }
  func.func @transform_8(%arg0: i32) -> (i32, i32) {
    %c0_i32 = arith.constant 0 : i32
    %c0_i32_0 = arith.constant 0 : i32
    %c0_i32_1 = arith.constant 0 : i32
    return %c0_i32, %c0_i32_0 : i32, i32
  }
  func.func @transform_9(%arg0: i32) -> (i32, i32) {
    %c0_i32 = arith.constant 0 : i32
    %c0_i32_0 = arith.constant 0 : i32
    %c0_i32_1 = arith.constant 0 : i32
    return %c0_i32, %c0_i32_0 : i32, i32
  }
  func.func @transform_10(%arg0: i32) -> (i32, i32) {
    %c0_i32 = arith.constant 0 : i32
    %c0_i32_0 = arith.constant 0 : i32
    %c0_i32_1 = arith.constant 0 : i32
    return %c0_i32, %c0_i32_0 : i32, i32
  }
  func.func @transform_11(%arg0: i32) -> (i32, i32) {
    %c0_i32 = arith.constant 0 : i32
    %c0_i32_0 = arith.constant 0 : i32
    %c0_i32_1 = arith.constant 0 : i32
    return %c0_i32, %c0_i32_0 : i32, i32
  }
  func.func @transform_12(%arg0: i32) -> (i32, i32) {
    %c0_i32 = arith.constant 0 : i32
    %c0_i32_0 = arith.constant 0 : i32
    %c0_i32_1 = arith.constant 0 : i32
    return %c0_i32, %c0_i32_0 : i32, i32
  }
  func.func @transform_13(%arg0: i32) -> (i32, i32) {
    %c0_i32 = arith.constant 0 : i32
    %c0_i32_0 = arith.constant 0 : i32
    %c0_i32_1 = arith.constant 0 : i32
    return %c0_i32, %c0_i32_0 : i32, i32
  }
  func.func @transform_14(%arg0: i32) -> (i32, i32) {
    %c0_i32 = arith.constant 0 : i32
    %c0_i32_0 = arith.constant 0 : i32
    %c0_i32_1 = arith.constant 0 : i32
    return %c0_i32, %c0_i32_0 : i32, i32
  }
  func.func @transform_15(%arg0: i32) -> (i32, i32) {
    %c0_i32 = arith.constant 0 : i32
    %c0_i32_0 = arith.constant 0 : i32
    %c0_i32_1 = arith.constant 0 : i32
    return %c0_i32, %c0_i32_0 : i32, i32
  }
  func.func @transform_16(%arg0: i32) -> (i32, i32) {
    %c0_i32 = arith.constant 0 : i32
    %c0_i32_0 = arith.constant 0 : i32
    %c0_i32_1 = arith.constant 0 : i32
    return %c0_i32, %c0_i32_0 : i32, i32
  }
  func.func @transform_17(%arg0: i32) -> (i32, i32) {
    %c0_i32 = arith.constant 0 : i32
    %c0_i32_0 = arith.constant 0 : i32
    return %arg0, %c0_i32 : i32, i32
  }
}

module attributes {stable_mosaic.version = 11 : i64} {
  func.func @_block_kernel(%arg0: i32, %arg1: memref<8x32xf32, #tpu.memory_space<vmem>>, %arg2: memref<1x32xf32, #tpu.memory_space<vmem>>, %arg3: memref<1x32xf32, #tpu.memory_space<vmem>>, %arg4: memref<32x32xbf16, #tpu.memory_space<vmem>>, %arg5: memref<1x32xf32, #tpu.memory_space<vmem>>, %arg6: memref<32x32xbf16, #tpu.memory_space<vmem>>, %arg7: memref<1x32xf32, #tpu.memory_space<vmem>>, %arg8: memref<32x32xbf16, #tpu.memory_space<vmem>>, %arg9: memref<1x32xf32, #tpu.memory_space<vmem>>, %arg10: memref<32x32xbf16, #tpu.memory_space<vmem>>, %arg11: memref<1x32xf32, #tpu.memory_space<vmem>>, %arg12: memref<1x32xf32, #tpu.memory_space<vmem>>, %arg13: memref<1x32xf32, #tpu.memory_space<vmem>>, %arg14: memref<32x128xbf16, #tpu.memory_space<vmem>>, %arg15: memref<1x128xf32, #tpu.memory_space<vmem>>, %arg16: memref<128x32xbf16, #tpu.memory_space<vmem>>, %arg17: memref<1x32xf32, #tpu.memory_space<vmem>>, %arg18: memref<8x32xf32, #tpu.memory_space<vmem>>, %arg19: memref<8x32xbf16, #tpu.memory_space<vmem>>) attributes {dimension_semantics = [#tpu.dimension_semantics<parallel>], iteration_bounds = array<i64: 2>, scalar_prefetch = 0 : i64, scratch_operands = 1 : i64, tpu.core_type = #tpu.core_type<tc>, window_params = [{transform_indices = @transform_0, window_bounds = array<i64: 8, 32>}, {pipeline_mode = #tpu.pipeline_mode<synchronous>, transform_indices = @transform_1, window_bounds = array<i64: 1, 32>}, {pipeline_mode = #tpu.pipeline_mode<synchronous>, transform_indices = @transform_2, window_bounds = array<i64: 1, 32>}, {pipeline_mode = #tpu.pipeline_mode<synchronous>, transform_indices = @transform_3, window_bounds = array<i64: 32, 32>}, {pipeline_mode = #tpu.pipeline_mode<synchronous>, transform_indices = @transform_4, window_bounds = array<i64: 1, 32>}, {pipeline_mode = #tpu.pipeline_mode<synchronous>, transform_indices = @transform_5, window_bounds = array<i64: 32, 32>}, {pipeline_mode = #tpu.pipeline_mode<synchronous>, transform_indices = @transform_6, window_bounds = array<i64: 1, 32>}, {pipeline_mode = #tpu.pipeline_mode<synchronous>, transform_indices = @transform_7, window_bounds = array<i64: 32, 32>}, {pipeline_mode = #tpu.pipeline_mode<synchronous>, transform_indices = @transform_8, window_bounds = array<i64: 1, 32>}, {pipeline_mode = #tpu.pipeline_mode<synchronous>, transform_indices = @transform_9, window_bounds = array<i64: 32, 32>}, {pipeline_mode = #tpu.pipeline_mode<synchronous>, transform_indices = @transform_10, window_bounds = array<i64: 1, 32>}, {pipeline_mode = #tpu.pipeline_mode<synchronous>, transform_indices = @transform_11, window_bounds = array<i64: 1, 32>}, {pipeline_mode = #tpu.pipeline_mode<synchronous>, transform_indices = @transform_12, window_bounds = array<i64: 1, 32>}, {pipeline_mode = #tpu.pipeline_mode<synchronous>, transform_indices = @transform_13, window_bounds = array<i64: 32, 128>}, {pipeline_mode = #tpu.pipeline_mode<synchronous>, transform_indices = @transform_14, window_bounds = array<i64: 1, 128>}, {pipeline_mode = #tpu.pipeline_mode<synchronous>, transform_indices = @transform_15, window_bounds = array<i64: 128, 32>}, {pipeline_mode = #tpu.pipeline_mode<synchronous>, transform_indices = @transform_16, window_bounds = array<i64: 1, 32>}, {transform_indices = @transform_17, window_bounds = array<i64: 8, 32>}]} {
    %c0 = arith.constant 0 : index
    %c0_0 = arith.constant 0 : index
    %0 = vector.load %arg2[%c0, %c0_0] : memref<1x32xf32, #tpu.memory_space<vmem>>, vector<1x32xf32>
    %1 = vector.shape_cast %0 : vector<1x32xf32> to vector<32xf32>
    %c0_1 = arith.constant 0 : index
    %c0_2 = arith.constant 0 : index
    %2 = vector.load %arg3[%c0_1, %c0_2] : memref<1x32xf32, #tpu.memory_space<vmem>>, vector<1x32xf32>
    %3 = vector.shape_cast %2 : vector<1x32xf32> to vector<32xf32>
    %c0_3 = arith.constant 0 : index
    %c0_4 = arith.constant 0 : index
    %4 = vector.load %arg12[%c0_3, %c0_4] : memref<1x32xf32, #tpu.memory_space<vmem>>, vector<1x32xf32>
    %5 = vector.shape_cast %4 : vector<1x32xf32> to vector<32xf32>
    %c0_5 = arith.constant 0 : index
    %c0_6 = arith.constant 0 : index
    %6 = vector.load %arg13[%c0_5, %c0_6] : memref<1x32xf32, #tpu.memory_space<vmem>>, vector<1x32xf32>
    %7 = vector.shape_cast %6 : vector<1x32xf32> to vector<32xf32>
    %c0_7 = arith.constant 0 : index
    %c0_8 = arith.constant 0 : index
    %8 = vector.load %arg5[%c0_7, %c0_8] : memref<1x32xf32, #tpu.memory_space<vmem>>, vector<1x32xf32>
    %9 = vector.shape_cast %8 : vector<1x32xf32> to vector<32xf32>
    %c0_9 = arith.constant 0 : index
    %c0_10 = arith.constant 0 : index
    %10 = vector.load %arg7[%c0_9, %c0_10] : memref<1x32xf32, #tpu.memory_space<vmem>>, vector<1x32xf32>
    %11 = vector.shape_cast %10 : vector<1x32xf32> to vector<32xf32>
    %c0_11 = arith.constant 0 : index
    %c0_12 = arith.constant 0 : index
    %12 = vector.load %arg9[%c0_11, %c0_12] : memref<1x32xf32, #tpu.memory_space<vmem>>, vector<1x32xf32>
    %13 = vector.shape_cast %12 : vector<1x32xf32> to vector<32xf32>
    %c0_13 = arith.constant 0 : index
    %c0_14 = arith.constant 0 : index
    %14 = vector.load %arg11[%c0_13, %c0_14] : memref<1x32xf32, #tpu.memory_space<vmem>>, vector<1x32xf32>
    %15 = vector.shape_cast %14 : vector<1x32xf32> to vector<32xf32>
    %c0_15 = arith.constant 0 : index
    %c0_16 = arith.constant 0 : index
    %16 = vector.load %arg15[%c0_15, %c0_16] : memref<1x128xf32, #tpu.memory_space<vmem>>, vector<1x128xf32>
    %17 = vector.shape_cast %16 : vector<1x128xf32> to vector<128xf32>
    %c0_17 = arith.constant 0 : index
    %c0_18 = arith.constant 0 : index
    %18 = vector.load %arg17[%c0_17, %c0_18] : memref<1x32xf32, #tpu.memory_space<vmem>>, vector<1x32xf32>
    %19 = vector.shape_cast %18 : vector<1x32xf32> to vector<32xf32>
    %c0_19 = arith.constant 0 : index
    %c0_20 = arith.constant 0 : index
    %20 = vector.load %arg1[%c0_19, %c0_20] : memref<8x32xf32, #tpu.memory_space<vmem>>, vector<8x32xf32>
    %cst = arith.constant dense<0.000000e+00> : vector<8xf32>
    %21 = vector.multi_reduction <add>, %20, %cst [1] : vector<8x32xf32> to vector<8xf32>
    %22 = vector.shape_cast %21 : vector<8xf32> to vector<8x1xf32>
    %cst_21 = arith.constant 3.200000e+01 : f32
    %23 = vector.broadcast %cst_21 : f32 to vector<8x1xf32>
    %24 = arith.divf %22, %23 : vector<8x1xf32>
    %25 = vector.broadcast %24 : vector<8x1xf32> to vector<8x32xf32>
    %26 = arith.subf %20, %25 : vector<8x32xf32>
    %27 = arith.mulf %26, %26 : vector<8x32xf32>
    %cst_22 = arith.constant dense<0.000000e+00> : vector<8xf32>
    %28 = vector.multi_reduction <add>, %27, %cst_22 [1] : vector<8x32xf32> to vector<8xf32>
    %29 = vector.shape_cast %28 : vector<8xf32> to vector<8x1xf32>
    %cst_23 = arith.constant 3.200000e+01 : f32
    %30 = vector.broadcast %cst_23 : f32 to vector<8x1xf32>
    %31 = arith.divf %29, %30 : vector<8x1xf32>
    %32 = vector.broadcast %24 : vector<8x1xf32> to vector<8x32xf32>
    %33 = arith.subf %20, %32 : vector<8x32xf32>
    %cst_24 = arith.constant 9.99999974E-6 : f32
    %34 = vector.broadcast %cst_24 : f32 to vector<8x1xf32>
    %35 = arith.addf %31, %34 : vector<8x1xf32>
    %36 = math.rsqrt %35 : vector<8x1xf32>
    %37 = vector.broadcast %36 : vector<8x1xf32> to vector<8x32xf32>
    %38 = arith.mulf %33, %37 : vector<8x32xf32>
    %39 = vector.shape_cast %1 : vector<32xf32> to vector<1x32xf32>
    %40 = vector.broadcast %39 : vector<1x32xf32> to vector<8x32xf32>
    %41 = arith.mulf %38, %40 : vector<8x32xf32>
    %42 = vector.shape_cast %3 : vector<32xf32> to vector<1x32xf32>
    %43 = vector.broadcast %42 : vector<1x32xf32> to vector<8x32xf32>
    %44 = arith.addf %41, %43 : vector<8x32xf32>
    %45 = arith.truncf %44 : vector<8x32xf32> to vector<8x32xbf16>
    %c0_25 = arith.constant 0 : index
    %c0_26 = arith.constant 0 : index
    %46 = vector.load %arg4[%c0_25, %c0_26] : memref<32x32xbf16, #tpu.memory_space<vmem>>, vector<32x32xbf16>
    %cst_27 = arith.constant dense<0.000000e+00> : vector<8x32xf32>
    %47 = tpu.matmul %45, %46, %cst_27 {dimension_numbers = #tpu.dot_dimension_numbers<[1], [0], [0], [1], [0, 0, 1, 1], [], []>} : vector<8x32xbf16>, vector<32x32xbf16>, vector<8x32xf32> -> vector<8x32xf32>
    %48 = vector.shape_cast %9 : vector<32xf32> to vector<1x32xf32>
    %49 = vector.broadcast %48 : vector<1x32xf32> to vector<8x32xf32>
    %50 = arith.addf %47, %49 : vector<8x32xf32>
    %51 = arith.truncf %50 : vector<8x32xf32> to vector<8x32xbf16>
    %c0_28 = arith.constant 0 : index
    %c0_29 = arith.constant 0 : index
    %52 = vector.load %arg6[%c0_28, %c0_29] : memref<32x32xbf16, #tpu.memory_space<vmem>>, vector<32x32xbf16>
    %cst_30 = arith.constant dense<0.000000e+00> : vector<8x32xf32>
    %53 = tpu.matmul %45, %52, %cst_30 {dimension_numbers = #tpu.dot_dimension_numbers<[1], [0], [0], [1], [0, 0, 1, 1], [], []>} : vector<8x32xbf16>, vector<32x32xbf16>, vector<8x32xf32> -> vector<8x32xf32>
    %54 = vector.shape_cast %11 : vector<32xf32> to vector<1x32xf32>
    %55 = vector.broadcast %54 : vector<1x32xf32> to vector<8x32xf32>
    %56 = arith.addf %53, %55 : vector<8x32xf32>
    %57 = arith.truncf %56 : vector<8x32xf32> to vector<8x32xbf16>
    %c0_31 = arith.constant 0 : index
    %c0_32 = arith.constant 0 : index
    %58 = vector.load %arg8[%c0_31, %c0_32] : memref<32x32xbf16, #tpu.memory_space<vmem>>, vector<32x32xbf16>
    %cst_33 = arith.constant dense<0.000000e+00> : vector<8x32xf32>
    %59 = tpu.matmul %45, %58, %cst_33 {dimension_numbers = #tpu.dot_dimension_numbers<[1], [0], [0], [1], [0, 0, 1, 1], [], []>} : vector<8x32xbf16>, vector<32x32xbf16>, vector<8x32xf32> -> vector<8x32xf32>
    %60 = vector.shape_cast %13 : vector<32xf32> to vector<1x32xf32>
    %61 = vector.broadcast %60 : vector<1x32xf32> to vector<8x32xf32>
    %62 = arith.addf %59, %61 : vector<8x32xf32>
    %63 = arith.truncf %62 : vector<8x32xf32> to vector<8x32xbf16>
    %64 = vector.shape_cast %51 : vector<8x32xbf16> to vector<1x8x32xbf16>
    %65 = vector.shape_cast %57 : vector<8x32xbf16> to vector<1x8x32xbf16>
    %66 = vector.shape_cast %63 : vector<8x32xbf16> to vector<1x8x32xbf16>
    %67 = vector.extract_strided_slice %64 {offsets = [0, 0, 0], sizes = [1, 8, 8], strides = [1, 1, 1]} : vector<1x8x32xbf16> to vector<1x8x8xbf16>
    %68 = vector.extract_strided_slice %65 {offsets = [0, 0, 0], sizes = [1, 8, 8], strides = [1, 1, 1]} : vector<1x8x32xbf16> to vector<1x8x8xbf16>
    %69 = vector.extract_strided_slice %66 {offsets = [0, 0, 0], sizes = [1, 8, 8], strides = [1, 1, 1]} : vector<1x8x32xbf16> to vector<1x8x8xbf16>
    "tpu.trace_start"() <{level = 10 : i32, message = "bqd,bkd->bqk"}> : () -> ()
    %cst_34 = arith.constant dense<0.000000e+00> : vector<1x8x8xf32>
    %70 = tpu.matmul %67, %68, %cst_34 {dimension_numbers = #tpu.dot_dimension_numbers<[2], [2], [1], [1], [0, 0, 0, 1, 1, 1], [0], [0]>} : vector<1x8x8xbf16>, vector<1x8x8xbf16>, vector<1x8x8xf32> -> vector<1x8x8xf32>
    "tpu.trace_stop"() : () -> ()
    %cst_35 = arith.constant 0.353553385 : f32
    %71 = vector.broadcast %cst_35 : f32 to vector<1x8x8xf32>
    %72 = arith.mulf %70, %71 : vector<1x8x8xf32>
    %cst_36 = arith.constant dense<0xFF800000> : vector<1x8xf32>
    %73 = vector.multi_reduction <maximumf>, %72, %cst_36 [2] : vector<1x8x8xf32> to vector<1x8xf32>
    %74 = vector.shape_cast %73 : vector<1x8xf32> to vector<1x8x1xf32>
    %75 = vector.broadcast %74 : vector<1x8x1xf32> to vector<1x8x8xf32>
    %76 = arith.subf %72, %75 : vector<1x8x8xf32>
    %77 = math.exp %76 : vector<1x8x8xf32>
    %cst_37 = arith.constant dense<0.000000e+00> : vector<1x8xf32>
    %78 = vector.multi_reduction <add>, %77, %cst_37 [2] : vector<1x8x8xf32> to vector<1x8xf32>
    %79 = vector.shape_cast %78 : vector<1x8xf32> to vector<1x8x1xf32>
    %80 = tpu.reciprocal %79 {approx = true} : vector<1x8x1xf32> -> vector<1x8x1xf32>
    %81 = vector.broadcast %80 : vector<1x8x1xf32> to vector<1x8x8xf32>
    %82 = arith.mulf %77, %81 : vector<1x8x8xf32>
    %83 = arith.truncf %82 : vector<1x8x8xf32> to vector<1x8x8xbf16>
    "tpu.trace_start"() <{level = 10 : i32, message = "bqk,bkd->bqd"}> : () -> ()
    %cst_38 = arith.constant dense<0.000000e+00> : vector<1x8x8xf32>
    %84 = tpu.matmul %83, %69, %cst_38 {dimension_numbers = #tpu.dot_dimension_numbers<[2], [1], [1], [2], [0, 0, 0, 1, 1, 2], [0], [0]>} : vector<1x8x8xbf16>, vector<1x8x8xbf16>, vector<1x8x8xf32> -> vector<1x8x8xf32>
    "tpu.trace_stop"() : () -> ()
    %85 = vector.shape_cast %84 : vector<1x8x8xf32> to vector<8x8xf32>
    %86 = arith.truncf %85 : vector<8x8xf32> to vector<8x8xbf16>
    %c0_39 = arith.constant 0 : index
    %c0_40 = arith.constant 0 : index
    %87 = vector.load %arg19[%c0_39, %c0_40] : memref<8x32xbf16, #tpu.memory_space<vmem>>, vector<8x8xbf16>
    tpu.vector_store %arg19[%c0_39, %c0_40], %86 {strides = array<i32>} : memref<8x32xbf16, #tpu.memory_space<vmem>>, vector<8x8xbf16>,
    %88 = vector.extract_strided_slice %64 {offsets = [0, 0, 8], sizes = [1, 8, 8], strides = [1, 1, 1]} : vector<1x8x32xbf16> to vector<1x8x8xbf16>
    %89 = vector.extract_strided_slice %65 {offsets = [0, 0, 8], sizes = [1, 8, 8], strides = [1, 1, 1]} : vector<1x8x32xbf16> to vector<1x8x8xbf16>
    %90 = vector.extract_strided_slice %66 {offsets = [0, 0, 8], sizes = [1, 8, 8], strides = [1, 1, 1]} : vector<1x8x32xbf16> to vector<1x8x8xbf16>
    "tpu.trace_start"() <{level = 10 : i32, message = "bqd,bkd->bqk"}> : () -> ()
    %cst_41 = arith.constant dense<0.000000e+00> : vector<1x8x8xf32>
    %91 = tpu.matmul %88, %89, %cst_41 {dimension_numbers = #tpu.dot_dimension_numbers<[2], [2], [1], [1], [0, 0, 0, 1, 1, 1], [0], [0]>} : vector<1x8x8xbf16>, vector<1x8x8xbf16>, vector<1x8x8xf32> -> vector<1x8x8xf32>
    "tpu.trace_stop"() : () -> ()
    %cst_42 = arith.constant 0.353553385 : f32
    %92 = vector.broadcast %cst_42 : f32 to vector<1x8x8xf32>
    %93 = arith.mulf %91, %92 : vector<1x8x8xf32>
    %cst_43 = arith.constant dense<0xFF800000> : vector<1x8xf32>
    %94 = vector.multi_reduction <maximumf>, %93, %cst_43 [2] : vector<1x8x8xf32> to vector<1x8xf32>
    %95 = vector.shape_cast %94 : vector<1x8xf32> to vector<1x8x1xf32>
    %96 = vector.broadcast %95 : vector<1x8x1xf32> to vector<1x8x8xf32>
    %97 = arith.subf %93, %96 : vector<1x8x8xf32>
    %98 = math.exp %97 : vector<1x8x8xf32>
    %cst_44 = arith.constant dense<0.000000e+00> : vector<1x8xf32>
    %99 = vector.multi_reduction <add>, %98, %cst_44 [2] : vector<1x8x8xf32> to vector<1x8xf32>
    %100 = vector.shape_cast %99 : vector<1x8xf32> to vector<1x8x1xf32>
    %101 = tpu.reciprocal %100 {approx = true} : vector<1x8x1xf32> -> vector<1x8x1xf32>
    %102 = vector.broadcast %101 : vector<1x8x1xf32> to vector<1x8x8xf32>
    %103 = arith.mulf %98, %102 : vector<1x8x8xf32>
    %104 = arith.truncf %103 : vector<1x8x8xf32> to vector<1x8x8xbf16>
    "tpu.trace_start"() <{level = 10 : i32, message = "bqk,bkd->bqd"}> : () -> ()
    %cst_45 = arith.constant dense<0.000000e+00> : vector<1x8x8xf32>
    %105 = tpu.matmul %104, %90, %cst_45 {dimension_numbers = #tpu.dot_dimension_numbers<[2], [1], [1], [2], [0, 0, 0, 1, 1, 2], [0], [0]>} : vector<1x8x8xbf16>, vector<1x8x8xbf16>, vector<1x8x8xf32> -> vector<1x8x8xf32>
    "tpu.trace_stop"() : () -> ()
    %106 = vector.shape_cast %105 : vector<1x8x8xf32> to vector<8x8xf32>
    %107 = arith.truncf %106 : vector<8x8xf32> to vector<8x8xbf16>
    %c0_46 = arith.constant 0 : index
    %c8 = arith.constant 8 : index
    %108 = vector.load %arg19[%c0_46, %c8] : memref<8x32xbf16, #tpu.memory_space<vmem>>, vector<8x8xbf16>
    tpu.vector_store %arg19[%c0_46, %c8], %107 {strides = array<i32>} : memref<8x32xbf16, #tpu.memory_space<vmem>>, vector<8x8xbf16>,
    %109 = vector.extract_strided_slice %64 {offsets = [0, 0, 16], sizes = [1, 8, 8], strides = [1, 1, 1]} : vector<1x8x32xbf16> to vector<1x8x8xbf16>
    %110 = vector.extract_strided_slice %65 {offsets = [0, 0, 16], sizes = [1, 8, 8], strides = [1, 1, 1]} : vector<1x8x32xbf16> to vector<1x8x8xbf16>
    %111 = vector.extract_strided_slice %66 {offsets = [0, 0, 16], sizes = [1, 8, 8], strides = [1, 1, 1]} : vector<1x8x32xbf16> to vector<1x8x8xbf16>
    "tpu.trace_start"() <{level = 10 : i32, message = "bqd,bkd->bqk"}> : () -> ()
    %cst_47 = arith.constant dense<0.000000e+00> : vector<1x8x8xf32>
    %112 = tpu.matmul %109, %110, %cst_47 {dimension_numbers = #tpu.dot_dimension_numbers<[2], [2], [1], [1], [0, 0, 0, 1, 1, 1], [0], [0]>} : vector<1x8x8xbf16>, vector<1x8x8xbf16>, vector<1x8x8xf32> -> vector<1x8x8xf32>
    "tpu.trace_stop"() : () -> ()
    %cst_48 = arith.constant 0.353553385 : f32
    %113 = vector.broadcast %cst_48 : f32 to vector<1x8x8xf32>
    %114 = arith.mulf %112, %113 : vector<1x8x8xf32>
    %cst_49 = arith.constant dense<0xFF800000> : vector<1x8xf32>
    %115 = vector.multi_reduction <maximumf>, %114, %cst_49 [2] : vector<1x8x8xf32> to vector<1x8xf32>
    %116 = vector.shape_cast %115 : vector<1x8xf32> to vector<1x8x1xf32>
    %117 = vector.broadcast %116 : vector<1x8x1xf32> to vector<1x8x8xf32>
    %118 = arith.subf %114, %117 : vector<1x8x8xf32>
    %119 = math.exp %118 : vector<1x8x8xf32>
    %cst_50 = arith.constant dense<0.000000e+00> : vector<1x8xf32>
    %120 = vector.multi_reduction <add>, %119, %cst_50 [2] : vector<1x8x8xf32> to vector<1x8xf32>
    %121 = vector.shape_cast %120 : vector<1x8xf32> to vector<1x8x1xf32>
    %122 = tpu.reciprocal %121 {approx = true} : vector<1x8x1xf32> -> vector<1x8x1xf32>
    %123 = vector.broadcast %122 : vector<1x8x1xf32> to vector<1x8x8xf32>
    %124 = arith.mulf %119, %123 : vector<1x8x8xf32>
    %125 = arith.truncf %124 : vector<1x8x8xf32> to vector<1x8x8xbf16>
    "tpu.trace_start"() <{level = 10 : i32, message = "bqk,bkd->bqd"}> : () -> ()
    %cst_51 = arith.constant dense<0.000000e+00> : vector<1x8x8xf32>
    %126 = tpu.matmul %125, %111, %cst_51 {dimension_numbers = #tpu.dot_dimension_numbers<[2], [1], [1], [2], [0, 0, 0, 1, 1, 2], [0], [0]>} : vector<1x8x8xbf16>, vector<1x8x8xbf16>, vector<1x8x8xf32> -> vector<1x8x8xf32>
    "tpu.trace_stop"() : () -> ()
    %127 = vector.shape_cast %126 : vector<1x8x8xf32> to vector<8x8xf32>
    %128 = arith.truncf %127 : vector<8x8xf32> to vector<8x8xbf16>
    %c0_52 = arith.constant 0 : index
    %c16 = arith.constant 16 : index
    %129 = vector.load %arg19[%c0_52, %c16] : memref<8x32xbf16, #tpu.memory_space<vmem>>, vector<8x8xbf16>
    tpu.vector_store %arg19[%c0_52, %c16], %128 {strides = array<i32>} : memref<8x32xbf16, #tpu.memory_space<vmem>>, vector<8x8xbf16>,
    %130 = vector.extract_strided_slice %64 {offsets = [0, 0, 24], sizes = [1, 8, 8], strides = [1, 1, 1]} : vector<1x8x32xbf16> to vector<1x8x8xbf16>
    %131 = vector.extract_strided_slice %65 {offsets = [0, 0, 24], sizes = [1, 8, 8], strides = [1, 1, 1]} : vector<1x8x32xbf16> to vector<1x8x8xbf16>
    %132 = vector.extract_strided_slice %66 {offsets = [0, 0, 24], sizes = [1, 8, 8], strides = [1, 1, 1]} : vector<1x8x32xbf16> to vector<1x8x8xbf16>
    "tpu.trace_start"() <{level = 10 : i32, message = "bqd,bkd->bqk"}> : () -> ()
    %cst_53 = arith.constant dense<0.000000e+00> : vector<1x8x8xf32>
    %133 = tpu.matmul %130, %131, %cst_53 {dimension_numbers = #tpu.dot_dimension_numbers<[2], [2], [1], [1], [0, 0, 0, 1, 1, 1], [0], [0]>} : vector<1x8x8xbf16>, vector<1x8x8xbf16>, vector<1x8x8xf32> -> vector<1x8x8xf32>
    "tpu.trace_stop"() : () -> ()
    %cst_54 = arith.constant 0.353553385 : f32
    %134 = vector.broadcast %cst_54 : f32 to vector<1x8x8xf32>
    %135 = arith.mulf %133, %134 : vector<1x8x8xf32>
    %cst_55 = arith.constant dense<0xFF800000> : vector<1x8xf32>
    %136 = vector.multi_reduction <maximumf>, %135, %cst_55 [2] : vector<1x8x8xf32> to vector<1x8xf32>
    %137 = vector.shape_cast %136 : vector<1x8xf32> to vector<1x8x1xf32>
    %138 = vector.broadcast %137 : vector<1x8x1xf32> to vector<1x8x8xf32>
    %139 = arith.subf %135, %138 : vector<1x8x8xf32>
    %140 = math.exp %139 : vector<1x8x8xf32>
    %cst_56 = arith.constant dense<0.000000e+00> : vector<1x8xf32>
    %141 = vector.multi_reduction <add>, %140, %cst_56 [2] : vector<1x8x8xf32> to vector<1x8xf32>
    %142 = vector.shape_cast %141 : vector<1x8xf32> to vector<1x8x1xf32>
    %143 = tpu.reciprocal %142 {approx = true} : vector<1x8x1xf32> -> vector<1x8x1xf32>
    %144 = vector.broadcast %143 : vector<1x8x1xf32> to vector<1x8x8xf32>
    %145 = arith.mulf %140, %144 : vector<1x8x8xf32>
    %146 = arith.truncf %145 : vector<1x8x8xf32> to vector<1x8x8xbf16>
    "tpu.trace_start"() <{level = 10 : i32, message = "bqk,bkd->bqd"}> : () -> ()
    %cst_57 = arith.constant dense<0.000000e+00> : vector<1x8x8xf32>
    %147 = tpu.matmul %146, %132, %cst_57 {dimension_numbers = #tpu.dot_dimension_numbers<[2], [1], [1], [2], [0, 0, 0, 1, 1, 2], [0], [0]>} : vector<1x8x8xbf16>, vector<1x8x8xbf16>, vector<1x8x8xf32> -> vector<1x8x8xf32>
    "tpu.trace_stop"() : () -> ()
    %148 = vector.shape_cast %147 : vector<1x8x8xf32> to vector<8x8xf32>
    %149 = arith.truncf %148 : vector<8x8xf32> to vector<8x8xbf16>
    %c0_58 = arith.constant 0 : index
    %c24 = arith.constant 24 : index
    %150 = vector.load %arg19[%c0_58, %c24] : memref<8x32xbf16, #tpu.memory_space<vmem>>, vector<8x8xbf16>
    tpu.vector_store %arg19[%c0_58, %c24], %149 {strides = array<i32>} : memref<8x32xbf16, #tpu.memory_space<vmem>>, vector<8x8xbf16>,
    %c0_59 = arith.constant 0 : index
    %c0_60 = arith.constant 0 : index
    %151 = vector.load %arg19[%c0_59, %c0_60] : memref<8x32xbf16, #tpu.memory_space<vmem>>, vector<8x32xbf16>
    %c0_61 = arith.constant 0 : index
    %c0_62 = arith.constant 0 : index
    %152 = vector.load %arg10[%c0_61, %c0_62] : memref<32x32xbf16, #tpu.memory_space<vmem>>, vector<32x32xbf16>
    %cst_63 = arith.constant dense<0.000000e+00> : vector<8x32xf32>
    %153 = tpu.matmul %151, %152, %cst_63 {dimension_numbers = #tpu.dot_dimension_numbers<[1], [0], [0], [1], [0, 0, 1, 1], [], []>} : vector<8x32xbf16>, vector<32x32xbf16>, vector<8x32xf32> -> vector<8x32xf32>
    %154 = vector.shape_cast %15 : vector<32xf32> to vector<1x32xf32>
    %155 = vector.broadcast %154 : vector<1x32xf32> to vector<8x32xf32>
    %156 = arith.addf %153, %155 : vector<8x32xf32>
    %157 = arith.addf %20, %156 : vector<8x32xf32>
    %cst_64 = arith.constant dense<0.000000e+00> : vector<8xf32>
    %158 = vector.multi_reduction <add>, %157, %cst_64 [1] : vector<8x32xf32> to vector<8xf32>
    %159 = vector.shape_cast %158 : vector<8xf32> to vector<8x1xf32>
    %cst_65 = arith.constant 3.200000e+01 : f32
    %160 = vector.broadcast %cst_65 : f32 to vector<8x1xf32>
    %161 = arith.divf %159, %160 : vector<8x1xf32>
    %162 = vector.broadcast %161 : vector<8x1xf32> to vector<8x32xf32>
    %163 = arith.subf %157, %162 : vector<8x32xf32>
    %164 = arith.mulf %163, %163 : vector<8x32xf32>
    %cst_66 = arith.constant dense<0.000000e+00> : vector<8xf32>
    %165 = vector.multi_reduction <add>, %164, %cst_66 [1] : vector<8x32xf32> to vector<8xf32>
    %166 = vector.shape_cast %165 : vector<8xf32> to vector<8x1xf32>
    %cst_67 = arith.constant 3.200000e+01 : f32
    %167 = vector.broadcast %cst_67 : f32 to vector<8x1xf32>
    %168 = arith.divf %166, %167 : vector<8x1xf32>
    %169 = vector.broadcast %161 : vector<8x1xf32> to vector<8x32xf32>
    %170 = arith.subf %157, %169 : vector<8x32xf32>
    %cst_68 = arith.constant 9.99999974E-6 : f32
    %171 = vector.broadcast %cst_68 : f32 to vector<8x1xf32>
    %172 = arith.addf %168, %171 : vector<8x1xf32>
    %173 = math.rsqrt %172 : vector<8x1xf32>
    %174 = vector.broadcast %173 : vector<8x1xf32> to vector<8x32xf32>
    %175 = arith.mulf %170, %174 : vector<8x32xf32>
    %176 = vector.shape_cast %5 : vector<32xf32> to vector<1x32xf32>
    %177 = vector.broadcast %176 : vector<1x32xf32> to vector<8x32xf32>
    %178 = arith.mulf %175, %177 : vector<8x32xf32>
    %179 = vector.shape_cast %7 : vector<32xf32> to vector<1x32xf32>
    %180 = vector.broadcast %179 : vector<1x32xf32> to vector<8x32xf32>
    %181 = arith.addf %178, %180 : vector<8x32xf32>
    %182 = arith.truncf %181 : vector<8x32xf32> to vector<8x32xbf16>
    %c0_69 = arith.constant 0 : index
    %c0_70 = arith.constant 0 : index
    %183 = vector.load %arg14[%c0_69, %c0_70] : memref<32x128xbf16, #tpu.memory_space<vmem>>, vector<32x128xbf16>
    %cst_71 = arith.constant dense<0.000000e+00> : vector<8x128xf32>
    %184 = tpu.matmul %182, %183, %cst_71 {dimension_numbers = #tpu.dot_dimension_numbers<[1], [0], [0], [1], [0, 0, 1, 1], [], []>} : vector<8x32xbf16>, vector<32x128xbf16>, vector<8x128xf32> -> vector<8x128xf32>
    %185 = vector.shape_cast %17 : vector<128xf32> to vector<1x128xf32>
    %186 = vector.broadcast %185 : vector<1x128xf32> to vector<8x128xf32>
    %187 = arith.addf %184, %186 : vector<8x128xf32>
    %cst_72 = arith.constant 0.000000e+00 : f32
    %188 = vector.broadcast %cst_72 : f32 to vector<8x128xf32>
    %189 = arith.maximumf %187, %188 : vector<8x128xf32>
    %190 = arith.truncf %189 : vector<8x128xf32> to vector<8x128xbf16>
    %c0_73 = arith.constant 0 : index
    %c0_74 = arith.constant 0 : index
    %191 = vector.load %arg16[%c0_73, %c0_74] : memref<128x32xbf16, #tpu.memory_space<vmem>>, vector<128x32xbf16>
    %cst_75 = arith.constant dense<0.000000e+00> : vector<8x32xf32>
    %192 = tpu.matmul %190, %191, %cst_75 {dimension_numbers = #tpu.dot_dimension_numbers<[1], [0], [0], [1], [0, 0, 1, 1], [], []>} : vector<8x128xbf16>, vector<128x32xbf16>, vector<8x32xf32> -> vector<8x32xf32>
    %193 = vector.shape_cast %19 : vector<32xf32> to vector<1x32xf32>
    %194 = vector.broadcast %193 : vector<1x32xf32> to vector<8x32xf32>
    %195 = arith.addf %192, %194 : vector<8x32xf32>
    %196 = arith.addf %157, %195 : vector<8x32xf32>
    %c0_76 = arith.constant 0 : index
    %c0_77 = arith.constant 0 : index
    %197 = vector.load %arg18[%c0_76, %c0_77] : memref<8x32xf32, #tpu.memory_space<vmem>>, vector<8x32xf32>
    tpu.vector_store %arg18[%c0_76, %c0_77], %196 {strides = array<i32>} : memref<8x32xf32, #tpu.memory_space<vmem>>, vector<8x32xf32>,
    return
  }
  func.func @transform_0(%arg0: i32) -> (i32, i32) {
    %c0_i32 = arith.constant 0 : i32
    %c0_i32_0 = arith.constant 0 : i32
    return %arg0, %c0_i32 : i32, i32
  }
  func.func @transform_1(%arg0: i32) -> (i32, i32) {
    %c0_i32 = arith.constant 0 : i32
    %c0_i32_0 = arith.constant 0 : i32
    %c0_i32_1 = arith.constant 0 : i32
    return %c0_i32, %c0_i32_0 : i32, i32
  }
  func.func @transform_2(%arg0: i32) -> (i32, i32) {
    %c0_i32 = arith.constant 0 : i32
    %c0_i32_0 = arith.constant 0 : i32
    %c0_i32_1 = arith.constant 0 : i32
    return %c0_i32, %c0_i32_0 : i32, i32
  }
  func.func @transform_3(%arg0: i32) -> (i32, i32) {
    %c0_i32 = arith.constant 0 : i32
    %c0_i32_0 = arith.constant 0 : i32
    %c0_i32_1 = arith.constant 0 : i32
    return %c0_i32, %c0_i32_0 : i32, i32
  }
  func.func @transform_4(%arg0: i32) -> (i32, i32) {
    %c0_i32 = arith.constant 0 : i32
    %c0_i32_0 = arith.constant 0 : i32
    %c0_i32_1 = arith.constant 0 : i32
    return %c0_i32, %c0_i32_0 : i32, i32
  }
  func.func @transform_5(%arg0: i32) -> (i32, i32) {
    %c0_i32 = arith.constant 0 : i32
    %c0_i32_0 = arith.constant 0 : i32
    %c0_i32_1 = arith.constant 0 : i32
    return %c0_i32, %c0_i32_0 : i32, i32
  }
  func.func @transform_6(%arg0: i32) -> (i32, i32) {
    %c0_i32 = arith.constant 0 : i32
    %c0_i32_0 = arith.constant 0 : i32
    %c0_i32_1 = arith.constant 0 : i32
    return %c0_i32, %c0_i32_0 : i32, i32
  }
  func.func @transform_7(%arg0: i32) -> (i32, i32) {
    %c0_i32 = arith.constant 0 : i32
    %c0_i32_0 = arith.constant 0 : i32
    %c0_i32_1 = arith.constant 0 : i32
    return %c0_i32, %c0_i32_0 : i32, i32
  }
  func.func @transform_8(%arg0: i32) -> (i32, i32) {
    %c0_i32 = arith.constant 0 : i32
    %c0_i32_0 = arith.constant 0 : i32
    %c0_i32_1 = arith.constant 0 : i32
    return %c0_i32, %c0_i32_0 : i32, i32
  }
  func.func @transform_9(%arg0: i32) -> (i32, i32) {
    %c0_i32 = arith.constant 0 : i32
    %c0_i32_0 = arith.constant 0 : i32
    %c0_i32_1 = arith.constant 0 : i32
    return %c0_i32, %c0_i32_0 : i32, i32
  }
  func.func @transform_10(%arg0: i32) -> (i32, i32) {
    %c0_i32 = arith.constant 0 : i32
    %c0_i32_0 = arith.constant 0 : i32
    %c0_i32_1 = arith.constant 0 : i32
    return %c0_i32, %c0_i32_0 : i32, i32
  }
  func.func @transform_11(%arg0: i32) -> (i32, i32) {
    %c0_i32 = arith.constant 0 : i32
    %c0_i32_0 = arith.constant 0 : i32
    %c0_i32_1 = arith.constant 0 : i32
    return %c0_i32, %c0_i32_0 : i32, i32
  }
  func.func @transform_12(%arg0: i32) -> (i32, i32) {
    %c0_i32 = arith.constant 0 : i32
    %c0_i32_0 = arith.constant 0 : i32
    %c0_i32_1 = arith.constant 0 : i32
    return %c0_i32, %c0_i32_0 : i32, i32
  }
  func.func @transform_13(%arg0: i32) -> (i32, i32) {
    %c0_i32 = arith.constant 0 : i32
    %c0_i32_0 = arith.constant 0 : i32
    %c0_i32_1 = arith.constant 0 : i32
    return %c0_i32, %c0_i32_0 : i32, i32
  }
  func.func @transform_14(%arg0: i32) -> (i32, i32) {
    %c0_i32 = arith.constant 0 : i32
    %c0_i32_0 = arith.constant 0 : i32
    %c0_i32_1 = arith.constant 0 : i32
    return %c0_i32, %c0_i32_0 : i32, i32
  }
  func.func @transform_15(%arg0: i32) -> (i32, i32) {
    %c0_i32 = arith.constant 0 : i32
    %c0_i32_0 = arith.constant 0 : i32
    %c0_i32_1 = arith.constant 0 : i32
    return %c0_i32, %c0_i32_0 : i32, i32
  }
  func.func @transform_16(%arg0: i32) -> (i32, i32) {
    %c0_i32 = arith.constant 0 : i32
    %c0_i32_0 = arith.constant 0 : i32
    %c0_i32_1 = arith.constant 0 : i32
    return %c0_i32, %c0_i32_0 : i32, i32
  }
  func.func @transform_17(%arg0: i32) -> (i32, i32) {
    %c0_i32 = arith.constant 0 : i32
    %c0_i32_0 = arith.constant 0 : i32
    return %arg0, %c0_i32 : i32, i32
  }
}

</mosaic_0001>

<llo_original>
// kernel: tpu_custom_call.1
$region0: #{tpu_custom_call.1}
  #allocation0 [shape = 'u32[]', space=smem, size = 0x4, offset = 0x4, fixed_abs, tag = 'smem constant byte address 0x4 - core index']
  #allocation1 [shape = 'u32[144,128]{1,0:T(1,128)}', space=vmem, size = 0x12000, scoped, tag = 'internal scratch']
  #allocation2 [shape = 'bf16[8,32]{1,0:T(8,128)(2,1)}', space=vmem, size = 0x800, scoped, tag = 'scratch operand']
  %s0 = inlined_call_operand.vmem [shape: f32[16,32], index: 0, kind: input, shape index: {}]
  %s1 = inlined_call_operand.vmem [shape: f32[1,32], index: 1, kind: input, shape index: {}]
  %s2 = inlined_call_operand.vmem [shape: f32[1,32], index: 2, kind: input, shape index: {}]
  %s3 = inlined_call_operand.vmem [shape: bf16[32,32], index: 3, kind: input, shape index: {}]
  %s4 = inlined_call_operand.hbm [shape: f32[1,32], index: 4, kind: input, shape index: {}]
  %s5 = inlined_call_operand.vmem [shape: bf16[32,32], index: 5, kind: input, shape index: {}]
  %s6 = inlined_call_operand.hbm [shape: f32[1,32], index: 6, kind: input, shape index: {}]
  %s7 = inlined_call_operand.vmem [shape: bf16[32,32], index: 7, kind: input, shape index: {}]
  %s8 = inlined_call_operand.hbm [shape: f32[1,32], index: 8, kind: input, shape index: {}]
  %s9 = inlined_call_operand.vmem [shape: bf16[32,32], index: 9, kind: input, shape index: {}]
  %s10 = inlined_call_operand.vmem [shape: f32[1,32], index: 10, kind: input, shape index: {}]
  %s11 = inlined_call_operand.vmem [shape: f32[1,32], index: 11, kind: input, shape index: {}]
  %s12 = inlined_call_operand.vmem [shape: f32[1,32], index: 12, kind: input, shape index: {}]
  %s13 = inlined_call_operand.vmem [shape: bf16[32,128], index: 13, kind: input, shape index: {}]
  %s14 = inlined_call_operand.vmem [shape: f32[1,128], index: 14, kind: input, shape index: {}]
  %s15 = inlined_call_operand.vmem [shape: bf16[128,32], index: 15, kind: input, shape index: {}]
  %s16 = inlined_call_operand.vmem [shape: f32[1,32], index: 16, kind: input, shape index: {}]
  %s17 = inlined_call_operand.hbm [shape: f32[16,32], index: 17, kind: output, shape index: {}]
  %s18 = sld [smem:[#allocation0]]
  $region113: #{tpu_custom_call.1} parent=0
    _
  %s20 = ssub.s32 1, %s18
  %s21 = scalar_select 0, %s20, %s18
  $region1: #{tpu_custom_call.1} parent=0
    #allocation3 [shape = 'u8[512]{0}', space=vmem, size = 0x400, scoped, tag = 'input window, operand 4, single buffered']
    #allocation4 [shape = 's32[2]{0}', space=sflag, size = 0x8, scoped, tag = 'scoped memory for tpu_custom_call.1']
    #allocation5 [shape = 's32[2]{0}', space=sflag, size = 0x8, scoped, tag = 'scoped memory for tpu_custom_call.1']
    #allocation6 [shape = 'u8[512]{0}', space=vmem, size = 0x400, scoped, tag = 'input window, operand 6, single buffered']
    #allocation7 [shape = 's32[1]{0}', space=sflag, size = 0x4, scoped, tag = 'scoped memory for tpu_custom_call.1']
    #allocation8 [shape = 'u8[512]{0}', space=vmem, size = 0x400, scoped, tag = 'input window, operand 8, single buffered']
    #allocation9 [shape = 'u8[8192]{0}', space=vmem, size = 0x2000, scoped, tag = 'output window, operand 0']
    %22 = vsyncpa [#allocation4], 0
    %23 = vsyncpa [#allocation7], 0
    %24 = vsyncpa [#allocation5], 0
    %s25 = scalar_lea.sflag [#allocation5], 1
    %26 = vsyncpa %s25, 0
    loop: start=0, step=1, limit=4
    $region2: #{tpu_custom_call.1} parent=1 // loop_pre_header
      _
    $region3: #{tpu_custom_call.1} parent=1 // loop_header
      %s28 = sphi 0, %s32
      %p29 = scmp.ge.s32.totalorder %s28, 4
      %s38 = sphi 0, %s40
      %s41 = sphi 0, %s38
      %s42 = sphi 0, %s41
      %s58 = sphi 0, %s42
      %s62 = sphi 0, %s62
      %s64 = sphi 0, %s62
      %s65 = sphi 0, %s64
      %s79 = sphi 0, %s65
      %s83 = sphi 0, %s83
      %s85 = sphi 0, %s83
      %s86 = sphi 0, %s85
      %s100 = sphi 0, %s86
      %s104 = sphi 0, %s104
      %s106 = sphi 0, %s104
      %s107 = sphi 0, %s106
      %s121 = sphi 0, %s107
      %s125 = sphi 0, %s125
      %s127 = sphi 0, %s125
      %s128 = sphi 0, %s127
      %s142 = sphi 0, %s128
      %s146 = sphi 0, %s146
      %s148 = sphi 0, %s146
      %s149 = sphi 0, %s148
      %s163 = sphi 0, %s149
      %s167 = sphi 0, %s167
      %s169 = sphi 0, %s167
      %s170 = sphi 0, %s169
      %s184 = sphi 0, %s170
      %s188 = sphi 0, %s188
      %s190 = sphi 0, %s188
      %s191 = sphi 0, %s190
      %s205 = sphi 0, %s191
      %s209 = sphi 0, %s209
      %s211 = sphi 0, %s209
      %s212 = sphi 0, %s211
      %s226 = sphi 0, %s212
      %s230 = sphi 0, %s230
      %s232 = sphi 0, %s230
      %s233 = sphi 0, %s232
      %s247 = sphi 0, %s233
      %s251 = sphi 0, %s251
      %s253 = sphi 0, %s251
      %s254 = sphi 0, %s253
      %s268 = sphi 0, %s254
      %s272 = sphi 0, %s272
      %s274 = sphi 0, %s272
      %s275 = sphi 0, %s274
      %s289 = sphi 0, %s275
      %s293 = sphi 0, %s293
      %s295 = sphi 0, %s293
      %s296 = sphi 0, %s295
      %s310 = sphi 0, %s296
      %s314 = sphi 0, %s314
      %s316 = sphi 0, %s314
      %s317 = sphi 0, %s316
      %s331 = sphi 0, %s317
      %s335 = sphi 0, %s335
      %s337 = sphi 0, %s335
      %s338 = sphi 0, %s337
      %s352 = sphi 0, %s338
      %s356 = sphi 0, %s356
      %s358 = sphi 0, %s356
      %s359 = sphi 0, %s358
      %s373 = sphi 0, %s359
      %s377 = sphi 0, %s377
      %s379 = sphi 0, %s377
      %s380 = sphi 0, %s379
      %s394 = sphi 0, %s380
      %s400 = sphi 0, %s402
      %s403 = sphi 0, %s400
      %s404 = sphi 0, %s403
      %s420 = sphi 0, %s404
    $region4: #{tpu_custom_call.1} parent=1 // loop_header_branch
      %31 = sbr.rel (%p29) target = $region8
    $region5: #{tpu_custom_call.1} parent=1 // loop_body
      %s33 = ssub.s32 %s28, 1
      %s34 = ssub.s32 %s28, 2
      %s35 = sadd.s32 %s28, 1
      %s36 = ssub.s32 %s28, %s35
      %p37 = scmp.eq.s32.totalorder %s36, 0
      %s39 = sadd.s32 %s38, 1
      %s40 = scalar_select %p37, %s38, %s39
      %p43 = pneg %p37
      %p44 = scmp.eq.s32.totalorder %s28, 1
      %p45 = por %p43, %p44
      %p46 = scmp.ne.s32.totalorder %s38, %s41
      %p47 = scmp.eq.s32.totalorder %s28, 0
      %p48 = por %p46, %p47
      %p49 = scmp.ne.s32.totalorder %s38, %s41
      %p50 = scmp.eq.s32.totalorder %s33, 1
      %p51 = por %p49, %p50
      %p52 = scmp.ne.s32.totalorder %s41, %s42
      %p53 = scmp.eq.s32.totalorder %s33, 0
      %p54 = por %p52, %p53
      %p55 = scmp.ne.s32.totalorder %s41, %s42
      %p56 = scmp.eq.s32.totalorder %s34, 1
      %p57 = por %p55, %p56
      %p59 = scmp.ne.s32.totalorder %s42, %s58
      %p60 = scmp.eq.s32.totalorder %s34, 0
      %p61 = por %p59, %p60
      %s63 = sadd.s32 %s62, 1
      %p66 = scmp.eq.s32.totalorder %s28, 1
      %p67 = scmp.ne.s32.totalorder %s62, %s64
      %p68 = scmp.eq.s32.totalorder %s28, 0
      %p69 = por %p67, %p68
      %p70 = scmp.ne.s32.totalorder %s62, %s64
      %p71 = scmp.eq.s32.totalorder %s33, 1
      %p72 = por %p70, %p71
      %p73 = scmp.ne.s32.totalorder %s64, %s65
      %p74 = scmp.eq.s32.totalorder %s33, 0
      %p75 = por %p73, %p74
      %p76 = scmp.ne.s32.totalorder %s64, %s65
      %p77 = scmp.eq.s32.totalorder %s34, 1
      %p78 = por %p76, %p77
      %p80 = scmp.ne.s32.totalorder %s65, %s79
      %p81 = scmp.eq.s32.totalorder %s34, 0
      %p82 = por %p80, %p81
      %s84 = sadd.s32 %s83, 1
      %p87 = scmp.eq.s32.totalorder %s28, 1
      %p88 = scmp.ne.s32.totalorder %s83, %s85
      %p89 = scmp.eq.s32.totalorder %s28, 0
      %p90 = por %p88, %p89
      %p91 = scmp.ne.s32.totalorder %s83, %s85
      %p92 = scmp.eq.s32.totalorder %s33, 1
      %p93 = por %p91, %p92
      %p94 = scmp.ne.s32.totalorder %s85, %s86
      %p95 = scmp.eq.s32.totalorder %s33, 0
      %p96 = por %p94, %p95
      %p97 = scmp.ne.s32.totalorder %s85, %s86
      %p98 = scmp.eq.s32.totalorder %s34, 1
      %p99 = por %p97, %p98
      %p101 = scmp.ne.s32.totalorder %s86, %s100
      %p102 = scmp.eq.s32.totalorder %s34, 0
      %p103 = por %p101, %p102
      %s105 = sadd.s32 %s104, 1
      %p108 = scmp.eq.s32.totalorder %s28, 1
      %p109 = scmp.ne.s32.totalorder %s104, %s106
      %p110 = scmp.eq.s32.totalorder %s28, 0
      %p111 = por %p109, %p110
      %p112 = scmp.ne.s32.totalorder %s104, %s106
      %p113 = scmp.eq.s32.totalorder %s33, 1
      %p114 = por %p112, %p113
      %p115 = scmp.ne.s32.totalorder %s106, %s107
      %p116 = scmp.eq.s32.totalorder %s33, 0
      %p117 = por %p115, %p116
      %p118 = scmp.ne.s32.totalorder %s106, %s107
      %p119 = scmp.eq.s32.totalorder %s34, 1
      %p120 = por %p118, %p119
      %p122 = scmp.ne.s32.totalorder %s107, %s121
      %p123 = scmp.eq.s32.totalorder %s34, 0
      %p124 = por %p122, %p123
      %s126 = sadd.s32 %s125, 1
      %p129 = scmp.eq.s32.totalorder %s28, 1
      %p130 = scmp.ne.s32.totalorder %s125, %s127
      %p131 = scmp.eq.s32.totalorder %s28, 0
      %p132 = por %p130, %p131
      %p133 = scmp.ne.s32.totalorder %s125, %s127
      %p134 = scmp.eq.s32.totalorder %s33, 1
      %p135 = por %p133, %p134
      %p136 = scmp.ne.s32.totalorder %s127, %s128
      %p137 = scmp.eq.s32.totalorder %s33, 0
      %p138 = por %p136, %p137
      %p139 = scmp.ne.s32.totalorder %s127, %s128
      %p140 = scmp.eq.s32.totalorder %s34, 1
      %p141 = por %p139, %p140
      %p143 = scmp.ne.s32.totalorder %s128, %s142
      %p144 = scmp.eq.s32.totalorder %s34, 0
      %p145 = por %p143, %p144
      %s147 = sadd.s32 %s146, 1
      %p150 = scmp.eq.s32.totalorder %s28, 1
      %p151 = scmp.ne.s32.totalorder %s146, %s148
      %p152 = scmp.eq.s32.totalorder %s28, 0
      %p153 = por %p151, %p152
      %p154 = scmp.ne.s32.totalorder %s146, %s148
      %p155 = scmp.eq.s32.totalorder %s33, 1
      %p156 = por %p154, %p155
      %p157 = scmp.ne.s32.totalorder %s148, %s149
      %p158 = scmp.eq.s32.totalorder %s33, 0
      %p159 = por %p157, %p158
      %p160 = scmp.ne.s32.totalorder %s148, %s149
      %p161 = scmp.eq.s32.totalorder %s34, 1
      %p162 = por %p160, %p161
      %p164 = scmp.ne.s32.totalorder %s149, %s163
      %p165 = scmp.eq.s32.totalorder %s34, 0
      %p166 = por %p164, %p165
      %s168 = sadd.s32 %s167, 1
      %p171 = scmp.eq.s32.totalorder %s28, 1
      %p172 = scmp.ne.s32.totalorder %s167, %s169
      %p173 = scmp.eq.s32.totalorder %s28, 0
      %p174 = por %p172, %p173
      %p175 = scmp.ne.s32.totalorder %s167, %s169
      %p176 = scmp.eq.s32.totalorder %s33, 1
      %p177 = por %p175, %p176
      %p178 = scmp.ne.s32.totalorder %s169, %s170
      %p179 = scmp.eq.s32.totalorder %s33, 0
      %p180 = por %p178, %p179
      %p181 = scmp.ne.s32.totalorder %s169, %s170
      %p182 = scmp.eq.s32.totalorder %s34, 1
      %p183 = por %p181, %p182
      %p185 = scmp.ne.s32.totalorder %s170, %s184
      %p186 = scmp.eq.s32.totalorder %s34, 0
      %p187 = por %p185, %p186
      %s189 = sadd.s32 %s188, 1
      %p192 = scmp.eq.s32.totalorder %s28, 1
      %p193 = scmp.ne.s32.totalorder %s188, %s190
      %p194 = scmp.eq.s32.totalorder %s28, 0
      %p195 = por %p193, %p194
      %p196 = scmp.ne.s32.totalorder %s188, %s190
      %p197 = scmp.eq.s32.totalorder %s33, 1
      %p198 = por %p196, %p197
      %p199 = scmp.ne.s32.totalorder %s190, %s191
      %p200 = scmp.eq.s32.totalorder %s33, 0
      %p201 = por %p199, %p200
      %p202 = scmp.ne.s32.totalorder %s190, %s191
      %p203 = scmp.eq.s32.totalorder %s34, 1
      %p204 = por %p202, %p203
      %p206 = scmp.ne.s32.totalorder %s191, %s205
      %p207 = scmp.eq.s32.totalorder %s34, 0
      %p208 = por %p206, %p207
      %s210 = sadd.s32 %s209, 1
      %p213 = scmp.eq.s32.totalorder %s28, 1
      %p214 = scmp.ne.s32.totalorder %s209, %s211
      %p215 = scmp.eq.s32.totalorder %s28, 0
      %p216 = por %p214, %p215
      %p217 = scmp.ne.s32.totalorder %s209, %s211
      %p218 = scmp.eq.s32.totalorder %s33, 1
      %p219 = por %p217, %p218
      %p220 = scmp.ne.s32.totalorder %s211, %s212
      %p221 = scmp.eq.s32.totalorder %s33, 0
      %p222 = por %p220, %p221
      %p223 = scmp.ne.s32.totalorder %s211, %s212
      %p224 = scmp.eq.s32.totalorder %s34, 1
      %p225 = por %p223, %p224
      %p227 = scmp.ne.s32.totalorder %s212, %s226
      %p228 = scmp.eq.s32.totalorder %s34, 0
      %p229 = por %p227, %p228
      %s231 = sadd.s32 %s230, 1
      %p234 = scmp.eq.s32.totalorder %s28, 1
      %p235 = scmp.ne.s32.totalorder %s230, %s232
      %p236 = scmp.eq.s32.totalorder %s28, 0
      %p237 = por %p235, %p236
      %p238 = scmp.ne.s32.totalorder %s230, %s232
      %p239 = scmp.eq.s32.totalorder %s33, 1
      %p240 = por %p238, %p239
      %p241 = scmp.ne.s32.totalorder %s232, %s233
      %p242 = scmp.eq.s32.totalorder %s33, 0
      %p243 = por %p241, %p242
      %p244 = scmp.ne.s32.totalorder %s232, %s233
      %p245 = scmp.eq.s32.totalorder %s34, 1
      %p246 = por %p244, %p245
      %p248 = scmp.ne.s32.totalorder %s233, %s247
      %p249 = scmp.eq.s32.totalorder %s34, 0
      %p250 = por %p248, %p249
      %s252 = sadd.s32 %s251, 1
      %p255 = scmp.eq.s32.totalorder %s28, 1
      %p256 = scmp.ne.s32.totalorder %s251, %s253
      %p257 = scmp.eq.s32.totalorder %s28, 0
      %p258 = por %p256, %p257
      %p259 = scmp.ne.s32.totalorder %s251, %s253
      %p260 = scmp.eq.s32.totalorder %s33, 1
      %p261 = por %p259, %p260
      %p262 = scmp.ne.s32.totalorder %s253, %s254
      %p263 = scmp.eq.s32.totalorder %s33, 0
      %p264 = por %p262, %p263
      %p265 = scmp.ne.s32.totalorder %s253, %s254
      %p266 = scmp.eq.s32.totalorder %s34, 1
      %p267 = por %p265, %p266
      %p269 = scmp.ne.s32.totalorder %s254, %s268
      %p270 = scmp.eq.s32.totalorder %s34, 0
      %p271 = por %p269, %p270
      %s273 = sadd.s32 %s272, 1
      %p276 = scmp.eq.s32.totalorder %s28, 1
      %p277 = scmp.ne.s32.totalorder %s272, %s274
      %p278 = scmp.eq.s32.totalorder %s28, 0
      %p279 = por %p277, %p278
      %p280 = scmp.ne.s32.totalorder %s272, %s274
      %p281 = scmp.eq.s32.totalorder %s33, 1
      %p282 = por %p280, %p281
      %p283 = scmp.ne.s32.totalorder %s274, %s275
      %p284 = scmp.eq.s32.totalorder %s33, 0
      %p285 = por %p283, %p284
      %p286 = scmp.ne.s32.totalorder %s274, %s275
      %p287 = scmp.eq.s32.totalorder %s34, 1
      %p288 = por %p286, %p287
      %p290 = scmp.ne.s32.totalorder %s275, %s289
      %p291 = scmp.eq.s32.totalorder %s34, 0
      %p292 = por %p290, %p291
      %s294 = sadd.s32 %s293, 1
      %p297 = scmp.eq.s32.totalorder %s28, 1
      %p298 = scmp.ne.s32.totalorder %s293, %s295
      %p299 = scmp.eq.s32.totalorder %s28, 0
      %p300 = por %p298, %p299
      %p301 = scmp.ne.s32.totalorder %s293, %s295
      %p302 = scmp.eq.s32.totalorder %s33, 1
      %p303 = por %p301, %p302
      %p304 = scmp.ne.s32.totalorder %s295, %s296
      %p305 = scmp.eq.s32.totalorder %s33, 0
      %p306 = por %p304, %p305
      %p307 = scmp.ne.s32.totalorder %s295, %s296
      %p308 = scmp.eq.s32.totalorder %s34, 1
      %p309 = por %p307, %p308
      %p311 = scmp.ne.s32.totalorder %s296, %s310
      %p312 = scmp.eq.s32.totalorder %s34, 0
      %p313 = por %p311, %p312
      %s315 = sadd.s32 %s314, 1
      %p318 = scmp.eq.s32.totalorder %s28, 1
      %p319 = scmp.ne.s32.totalorder %s314, %s316
      %p320 = scmp.eq.s32.totalorder %s28, 0
      %p321 = por %p319, %p320
      %p322 = scmp.ne.s32.totalorder %s314, %s316
      %p323 = scmp.eq.s32.totalorder %s33, 1
      %p324 = por %p322, %p323
      %p325 = scmp.ne.s32.totalorder %s316, %s317
      %p326 = scmp.eq.s32.totalorder %s33, 0
      %p327 = por %p325, %p326
      %p328 = scmp.ne.s32.totalorder %s316, %s317
      %p329 = scmp.eq.s32.totalorder %s34, 1
      %p330 = por %p328, %p329
      %p332 = scmp.ne.s32.totalorder %s317, %s331
      %p333 = scmp.eq.s32.totalorder %s34, 0
      %p334 = por %p332, %p333
      %s336 = sadd.s32 %s335, 1
      %p339 = scmp.eq.s32.totalorder %s28, 1
      %p340 = scmp.ne.s32.totalorder %s335, %s337
      %p341 = scmp.eq.s32.totalorder %s28, 0
      %p342 = por %p340, %p341
      %p343 = scmp.ne.s32.totalorder %s335, %s337
      %p344 = scmp.eq.s32.totalorder %s33, 1
      %p345 = por %p343, %p344
      %p346 = scmp.ne.s32.totalorder %s337, %s338
      %p347 = scmp.eq.s32.totalorder %s33, 0
      %p348 = por %p346, %p347
      %p349 = scmp.ne.s32.totalorder %s337, %s338
      %p350 = scmp.eq.s32.totalorder %s34, 1
      %p351 = por %p349, %p350
      %p353 = scmp.ne.s32.totalorder %s338, %s352
      %p354 = scmp.eq.s32.totalorder %s34, 0
      %p355 = por %p353, %p354
      %s357 = sadd.s32 %s356, 1
      %p360 = scmp.eq.s32.totalorder %s28, 1
      %p361 = scmp.ne.s32.totalorder %s356, %s358
      %p362 = scmp.eq.s32.totalorder %s28, 0
      %p363 = por %p361, %p362
      %p364 = scmp.ne.s32.totalorder %s356, %s358
      %p365 = scmp.eq.s32.totalorder %s33, 1
      %p366 = por %p364, %p365
      %p367 = scmp.ne.s32.totalorder %s358, %s359
      %p368 = scmp.eq.s32.totalorder %s33, 0
      %p369 = por %p367, %p368
      %p370 = scmp.ne.s32.totalorder %s358, %s359
      %p371 = scmp.eq.s32.totalorder %s34, 1
      %p372 = por %p370, %p371
      %p374 = scmp.ne.s32.totalorder %s359, %s373
      %p375 = scmp.eq.s32.totalorder %s34, 0
      %p376 = por %p374, %p375
      %s378 = sadd.s32 %s377, 1
      %p381 = scmp.eq.s32.totalorder %s28, 1
      %p382 = scmp.ne.s32.totalorder %s377, %s379
      %p383 = scmp.eq.s32.totalorder %s28, 0
      %p384 = por %p382, %p383
      %p385 = scmp.ne.s32.totalorder %s377, %s379
      %p386 = scmp.eq.s32.totalorder %s33, 1
      %p387 = por %p385, %p386
      %p388 = scmp.ne.s32.totalorder %s379, %s380
      %p389 = scmp.eq.s32.totalorder %s33, 0
      %p390 = por %p388, %p389
      %p391 = scmp.ne.s32.totalorder %s379, %s380
      %p392 = scmp.eq.s32.totalorder %s34, 1
      %p393 = por %p391, %p392
      %p395 = scmp.ne.s32.totalorder %s380, %s394
      %p396 = scmp.eq.s32.totalorder %s34, 0
      %p397 = por %p395, %p396
      %s398 = ssub.s32 %s28, %s35
      %p399 = scmp.eq.s32.totalorder %s398, 0
      %s401 = sadd.s32 %s400, 1
      %s402 = scalar_select %p399, %s400, %s401
      %p405 = pneg %p399
      %p406 = scmp.eq.s32.totalorder %s28, 1
      %p407 = por %p405, %p406
      %p408 = scmp.ne.s32.totalorder %s400, %s403
      %p409 = scmp.eq.s32.totalorder %s28, 0
      %p410 = por %p408, %p409
      %p411 = scmp.ne.s32.totalorder %s400, %s403
      %p412 = scmp.eq.s32.totalorder %s33, 1
      %p413 = por %p411, %p412
      %p414 = scmp.ne.s32.totalorder %s403, %s404
      %p415 = scmp.eq.s32.totalorder %s33, 0
      %p416 = por %p414, %p415
      %p417 = scmp.ne.s32.totalorder %s403, %s404
      %p418 = scmp.eq.s32.totalorder %s34, 1
      %p419 = por %p417, %p418
      %p421 = scmp.ne.s32.totalorder %s404, %s420
      %p422 = scmp.eq.s32.totalorder %s34, 0
      %p423 = por %p421, %p422
      %p424 = scmp.le.s32.totalorder 1, %s28
      %p425 = scmp.lt.s32.totalorder %s28, 3
      %p426 = pnand %p424, %p425
      %p427 = pneg %p426
      // Predicated region
      $region9: #{tpu_custom_call.1} parent=5 // pred_check
        _
      $region10: #{tpu_custom_call.1} parent=5 // pred_check_branch
        %429 = sbr.rel (%p426) target = $region12
      $region11: #{tpu_custom_call.1} parent=5 // pred_region
        %s430 = ssub.s32 %s28, 1
        // Predicated region
        $region13: #{tpu_custom_call.1} parent=11 // pred_check
          %p431 = pneg %p75
        $region14: #{tpu_custom_call.1} parent=11 // pred_check_branch
          %433 = sbr.rel (%p431) target = $region16
        $region15: #{tpu_custom_call.1} parent=11 // pred_region
          _
        $region16: #{tpu_custom_call.1} parent=11 // pred_fallthru
          _
        // Predicated region
        $region17: #{tpu_custom_call.1} parent=11 // pred_check
          %p434 = pneg %p96
        $region18: #{tpu_custom_call.1} parent=11 // pred_check_branch
          %436 = sbr.rel (%p434) target = $region20
        $region19: #{tpu_custom_call.1} parent=11 // pred_region
          _
        $region20: #{tpu_custom_call.1} parent=11 // pred_fallthru
          _
        // Predicated region
        $region21: #{tpu_custom_call.1} parent=11 // pred_check
          %p437 = pneg %p117
        $region22: #{tpu_custom_call.1} parent=11 // pred_check_branch
          %439 = sbr.rel (%p437) target = $region24
        $region23: #{tpu_custom_call.1} parent=11 // pred_region
          _
        $region24: #{tpu_custom_call.1} parent=11 // pred_fallthru
          _
        // Predicated region
        $region25: #{tpu_custom_call.1} parent=11 // pred_check
          %p440 = pneg %p138
        $region26: #{tpu_custom_call.1} parent=11 // pred_check_branch
          %442 = sbr.rel (%p440) target = $region28
        $region27: #{tpu_custom_call.1} parent=11 // pred_region
          %s444 = ssub.s32 16, 16
          %445 = vsyncadd [#allocation4], %s444
          %s447 = sshll.u32 [#allocation3], 4
          %s448 = int_to_ptr.vmem [resolvable:$true] %s447
          %450 = dma.hbm_to_vmem [thread:$0]  %s4, 16, %s448, [#allocation4]
        $region28: #{tpu_custom_call.1} parent=11 // pred_fallthru
          _
        // Predicated region
        $region29: #{tpu_custom_call.1} parent=11 // pred_check
          %p451 = pneg %p159
        $region30: #{tpu_custom_call.1} parent=11 // pred_check_branch
          %453 = sbr.rel (%p451) target = $region32
        $region31: #{tpu_custom_call.1} parent=11 // pred_region
          _
        $region32: #{tpu_custom_call.1} parent=11 // pred_fallthru
          _
        // Predicated region
        $region33: #{tpu_custom_call.1} parent=11 // pred_check
          %p454 = pneg %p180
        $region34: #{tpu_custom_call.1} parent=11 // pred_check_branch
          %456 = sbr.rel (%p454) target = $region36
        $region35: #{tpu_custom_call.1} parent=11 // pred_region
          %s458 = ssub.s32 16, 16
          %459 = vsyncadd [#allocation7], %s458
          %s461 = sshll.u32 [#allocation6], 4
          %s462 = int_to_ptr.vmem [resolvable:$true] %s461
          %464 = dma.hbm_to_vmem [thread:$0]  %s6, 16, %s462, [#allocation7]
        $region36: #{tpu_custom_call.1} parent=11 // pred_fallthru
          _
        // Predicated region
        $region37: #{tpu_custom_call.1} parent=11 // pred_check
          %p465 = pneg %p201
        $region38: #{tpu_custom_call.1} parent=11 // pred_check_branch
          %467 = sbr.rel (%p465) target = $region40
        $region39: #{tpu_custom_call.1} parent=11 // pred_region
          _
        $region40: #{tpu_custom_call.1} parent=11 // pred_fallthru
          _
        // Predicated region
        $region41: #{tpu_custom_call.1} parent=11 // pred_check
          %p468 = pneg %p222
        $region42: #{tpu_custom_call.1} parent=11 // pred_check_branch
          %470 = sbr.rel (%p468) target = $region44
        $region43: #{tpu_custom_call.1} parent=11 // pred_region
          %s472 = ssub.s32 16, 16
          %473 = vsyncadd [#allocation7], %s472
          %s475 = sshll.u32 [#allocation8], 4
          %s476 = int_to_ptr.vmem [resolvable:$true] %s475
          %478 = dma.hbm_to_vmem [thread:$0]  %s8, 16, %s476, [#allocation7]
        $region44: #{tpu_custom_call.1} parent=11 // pred_fallthru
          _
        // Predicated region
        $region45: #{tpu_custom_call.1} parent=11 // pred_check
          %p479 = pneg %p243
        $region46: #{tpu_custom_call.1} parent=11 // pred_check_branch
          %481 = sbr.rel (%p479) target = $region48
        $region47: #{tpu_custom_call.1} parent=11 // pred_region
          _
        $region48: #{tpu_custom_call.1} parent=11 // pred_fallthru
          _
        // Predicated region
        $region49: #{tpu_custom_call.1} parent=11 // pred_check
          %p482 = pneg %p264
        $region50: #{tpu_custom_call.1} parent=11 // pred_check_branch
          %484 = sbr.rel (%p482) target = $region52
        $region51: #{tpu_custom_call.1} parent=11 // pred_region
          _
        $region52: #{tpu_custom_call.1} parent=11 // pred_fallthru
          _
        // Predicated region
        $region53: #{tpu_custom_call.1} parent=11 // pred_check
          %p485 = pneg %p285
        $region54: #{tpu_custom_call.1} parent=11 // pred_check_branch
          %487 = sbr.rel (%p485) target = $region56
        $region55: #{tpu_custom_call.1} parent=11 // pred_region
          _
        $region56: #{tpu_custom_call.1} parent=11 // pred_fallthru
          _
        // Predicated region
        $region57: #{tpu_custom_call.1} parent=11 // pred_check
          %p488 = pneg %p306
        $region58: #{tpu_custom_call.1} parent=11 // pred_check_branch
          %490 = sbr.rel (%p488) target = $region60
        $region59: #{tpu_custom_call.1} parent=11 // pred_region
          _
        $region60: #{tpu_custom_call.1} parent=11 // pred_fallthru
          _
        // Predicated region
        $region61: #{tpu_custom_call.1} parent=11 // pred_check
          %p491 = pneg %p327
        $region62: #{tpu_custom_call.1} parent=11 // pred_check_branch
          %493 = sbr.rel (%p491) target = $region64
        $region63: #{tpu_custom_call.1} parent=11 // pred_region
          _
        $region64: #{tpu_custom_call.1} parent=11 // pred_fallthru
          _
        // Predicated region
        $region65: #{tpu_custom_call.1} parent=11 // pred_check
          %p494 = pneg %p348
        $region66: #{tpu_custom_call.1} parent=11 // pred_check_branch
          %496 = sbr.rel (%p494) target = $region68
        $region67: #{tpu_custom_call.1} parent=11 // pred_region
          _
        $region68: #{tpu_custom_call.1} parent=11 // pred_fallthru
          _
        // Predicated region
        $region69: #{tpu_custom_call.1} parent=11 // pred_check
          %p497 = pneg %p369
        $region70: #{tpu_custom_call.1} parent=11 // pred_check_branch
          %499 = sbr.rel (%p497) target = $region72
        $region71: #{tpu_custom_call.1} parent=11 // pred_region
          _
        $region72: #{tpu_custom_call.1} parent=11 // pred_fallthru
          _
        // Predicated region
        $region73: #{tpu_custom_call.1} parent=11 // pred_check
          %p500 = pneg %p390
        $region74: #{tpu_custom_call.1} parent=11 // pred_check_branch
          %502 = sbr.rel (%p500) target = $region76
        $region75: #{tpu_custom_call.1} parent=11 // pred_region
          _
        $region76: #{tpu_custom_call.1} parent=11 // pred_fallthru
          _
      $region12: #{tpu_custom_call.1} parent=5 // pred_fallthru
        _
      %p503 = scmp.lt.s32.totalorder %s28, 2
      // Predicated region
      $region77: #{tpu_custom_call.1} parent=5 // pred_check
        %p504 = pneg %p503
      $region78: #{tpu_custom_call.1} parent=5 // pred_check_branch
        %506 = sbr.rel (%p504) target = $region80
      $region79: #{tpu_custom_call.1} parent=5 // pred_region
        // Predicated region
        $region81: #{tpu_custom_call.1} parent=79 // pred_check
          %p507 = pneg %p48
        $region82: #{tpu_custom_call.1} parent=79 // pred_check_branch
          %509 = sbr.rel (%p507) target = $region84
        $region83: #{tpu_custom_call.1} parent=79 // pred_region
          %p510 = scmp.lt.s32.totalorder %s28, 1
          %s511 = scalar_select %p510, %s28, 1
          %s512 = smul.addr %s511, 8
          %s513 = scalar_lea.vmem %s0, %s512
        $region84: #{tpu_custom_call.1} parent=79 // pred_fallthru
          _
      $region80: #{tpu_custom_call.1} parent=5 // pred_fallthru
        _
      %p514 = scmp.le.s32.totalorder 1, %s28
      %p515 = scmp.lt.s32.totalorder %s28, 3
      %p516 = pnand %p514, %p515
      %p517 = pneg %p516
      // Predicated region
      $region85: #{tpu_custom_call.1} parent=5 // pred_check
        _
      $region86: #{tpu_custom_call.1} parent=5 // pred_check_branch
        %519 = sbr.rel (%p516) target = $region88
      $region87: #{tpu_custom_call.1} parent=5 // pred_region
        %s520 = ssub.s32 %s28, 1
        // Predicated region
        $region89: #{tpu_custom_call.1} parent=87 // pred_check
          %p521 = pneg %p138
        $region90: #{tpu_custom_call.1} parent=87 // pred_check_branch
          %523 = sbr.rel (%p521) target = $region92
        $region91: #{tpu_custom_call.1} parent=87 // pred_region
          %524 = dma.done [#allocation4], 16
        $region92: #{tpu_custom_call.1} parent=87 // pred_fallthru
          _
        // Predicated region
        $region93: #{tpu_custom_call.1} parent=87 // pred_check
          %p525 = pneg %p180
        $region94: #{tpu_custom_call.1} parent=87 // pred_check_branch
          %527 = sbr.rel (%p525) target = $region96
        $region95: #{tpu_custom_call.1} parent=87 // pred_region
          %528 = dma.done [#allocation7], 16
        $region96: #{tpu_custom_call.1} parent=87 // pred_fallthru
          _
        // Predicated region
        $region97: #{tpu_custom_call.1} parent=87 // pred_check
          %p529 = pneg %p222
        $region98: #{tpu_custom_call.1} parent=87 // pred_check_branch
          %531 = sbr.rel (%p529) target = $region100
        $region99: #{tpu_custom_call.1} parent=87 // pred_region
          %532 = dma.done [#allocation7], 16
        $region100: #{tpu_custom_call.1} parent=87 // pred_fallthru
          _
        %p533 = scmp.lt.s32.totalorder %s33, 1
        %s534 = scalar_select %p533, %s33, 1
        %s535 = smul.addr %s534, 8
        %s536 = scalar_lea.vmem %s0, %s535
        %p537 = pneg %p54
        %p538 = pneg %p51
        %p539 = pneg %p75
        %p540 = pneg %p72
        %p541 = pneg %p96
        %p542 = pneg %p93
        %p543 = pneg %p117
        %p544 = pneg %p114
        %p545 = pneg %p138
        %p546 = pneg %p135
        %p547 = pneg %p159
        %p548 = pneg %p156
        %p549 = pneg %p180
        %p550 = pneg %p177
        %p551 = pneg %p201
        %p552 = pneg %p198
        %p553 = pneg %p222
        %p554 = pneg %p219
        %p555 = pneg %p243
        %p556 = pneg %p240
        %p557 = pneg %p264
        %p558 = pneg %p261
        %p559 = pneg %p285
        %p560 = pneg %p282
        %p561 = pneg %p306
        %p562 = pneg %p303
        %p563 = pneg %p327
        %p564 = pneg %p324
        %p565 = pneg %p348
        %p566 = pneg %p345
        %p567 = pneg %p369
        %p568 = pneg %p366
        %p569 = pneg %p390
        %p570 = pneg %p387
        %p571 = pneg %p416
        %p572 = pneg %p413
        %s573 = sand.u32 %s403, 1
        %s574 = scalar_lea.sflag [#allocation5], %s573
        %s575 = sand.u32 %s403, 1
        %s576 = smul.addr %s575, 8
        %s577 = scalar_lea.vmem [#allocation9], %s576
        %p578 = scmp.lt.s32.totalorder %s33, 1
        %s579 = scalar_select %p578, %s33, 1
        %s580 = smul.addr %s579, 8
        %s581 = scalar_lea.vmem %s0, %s580
        %v583 = vld [vmem:[%s1] sm:$0x1]
        %v584 = vld [vmem:[%s2] sm:$0x1]
        %v585 = vld [vmem:[%s11] sm:$0x1]
        %v586 = vld [vmem:[%s12] sm:$0x1]
        %v587 = vld [vmem:[#allocation3] sm:$0x1]
        %v588 = vld [vmem:[#allocation6] sm:$0x1]
        %v589 = vld [vmem:[#allocation8] sm:$0x1]
        %v590 = vld [vmem:[%s10] sm:$0x1]
        %v591 = vld [vmem:[%s14] sm:$0x1]
        %v592 = vld [vmem:[%s16] sm:$0x1]
        %v593 = vld [vmem:[%s581] sm:$0xff]
        %vm594 = vcmask 261120
        %v595 = vsel %vm594, %v593, 0.0
        %596 = vadd.xlane.f32.xlu0 %v595
        %v597 = vpop.xlane.xlu0 %596
        %v598 = vrcp.pop 32.0
        %v599 = vmul.f32 %v597, %v598
        %v600 = vsub.f32 %v593, %v599
        %v601 = vmul.f32 %v600, %v600
        %v602 = vsel %vm594, %v601, 0.0
        %603 = vadd.xlane.f32.xlu0 %v602
        %v604 = vpop.xlane.xlu0 %603
        %v605 = vmul.f32 %v604, %v598
        %v606 = vadd.f32 %v605, 1e-05
        %v607 = vrsqrt.pop %v606
        %v608 = vmul.f32 %v600, %v607
        %v610 = vlaneseq
        %v611 = vshrl.u32 %v610, 7
        %v612 = vsub.s32 0, %v611
        %v613 = vrot.slane %v583, %v612
        %v615 = vmul.f32 %v608, %v613
        %v617 = vlaneseq
        %v618 = vshrl.u32 %v617, 7
        %v619 = vsub.s32 0, %v618
        %v620 = vrot.slane %v584, %v619
        %v622 = vadd.f32 %v615, %v620
        %v623 = vpack.c.bf16 %v622, %v622
        %v624 = vld [vmem:[%s3] sm:$0xf]
        %v625 = vld [vmem:[%s3 + $0x4] sm:$0xf]
        %v626 = vld [vmem:[%s3 + $0x8] sm:$0xf]
        %v627 = vld [vmem:[%s3 + $0xc] sm:$0xf]
        %v629 = vlaneseq
        %v630 = vshrl.u32 %v629, 7
        %v631 = vsub.s32 0, %v630
        %v632 = vrot.slane %v587, %v631
        %v638 = vunpack.c.l.b16 %v624
        %v639 = vunpack.c.l.b16 %v625
        %v640 = vunpack.c.l.b16 %v626
        %v641 = vunpack.c.l.b16 %v627
        %v642 = vpack.c.b16 %v639, %v638
        %v643 = vpack.c.b16 %v641, %v640
        %v647 = vsel %vm594, %v623, 0
        %649 = vmatprep.subr.bf16.mxu0 0
        %650 = vmatpush1.bf16.msra.mxu0 %v642
        %651 = vmatprep.subr.bf16.mxu0 0
        %652 = vmatpush1.bf16.msra.mxu0 %v643
        %653 = vmatprep.subr.bf16.mxu0 0
        %654 = vmatpush1.bf16.msra.mxu0 0
        %655 = vmatprep.subr.bf16.mxu0 0
        %656 = vmatpush1.bf16.msra.mxu0 0
        %657 = vmatprep.subr.bf16.mxu0 0
        %658 = vmatpush1.bf16.msra.mxu0 0
        %659 = vmatprep.subr.bf16.mxu0 0
        %660 = vmatpush1.bf16.msra.mxu0 0
        %661 = vmatprep.subr.bf16.mxu0 0
        %662 = vmatpush1.bf16.msra.mxu0 0
        %663 = vmatprep.subr.bf16.mxu0 0
        %664 = vmatpush1.bf16.msra.mxu0 0
        %665 = vmatprep.subr.bf16.mxu0 0
        %666 = vmatpush1.bf16.msra.mxu0 0
        %667 = vmatprep.subr.bf16.mxu0 0
        %668 = vmatpush1.bf16.msra.mxu0 0
        %669 = vmatprep.subr.bf16.mxu0 0
        %670 = vmatpush1.bf16.msra.mxu0 0
        %671 = vmatprep.subr.bf16.mxu0 0
        %672 = vmatpush1.bf16.msra.mxu0 0
        %673 = vmatprep.subr.bf16.mxu0 0
        %674 = vmatpush1.bf16.msra.mxu0 0
        %675 = vmatprep.subr.bf16.mxu0 0
        %676 = vmatpush1.bf16.msra.mxu0 0
        %677 = vmatprep.subr.bf16.mxu0 0
        %678 = vmatpush1.bf16.msra.mxu0 0
        %679 = vmatprep.subr.bf16.mxu0 0
        %680 = vmatpush1.bf16.msra.mxu0 0
        %681 = vmatprep.mubr.bf16.mxu0 0
        %682 = vmatmul.mubr.bf16.gmra.mrb[0].mxu0 %v647
        %v683 = vpop.f32.mrb[0].mxu0
        %v684 = vadd.f32 %v632, %v683
        %v685 = vpop.f32.mrb[0].mxu0
        %v686 = vpop.f32.mrb[0].mxu0
        %v687 = vpop.f32.mrb[0].mxu0
        %688 = vdwg.mxu0
        %v689 = vpack.c.bf16 %v684, %v684
        %v690 = vld [vmem:[%s5] sm:$0xf]
        %v691 = vld [vmem:[%s5 + $0x4] sm:$0xf]
        %v692 = vld [vmem:[%s5 + $0x8] sm:$0xf]
        %v693 = vld [vmem:[%s5 + $0xc] sm:$0xf]
        %v695 = vlaneseq
        %v696 = vshrl.u32 %v695, 7
        %v697 = vsub.s32 0, %v696
        %v698 = vrot.slane %v588, %v697
        %v704 = vunpack.c.l.b16 %v690
        %v705 = vunpack.c.l.b16 %v691
        %v706 = vunpack.c.l.b16 %v692
        %v707 = vunpack.c.l.b16 %v693
        %v708 = vpack.c.b16 %v705, %v704
        %v709 = vpack.c.b16 %v707, %v706
        %712 = vmatprep.subr.bf16.mxu0 0
        %713 = vmatpush1.bf16.msra.mxu0 %v708
        %714 = vmatprep.subr.bf16.mxu0 0
        %715 = vmatpush1.bf16.msra.mxu0 %v709
        %716 = vmatprep.subr.bf16.mxu0 0
        %717 = vmatpush1.bf16.msra.mxu0 0
        %718 = vmatprep.subr.bf16.mxu0 0
        %719 = vmatpush1.bf16.msra.mxu0 0
        %720 = vmatprep.subr.bf16.mxu0 0
        %721 = vmatpush1.bf16.msra.mxu0 0
        %722 = vmatprep.subr.bf16.mxu0 0
        %723 = vmatpush1.bf16.msra.mxu0 0
        %724 = vmatprep.subr.bf16.mxu0 0
        %725 = vmatpush1.bf16.msra.mxu0 0
        %726 = vmatprep.subr.bf16.mxu0 0
        %727 = vmatpush1.bf16.msra.mxu0 0
        %728 = vmatprep.subr.bf16.mxu0 0
        %729 = vmatpush1.bf16.msra.mxu0 0
        %730 = vmatprep.subr.bf16.mxu0 0
        %731 = vmatpush1.bf16.msra.mxu0 0
        %732 = vmatprep.subr.bf16.mxu0 0
        %733 = vmatpush1.bf16.msra.mxu0 0
        %734 = vmatprep.subr.bf16.mxu0 0
        %735 = vmatpush1.bf16.msra.mxu0 0
        %736 = vmatprep.subr.bf16.mxu0 0
        %737 = vmatpush1.bf16.msra.mxu0 0
        %738 = vmatprep.subr.bf16.mxu0 0
        %739 = vmatpush1.bf16.msra.mxu0 0
        %740 = vmatprep.subr.bf16.mxu0 0
        %741 = vmatpush1.bf16.msra.mxu0 0
        %742 = vmatprep.subr.bf16.mxu0 0
        %743 = vmatpush1.bf16.msra.mxu0 0
        %744 = vmatprep.mubr.bf16.mxu0 0
        %745 = vmatmul.mubr.bf16.gmra.mrb[0].mxu0 %v647
        %v746 = vpop.f32.mrb[0].mxu0
        %v747 = vadd.f32 %v698, %v746
        %v748 = vpop.f32.mrb[0].mxu0
        %v749 = vpop.f32.mrb[0].mxu0
        %v750 = vpop.f32.mrb[0].mxu0
        %751 = vdwg.mxu0
        %v752 = vpack.c.bf16 %v747, %v747
        %v753 = vld [vmem:[%s7] sm:$0xf]
        %v754 = vld [vmem:[%s7 + $0x4] sm:$0xf]
        %v755 = vld [vmem:[%s7 + $0x8] sm:$0xf]
        %v756 = vld [vmem:[%s7 + $0xc] sm:$0xf]
        %v758 = vlaneseq
        %v759 = vshrl.u32 %v758, 7
        %v760 = vsub.s32 0, %v759
        %v761 = vrot.slane %v589, %v760
        %v767 = vunpack.c.l.b16 %v753
        %v768 = vunpack.c.l.b16 %v754
        %v769 = vunpack.c.l.b16 %v755
        %v770 = vunpack.c.l.b16 %v756
        %v771 = vpack.c.b16 %v768, %v767
        %v772 = vpack.c.b16 %v770, %v769
        %775 = vmatprep.subr.bf16.mxu0 0
        %776 = vmatpush1.bf16.msra.mxu0 %v771
        %777 = vmatprep.subr.bf16.mxu0 0
        %778 = vmatpush1.bf16.msra.mxu0 %v772
        %779 = vmatprep.subr.bf16.mxu0 0
        %780 = vmatpush1.bf16.msra.mxu0 0
        %781 = vmatprep.subr.bf16.mxu0 0
        %782 = vmatpush1.bf16.msra.mxu0 0
        %783 = vmatprep.subr.bf16.mxu0 0
        %784 = vmatpush1.bf16.msra.mxu0 0
        %785 = vmatprep.subr.bf16.mxu0 0
        %786 = vmatpush1.bf16.msra.mxu0 0
        %787 = vmatprep.subr.bf16.mxu0 0
        %788 = vmatpush1.bf16.msra.mxu0 0
        %789 = vmatprep.subr.bf16.mxu0 0
        %790 = vmatpush1.bf16.msra.mxu0 0
        %791 = vmatprep.subr.bf16.mxu0 0
        %792 = vmatpush1.bf16.msra.mxu0 0
        %793 = vmatprep.subr.bf16.mxu0 0
        %794 = vmatpush1.bf16.msra.mxu0 0
        %795 = vmatprep.subr.bf16.mxu0 0
        %796 = vmatpush1.bf16.msra.mxu0 0
        %797 = vmatprep.subr.bf16.mxu0 0
        %798 = vmatpush1.bf16.msra.mxu0 0
        %799 = vmatprep.subr.bf16.mxu0 0
        %800 = vmatpush1.bf16.msra.mxu0 0
        %801 = vmatprep.subr.bf16.mxu0 0
        %802 = vmatpush1.bf16.msra.mxu0 0
        %803 = vmatprep.subr.bf16.mxu0 0
        %804 = vmatpush1.bf16.msra.mxu0 0
        %805 = vmatprep.subr.bf16.mxu0 0
        %806 = vmatpush1.bf16.msra.mxu0 0
        %807 = vmatprep.mubr.bf16.mxu0 0
        %808 = vmatmul.mubr.bf16.gmra.mrb[0].mxu0 %v647
        %v809 = vpop.f32.mrb[0].mxu0
        %v810 = vadd.f32 %v761, %v809
        %v811 = vpop.f32.mrb[0].mxu0
        %v812 = vpop.f32.mrb[0].mxu0
        %v813 = vpop.f32.mrb[0].mxu0
        %814 = vdwg.mxu0
        %v815 = vpack.c.bf16 %v810, %v810
        %vm816 = vcmask 64512
        %v818 = vsel %vm816, %v689, 0
        %v821 = vsel %vm816, %v752, 0
        %823 = vmatprep.subr.bf16.mxu0 0
        %824 = vmatpush1.bf16.xpose.msra.mxu0 %v821
        %825 = vmatprep.subr.bf16.mxu0 0
        %826 = vmatpush1.bf16.xpose.msra.mxu0 0
        %827 = vmatprep.subr.bf16.mxu0 0
        %828 = vmatpush1.bf16.xpose.msra.mxu0 0
        %829 = vmatprep.subr.bf16.mxu0 0
        %830 = vmatpush1.bf16.xpose.msra.mxu0 0
        %831 = vmatprep.subr.bf16.mxu0 0
        %832 = vmatpush1.bf16.xpose.msra.mxu0 0
        %833 = vmatprep.subr.bf16.mxu0 0
        %834 = vmatpush1.bf16.xpose.msra.mxu0 0
        %835 = vmatprep.subr.bf16.mxu0 0
        %836 = vmatpush1.bf16.xpose.msra.mxu0 0
        %837 = vmatprep.subr.bf16.mxu0 0
        %838 = vmatpush1.bf16.xpose.msra.mxu0 0
        %839 = vmatprep.subr.bf16.mxu0 0
        %840 = vmatpush1.bf16.xpose.msra.mxu0 0
        %841 = vmatprep.subr.bf16.mxu0 0
        %842 = vmatpush1.bf16.xpose.msra.mxu0 0
        %843 = vmatprep.subr.bf16.mxu0 0
        %844 = vmatpush1.bf16.xpose.msra.mxu0 0
        %845 = vmatprep.subr.bf16.mxu0 0
        %846 = vmatpush1.bf16.xpose.msra.mxu0 0
        %847 = vmatprep.subr.bf16.mxu0 0
        %848 = vmatpush1.bf16.xpose.msra.mxu0 0
        %849 = vmatprep.subr.bf16.mxu0 0
        %850 = vmatpush1.bf16.xpose.msra.mxu0 0
        %851 = vmatprep.subr.bf16.mxu0 0
        %852 = vmatpush1.bf16.xpose.msra.mxu0 0
        %853 = vmatprep.subr.bf16.mxu0 0
        %854 = vmatpush1.bf16.xpose.msra.mxu0 0
        %855 = vmatprep.mubr.bf16.mxu0 0
        %856 = vmatmul.mubr.bf16.gmra.mrb[0].mxu0 %v818
        %v857 = vpop.f32.mrb[0].mxu0
        %v858 = vadd.f32 0.0, %v857
        %v859 = vpop.f32.mrb[0].mxu0
        %v860 = vpop.f32.mrb[0].mxu0
        %v861 = vpop.f32.mrb[0].mxu0
        %862 = vdwg.mxu0
        %v863 = vmul.f32 %v858, 0.35355338
        %v864 = vsel %vm816, %v863, -inf
        %865 = vmax.xlane.f32.xlu0 %v864
        %v866 = vpop.xlane.xlu0 %865
        %v867 = vsub.f32 %v863, %v866
        %v868 = vmul.f32 %v867, 1.442695
        %v869 = vpow.pop %v868
        %v870 = vsel %vm816, %v869, 0.0
        %871 = vadd.xlane.f32.xlu0 %v870
        %v872 = vpop.xlane.xlu0 %871
        %v873 = vrcp.pop %v872
        %v874 = vmul.f32 %v869, %v873
        %v875 = vpack.c.bf16 %v874, %v874
        %v877 = vsel %vm816, %v875, 0
        %vm879 = vcmask 1043456
        %v881 = vsel %vm879, %v815, 0
        %883 = vmatprep.subr.bf16.mxu0 0
        %884 = vmatpush1.bf16.msra.mxu0 %v881
        %885 = vmatprep.subr.bf16.mxu0 0
        %886 = vmatpush1.bf16.msra.mxu0 0
        %887 = vmatprep.subr.bf16.mxu0 0
        %888 = vmatpush1.bf16.msra.mxu0 0
        %889 = vmatprep.subr.bf16.mxu0 0
        %890 = vmatpush1.bf16.msra.mxu0 0
        %891 = vmatprep.subr.bf16.mxu0 0
        %892 = vmatpush1.bf16.msra.mxu0 0
        %893 = vmatprep.subr.bf16.mxu0 0
        %894 = vmatpush1.bf16.msra.mxu0 0
        %895 = vmatprep.subr.bf16.mxu0 0
        %896 = vmatpush1.bf16.msra.mxu0 0
        %897 = vmatprep.subr.bf16.mxu0 0
        %898 = vmatpush1.bf16.msra.mxu0 0
        %899 = vmatprep.subr.bf16.mxu0 0
        %900 = vmatpush1.bf16.msra.mxu0 0
        %901 = vmatprep.subr.bf16.mxu0 0
        %902 = vmatpush1.bf16.msra.mxu0 0
        %903 = vmatprep.subr.bf16.mxu0 0
        %904 = vmatpush1.bf16.msra.mxu0 0
        %905 = vmatprep.subr.bf16.mxu0 0
        %906 = vmatpush1.bf16.msra.mxu0 0
        %907 = vmatprep.subr.bf16.mxu0 0
        %908 = vmatpush1.bf16.msra.mxu0 0
        %909 = vmatprep.subr.bf16.mxu0 0
        %910 = vmatpush1.bf16.msra.mxu0 0
        %911 = vmatprep.subr.bf16.mxu0 0
        %912 = vmatpush1.bf16.msra.mxu0 0
        %913 = vmatprep.subr.bf16.mxu0 0
        %914 = vmatpush1.bf16.msra.mxu0 0
        %915 = vmatprep.mubr.bf16.mxu0 0
        %916 = vmatmul.mubr.bf16.gmra.mrb[0].mxu0 %v877
        %v917 = vpop.f32.mrb[0].mxu0
        %v918 = vadd.f32 0.0, %v917
        %v919 = vpop.f32.mrb[0].mxu0
        %v920 = vpop.f32.mrb[0].mxu0
        %v921 = vpop.f32.mrb[0].mxu0
        %922 = vdwg.mxu0
        %v923 = vpack.c.bf16 %v918, %v918
        %vm924 = vcmask 60416
        %925 = vst.msk [vmem:[#allocation2] sm:$0xf] %vm924, %v923
        %927 = vrot.lane.b32.xlu0 %v689, 120
        %v928 = vpop.permute.xlu0 %927
        %930 = vrot.lane.b32.xlu0 %v752, 120
        %v931 = vpop.permute.xlu0 %930
        %v933 = vsel %vm816, %v928, 0
        %v936 = vsel %vm816, %v931, 0
        %938 = vmatprep.subr.bf16.mxu0 0
        %939 = vmatpush1.bf16.xpose.msra.mxu0 %v936
        %940 = vmatprep.subr.bf16.mxu0 0
        %941 = vmatpush1.bf16.xpose.msra.mxu0 0
        %942 = vmatprep.subr.bf16.mxu0 0
        %943 = vmatpush1.bf16.xpose.msra.mxu0 0
        %944 = vmatprep.subr.bf16.mxu0 0
        %945 = vmatpush1.bf16.xpose.msra.mxu0 0
        %946 = vmatprep.subr.bf16.mxu0 0
        %947 = vmatpush1.bf16.xpose.msra.mxu0 0
        %948 = vmatprep.subr.bf16.mxu0 0
        %949 = vmatpush1.bf16.xpose.msra.mxu0 0
        %950 = vmatprep.subr.bf16.mxu0 0
        %951 = vmatpush1.bf16.xpose.msra.mxu0 0
        %952 = vmatprep.subr.bf16.mxu0 0
        %953 = vmatpush1.bf16.xpose.msra.mxu0 0
        %954 = vmatprep.subr.bf16.mxu0 0
        %955 = vmatpush1.bf16.xpose.msra.mxu0 0
        %956 = vmatprep.subr.bf16.mxu0 0
        %957 = vmatpush1.bf16.xpose.msra.mxu0 0
        %958 = vmatprep.subr.bf16.mxu0 0
        %959 = vmatpush1.bf16.xpose.msra.mxu0 0
        %960 = vmatprep.subr.bf16.mxu0 0
        %961 = vmatpush1.bf16.xpose.msra.mxu0 0
        %962 = vmatprep.subr.bf16.mxu0 0
        %963 = vmatpush1.bf16.xpose.msra.mxu0 0
        %964 = vmatprep.subr.bf16.mxu0 0
        %965 = vmatpush1.bf16.xpose.msra.mxu0 0
        %966 = vmatprep.subr.bf16.mxu0 0
        %967 = vmatpush1.bf16.xpose.msra.mxu0 0
        %968 = vmatprep.subr.bf16.mxu0 0
        %969 = vmatpush1.bf16.xpose.msra.mxu0 0
        %970 = vmatprep.mubr.bf16.mxu0 0
        %971 = vmatmul.mubr.bf16.gmra.mrb[0].mxu0 %v933
        %v972 = vpop.f32.mrb[0].mxu0
        %v973 = vadd.f32 0.0, %v972
        %v974 = vpop.f32.mrb[0].mxu0
        %v975 = vpop.f32.mrb[0].mxu0
        %v976 = vpop.f32.mrb[0].mxu0
        %977 = vdwg.mxu0
        %v978 = vmul.f32 %v973, 0.35355338
        %v979 = vsel %vm816, %v978, -inf
        %980 = vmax.xlane.f32.xlu0 %v979
        %v981 = vpop.xlane.xlu0 %980
        %v982 = vsub.f32 %v978, %v981
        %v983 = vmul.f32 %v982, 1.442695
        %v984 = vpow.pop %v983
        %v985 = vsel %vm816, %v984, 0.0
        %986 = vadd.xlane.f32.xlu0 %v985
        %v987 = vpop.xlane.xlu0 %986
        %v988 = vrcp.pop %v987
        %v989 = vmul.f32 %v984, %v988
        %v990 = vpack.c.bf16 %v989, %v989
        %992 = vrot.lane.b32.xlu0 %v815, 120
        %v993 = vpop.permute.xlu0 %992
        %v995 = vsel %vm816, %v990, 0
        %v998 = vsel %vm879, %v993, 0
        %1000 = vmatprep.subr.bf16.mxu0 0
        %1001 = vmatpush1.bf16.msra.mxu0 %v998
        %1002 = vmatprep.subr.bf16.mxu0 0
        %1003 = vmatpush1.bf16.msra.mxu0 0
        %1004 = vmatprep.subr.bf16.mxu0 0
        %1005 = vmatpush1.bf16.msra.mxu0 0
        %1006 = vmatprep.subr.bf16.mxu0 0
        %1007 = vmatpush1.bf16.msra.mxu0 0
        %1008 = vmatprep.subr.bf16.mxu0 0
        %1009 = vmatpush1.bf16.msra.mxu0 0
        %1010 = vmatprep.subr.bf16.mxu0 0
        %1011 = vmatpush1.bf16.msra.mxu0 0
        %1012 = vmatprep.subr.bf16.mxu0 0
        %1013 = vmatpush1.bf16.msra.mxu0 0
        %1014 = vmatprep.subr.bf16.mxu0 0
        %1015 = vmatpush1.bf16.msra.mxu0 0
        %1016 = vmatprep.subr.bf16.mxu0 0
        %1017 = vmatpush1.bf16.msra.mxu0 0
        %1018 = vmatprep.subr.bf16.mxu0 0
        %1019 = vmatpush1.bf16.msra.mxu0 0
        %1020 = vmatprep.subr.bf16.mxu0 0
        %1021 = vmatpush1.bf16.msra.mxu0 0
        %1022 = vmatprep.subr.bf16.mxu0 0
        %1023 = vmatpush1.bf16.msra.mxu0 0
        %1024 = vmatprep.subr.bf16.mxu0 0
        %1025 = vmatpush1.bf16.msra.mxu0 0
        %1026 = vmatprep.subr.bf16.mxu0 0
        %1027 = vmatpush1.bf16.msra.mxu0 0
        %1028 = vmatprep.subr.bf16.mxu0 0
        %1029 = vmatpush1.bf16.msra.mxu0 0
        %1030 = vmatprep.subr.bf16.mxu0 0
        %1031 = vmatpush1.bf16.msra.mxu0 0
        %1032 = vmatprep.mubr.bf16.mxu0 0
        %1033 = vmatmul.mubr.bf16.gmra.mrb[0].mxu0 %v995
        %v1034 = vpop.f32.mrb[0].mxu0
        %v1035 = vadd.f32 0.0, %v1034
        %v1036 = vpop.f32.mrb[0].mxu0
        %v1037 = vpop.f32.mrb[0].mxu0
        %v1038 = vpop.f32.mrb[0].mxu0
        %1039 = vdwg.mxu0
        %v1040 = vpack.c.bf16 %v1035, %v1035
        %v1042 = vunpack.c.l.b16 %v1040
        %v1043 = vpack.c.b16 %v1042, %v1042
        %1044 = vrot.lane.b32.xlu0 %v1043, 8
        %v1045 = vpop.permute.xlu0 %1044
        %vm1047 = vcmask 126016
        %1048 = vst.msk [vmem:[#allocation2] sm:$0xf] %vm1047, %v1045
        %1049 = vrot.lane.b32.xlu0 %v689, 112
        %v1050 = vpop.permute.xlu0 %1049
        %1051 = vrot.lane.b32.xlu0 %v752, 112
        %v1052 = vpop.permute.xlu0 %1051
        %v1054 = vsel %vm816, %v1050, 0
        %v1057 = vsel %vm816, %v1052, 0
        %1059 = vmatprep.subr.bf16.mxu0 0
        %1060 = vmatpush1.bf16.xpose.msra.mxu0 %v1057
        %1061 = vmatprep.subr.bf16.mxu0 0
        %1062 = vmatpush1.bf16.xpose.msra.mxu0 0
        %1063 = vmatprep.subr.bf16.mxu0 0
        %1064 = vmatpush1.bf16.xpose.msra.mxu0 0
        %1065 = vmatprep.subr.bf16.mxu0 0
        %1066 = vmatpush1.bf16.xpose.msra.mxu0 0
        %1067 = vmatprep.subr.bf16.mxu0 0
        %1068 = vmatpush1.bf16.xpose.msra.mxu0 0
        %1069 = vmatprep.subr.bf16.mxu0 0
        %1070 = vmatpush1.bf16.xpose.msra.mxu0 0
        %1071 = vmatprep.subr.bf16.mxu0 0
        %1072 = vmatpush1.bf16.xpose.msra.mxu0 0
        %1073 = vmatprep.subr.bf16.mxu0 0
        %1074 = vmatpush1.bf16.xpose.msra.mxu0 0
        %1075 = vmatprep.subr.bf16.mxu0 0
        %1076 = vmatpush1.bf16.xpose.msra.mxu0 0
        %1077 = vmatprep.subr.bf16.mxu0 0
        %1078 = vmatpush1.bf16.xpose.msra.mxu0 0
        %1079 = vmatprep.subr.bf16.mxu0 0
        %1080 = vmatpush1.bf16.xpose.msra.mxu0 0
        %1081 = vmatprep.subr.bf16.mxu0 0
        %1082 = vmatpush1.bf16.xpose.msra.mxu0 0
        %1083 = vmatprep.subr.bf16.mxu0 0
        %1084 = vmatpush1.bf16.xpose.msra.mxu0 0
        %1085 = vmatprep.subr.bf16.mxu0 0
        %1086 = vmatpush1.bf16.xpose.msra.mxu0 0
        %1087 = vmatprep.subr.bf16.mxu0 0
        %1088 = vmatpush1.bf16.xpose.msra.mxu0 0
        %1089 = vmatprep.subr.bf16.mxu0 0
        %1090 = vmatpush1.bf16.xpose.msra.mxu0 0
        %1091 = vmatprep.mubr.bf16.mxu0 0
        %1092 = vmatmul.mubr.bf16.gmra.mrb[0].mxu0 %v1054
        %v1093 = vpop.f32.mrb[0].mxu0
        %v1094 = vadd.f32 0.0, %v1093
        %v1095 = vpop.f32.mrb[0].mxu0
        %v1096 = vpop.f32.mrb[0].mxu0
        %v1097 = vpop.f32.mrb[0].mxu0
        %1098 = vdwg.mxu0
        %v1099 = vmul.f32 %v1094, 0.35355338
        %v1100 = vsel %vm816, %v1099, -inf
        %1101 = vmax.xlane.f32.xlu0 %v1100
        %v1102 = vpop.xlane.xlu0 %1101
        %v1103 = vsub.f32 %v1099, %v1102
        %v1104 = vmul.f32 %v1103, 1.442695
        %v1105 = vpow.pop %v1104
        %v1106 = vsel %vm816, %v1105, 0.0
        %1107 = vadd.xlane.f32.xlu0 %v1106
        %v1108 = vpop.xlane.xlu0 %1107
        %v1109 = vrcp.pop %v1108
        %v1110 = vmul.f32 %v1105, %v1109
        %v1111 = vpack.c.bf16 %v1110, %v1110
        %1112 = vrot.lane.b32.xlu0 %v815, 112
        %v1113 = vpop.permute.xlu0 %1112
        %v1115 = vsel %vm816, %v1111, 0
        %v1118 = vsel %vm879, %v1113, 0
        %1120 = vmatprep.subr.bf16.mxu0 0
        %1121 = vmatpush1.bf16.msra.mxu0 %v1118
        %1122 = vmatprep.subr.bf16.mxu0 0
        %1123 = vmatpush1.bf16.msra.mxu0 0
        %1124 = vmatprep.subr.bf16.mxu0 0
        %1125 = vmatpush1.bf16.msra.mxu0 0
        %1126 = vmatprep.subr.bf16.mxu0 0
        %1127 = vmatpush1.bf16.msra.mxu0 0
        %1128 = vmatprep.subr.bf16.mxu0 0
        %1129 = vmatpush1.bf16.msra.mxu0 0
        %1130 = vmatprep.subr.bf16.mxu0 0
        %1131 = vmatpush1.bf16.msra.mxu0 0
        %1132 = vmatprep.subr.bf16.mxu0 0
        %1133 = vmatpush1.bf16.msra.mxu0 0
        %1134 = vmatprep.subr.bf16.mxu0 0
        %1135 = vmatpush1.bf16.msra.mxu0 0
        %1136 = vmatprep.subr.bf16.mxu0 0
        %1137 = vmatpush1.bf16.msra.mxu0 0
        %1138 = vmatprep.subr.bf16.mxu0 0
        %1139 = vmatpush1.bf16.msra.mxu0 0
        %1140 = vmatprep.subr.bf16.mxu0 0
        %1141 = vmatpush1.bf16.msra.mxu0 0
        %1142 = vmatprep.subr.bf16.mxu0 0
        %1143 = vmatpush1.bf16.msra.mxu0 0
        %1144 = vmatprep.subr.bf16.mxu0 0
        %1145 = vmatpush1.bf16.msra.mxu0 0
        %1146 = vmatprep.subr.bf16.mxu0 0
        %1147 = vmatpush1.bf16.msra.mxu0 0
        %1148 = vmatprep.subr.bf16.mxu0 0
        %1149 = vmatpush1.bf16.msra.mxu0 0
        %1150 = vmatprep.subr.bf16.mxu0 0
        %1151 = vmatpush1.bf16.msra.mxu0 0
        %1152 = vmatprep.mubr.bf16.mxu0 0
        %1153 = vmatmul.mubr.bf16.gmra.mrb[0].mxu0 %v1115
        %v1154 = vpop.f32.mrb[0].mxu0
        %v1155 = vadd.f32 0.0, %v1154
        %v1156 = vpop.f32.mrb[0].mxu0
        %v1157 = vpop.f32.mrb[0].mxu0
        %v1158 = vpop.f32.mrb[0].mxu0
        %1159 = vdwg.mxu0
        %v1160 = vpack.c.bf16 %v1155, %v1155
        %v1162 = vunpack.c.l.b16 %v1160
        %v1163 = vpack.c.b16 %v1162, %v1162
        %1164 = vrot.lane.b32.xlu0 %v1163, 16
        %v1165 = vpop.permute.xlu0 %1164
        %vm1167 = vcmask 191616
        %1168 = vst.msk [vmem:[#allocation2] sm:$0xf] %vm1167, %v1165
        %1169 = vrot.lane.b32.xlu0 %v689, 104
        %v1170 = vpop.permute.xlu0 %1169
        %1171 = vrot.lane.b32.xlu0 %v752, 104
        %v1172 = vpop.permute.xlu0 %1171
        %v1174 = vsel %vm816, %v1170, 0
        %v1177 = vsel %vm816, %v1172, 0
        %1179 = vmatprep.subr.bf16.mxu0 0
        %1180 = vmatpush1.bf16.xpose.msra.mxu0 %v1177
        %1181 = vmatprep.subr.bf16.mxu0 0
        %1182 = vmatpush1.bf16.xpose.msra.mxu0 0
        %1183 = vmatprep.subr.bf16.mxu0 0
        %1184 = vmatpush1.bf16.xpose.msra.mxu0 0
        %1185 = vmatprep.subr.bf16.mxu0 0
        %1186 = vmatpush1.bf16.xpose.msra.mxu0 0
        %1187 = vmatprep.subr.bf16.mxu0 0
        %1188 = vmatpush1.bf16.xpose.msra.mxu0 0
        %1189 = vmatprep.subr.bf16.mxu0 0
        %1190 = vmatpush1.bf16.xpose.msra.mxu0 0
        %1191 = vmatprep.subr.bf16.mxu0 0
        %1192 = vmatpush1.bf16.xpose.msra.mxu0 0
        %1193 = vmatprep.subr.bf16.mxu0 0
        %1194 = vmatpush1.bf16.xpose.msra.mxu0 0
        %1195 = vmatprep.subr.bf16.mxu0 0
        %1196 = vmatpush1.bf16.xpose.msra.mxu0 0
        %1197 = vmatprep.subr.bf16.mxu0 0
        %1198 = vmatpush1.bf16.xpose.msra.mxu0 0
        %1199 = vmatprep.subr.bf16.mxu0 0
        %1200 = vmatpush1.bf16.xpose.msra.mxu0 0
        %1201 = vmatprep.subr.bf16.mxu0 0
        %1202 = vmatpush1.bf16.xpose.msra.mxu0 0
        %1203 = vmatprep.subr.bf16.mxu0 0
        %1204 = vmatpush1.bf16.xpose.msra.mxu0 0
        %1205 = vmatprep.subr.bf16.mxu0 0
        %1206 = vmatpush1.bf16.xpose.msra.mxu0 0
        %1207 = vmatprep.subr.bf16.mxu0 0
        %1208 = vmatpush1.bf16.xpose.msra.mxu0 0
        %1209 = vmatprep.subr.bf16.mxu0 0
        %1210 = vmatpush1.bf16.xpose.msra.mxu0 0
        %1211 = vmatprep.mubr.bf16.mxu0 0
        %1212 = vmatmul.mubr.bf16.gmra.mrb[0].mxu0 %v1174
        %v1213 = vpop.f32.mrb[0].mxu0
        %v1214 = vadd.f32 0.0, %v1213
        %v1215 = vpop.f32.mrb[0].mxu0
        %v1216 = vpop.f32.mrb[0].mxu0
        %v1217 = vpop.f32.mrb[0].mxu0
        %1218 = vdwg.mxu0
        %v1219 = vmul.f32 %v1214, 0.35355338
        %v1220 = vsel %vm816, %v1219, -inf
        %1221 = vmax.xlane.f32.xlu0 %v1220
        %v1222 = vpop.xlane.xlu0 %1221
        %v1223 = vsub.f32 %v1219, %v1222
        %v1224 = vmul.f32 %v1223, 1.442695
        %v1225 = vpow.pop %v1224
        %v1226 = vsel %vm816, %v1225, 0.0
        %1227 = vadd.xlane.f32.xlu0 %v1226
        %v1228 = vpop.xlane.xlu0 %1227
        %v1229 = vrcp.pop %v1228
        %v1230 = vmul.f32 %v1225, %v1229
        %v1231 = vpack.c.bf16 %v1230, %v1230
        %1232 = vrot.lane.b32.xlu0 %v815, 104
        %v1233 = vpop.permute.xlu0 %1232
        %v1235 = vsel %vm816, %v1231, 0
        %v1238 = vsel %vm879, %v1233, 0
        %1240 = vmatprep.subr.bf16.mxu0 0
        %1241 = vmatpush1.bf16.msra.mxu0 %v1238
        %1242 = vmatprep.subr.bf16.mxu0 0
        %1243 = vmatpush1.bf16.msra.mxu0 0
        %1244 = vmatprep.subr.bf16.mxu0 0
        %1245 = vmatpush1.bf16.msra.mxu0 0
        %1246 = vmatprep.subr.bf16.mxu0 0
        %1247 = vmatpush1.bf16.msra.mxu0 0
        %1248 = vmatprep.subr.bf16.mxu0 0
        %1249 = vmatpush1.bf16.msra.mxu0 0
        %1250 = vmatprep.subr.bf16.mxu0 0
        %1251 = vmatpush1.bf16.msra.mxu0 0
        %1252 = vmatprep.subr.bf16.mxu0 0
        %1253 = vmatpush1.bf16.msra.mxu0 0
        %1254 = vmatprep.subr.bf16.mxu0 0
        %1255 = vmatpush1.bf16.msra.mxu0 0
        %1256 = vmatprep.subr.bf16.mxu0 0
        %1257 = vmatpush1.bf16.msra.mxu0 0
        %1258 = vmatprep.subr.bf16.mxu0 0
        %1259 = vmatpush1.bf16.msra.mxu0 0
        %1260 = vmatprep.subr.bf16.mxu0 0
        %1261 = vmatpush1.bf16.msra.mxu0 0
        %1262 = vmatprep.subr.bf16.mxu0 0
        %1263 = vmatpush1.bf16.msra.mxu0 0
        %1264 = vmatprep.subr.bf16.mxu0 0
        %1265 = vmatpush1.bf16.msra.mxu0 0
        %1266 = vmatprep.subr.bf16.mxu0 0
        %1267 = vmatpush1.bf16.msra.mxu0 0
        %1268 = vmatprep.subr.bf16.mxu0 0
        %1269 = vmatpush1.bf16.msra.mxu0 0
        %1270 = vmatprep.subr.bf16.mxu0 0
        %1271 = vmatpush1.bf16.msra.mxu0 0
        %1272 = vmatprep.mubr.bf16.mxu0 0
        %1273 = vmatmul.mubr.bf16.gmra.mrb[0].mxu0 %v1235
        %v1274 = vpop.f32.mrb[0].mxu0
        %v1275 = vadd.f32 0.0, %v1274
        %v1276 = vpop.f32.mrb[0].mxu0
        %v1277 = vpop.f32.mrb[0].mxu0
        %v1278 = vpop.f32.mrb[0].mxu0
        %1279 = vdwg.mxu0
        %v1280 = vpack.c.bf16 %v1275, %v1275
        %v1282 = vunpack.c.l.b16 %v1280
        %v1283 = vpack.c.b16 %v1282, %v1282
        %1284 = vrot.lane.b32.xlu0 %v1283, 24
        %v1285 = vpop.permute.xlu0 %1284
        %vm1287 = vcmask 257216
        %1288 = vst.msk [vmem:[#allocation2] sm:$0xf] %vm1287, %v1285
        %v1289 = vld [vmem:[#allocation2] sm:$0xf]
        %v1290 = vld [vmem:[%s9] sm:$0xf]
        %v1291 = vld [vmem:[%s9 + $0x4] sm:$0xf]
        %v1292 = vld [vmem:[%s9 + $0x8] sm:$0xf]
        %v1293 = vld [vmem:[%s9 + $0xc] sm:$0xf]
        %v1295 = vlaneseq
        %v1296 = vshrl.u32 %v1295, 7
        %v1297 = vsub.s32 0, %v1296
        %v1298 = vrot.slane %v590, %v1297
        %v1304 = vunpack.c.l.b16 %v1290
        %v1305 = vunpack.c.l.b16 %v1291
        %v1306 = vunpack.c.l.b16 %v1292
        %v1307 = vunpack.c.l.b16 %v1293
        %v1308 = vpack.c.b16 %v1305, %v1304
        %v1309 = vpack.c.b16 %v1307, %v1306
        %v1313 = vsel %vm594, %v1289, 0
        %1315 = vmatprep.subr.bf16.mxu0 0
        %1316 = vmatpush1.bf16.msra.mxu0 %v1308
        %1317 = vmatprep.subr.bf16.mxu0 0
        %1318 = vmatpush1.bf16.msra.mxu0 %v1309
        %1319 = vmatprep.subr.bf16.mxu0 0
        %1320 = vmatpush1.bf16.msra.mxu0 0
        %1321 = vmatprep.subr.bf16.mxu0 0
        %1322 = vmatpush1.bf16.msra.mxu0 0
        %1323 = vmatprep.subr.bf16.mxu0 0
        %1324 = vmatpush1.bf16.msra.mxu0 0
        %1325 = vmatprep.subr.bf16.mxu0 0
        %1326 = vmatpush1.bf16.msra.mxu0 0
        %1327 = vmatprep.subr.bf16.mxu0 0
        %1328 = vmatpush1.bf16.msra.mxu0 0
        %1329 = vmatprep.subr.bf16.mxu0 0
        %1330 = vmatpush1.bf16.msra.mxu0 0
        %1331 = vmatprep.subr.bf16.mxu0 0
        %1332 = vmatpush1.bf16.msra.mxu0 0
        %1333 = vmatprep.subr.bf16.mxu0 0
        %1334 = vmatpush1.bf16.msra.mxu0 0
        %1335 = vmatprep.subr.bf16.mxu0 0
        %1336 = vmatpush1.bf16.msra.mxu0 0
        %1337 = vmatprep.subr.bf16.mxu0 0
        %1338 = vmatpush1.bf16.msra.mxu0 0
        %1339 = vmatprep.subr.bf16.mxu0 0
        %1340 = vmatpush1.bf16.msra.mxu0 0
        %1341 = vmatprep.subr.bf16.mxu0 0
        %1342 = vmatpush1.bf16.msra.mxu0 0
        %1343 = vmatprep.subr.bf16.mxu0 0
        %1344 = vmatpush1.bf16.msra.mxu0 0
        %1345 = vmatprep.subr.bf16.mxu0 0
        %1346 = vmatpush1.bf16.msra.mxu0 0
        %1347 = vmatprep.mubr.bf16.mxu0 0
        %1348 = vmatmul.mubr.bf16.gmra.mrb[0].mxu0 %v1313
        %v1349 = vpop.f32.mrb[0].mxu0
        %v1350 = vadd.f32 %v1298, %v1349
        %v1351 = vpop.f32.mrb[0].mxu0
        %v1352 = vpop.f32.mrb[0].mxu0
        %v1353 = vpop.f32.mrb[0].mxu0
        %1354 = vdwg.mxu0
        %v1355 = vadd.f32 %v593, %v1350
        %v1356 = vsel %vm594, %v1355, 0.0
        %1357 = vadd.xlane.f32.xlu0 %v1356
        %v1358 = vpop.xlane.xlu0 %1357
        %v1359 = vmul.f32 %v1358, %v598
        %v1360 = vsub.f32 %v1355, %v1359
        %v1361 = vmul.f32 %v1360, %v1360
        %v1362 = vsel %vm594, %v1361, 0.0
        %1363 = vadd.xlane.f32.xlu0 %v1362
        %v1364 = vpop.xlane.xlu0 %1363
        %v1365 = vmul.f32 %v1364, %v598
        %v1366 = vadd.f32 %v1365, 1e-05
        %v1367 = vrsqrt.pop %v1366
        %v1368 = vmul.f32 %v1360, %v1367
        %v1370 = vlaneseq
        %v1371 = vshrl.u32 %v1370, 7
        %v1372 = vsub.s32 0, %v1371
        %v1373 = vrot.slane %v585, %v1372
        %v1375 = vmul.f32 %v1368, %v1373
        %v1377 = vlaneseq
        %v1378 = vshrl.u32 %v1377, 7
        %v1379 = vsub.s32 0, %v1378
        %v1380 = vrot.slane %v586, %v1379
        %v1382 = vadd.f32 %v1375, %v1380
        %v1383 = vpack.c.bf16 %v1382, %v1382
        %v1384 = vld [vmem:[%s13] sm:$0xf]
        %v1385 = vld [vmem:[%s13 + $0x4] sm:$0xf]
        %v1386 = vld [vmem:[%s13 + $0x8] sm:$0xf]
        %v1387 = vld [vmem:[%s13 + $0xc] sm:$0xf]
        %v1389 = vlaneseq
        %v1390 = vshrl.u32 %v1389, 7
        %v1391 = vsub.s32 0, %v1390
        %v1392 = vrot.slane %v591, %v1391
        %v1398 = vunpack.c.l.b16 %v1384
        %v1399 = vunpack.c.l.b16 %v1385
        %v1400 = vunpack.c.l.b16 %v1386
        %v1401 = vunpack.c.l.b16 %v1387
        %v1402 = vpack.c.b16 %v1399, %v1398
        %v1403 = vpack.c.b16 %v1401, %v1400
        %v1407 = vsel %vm594, %v1383, 0
        %1409 = vmatprep.subr.bf16.mxu0 0
        %1410 = vmatpush1.bf16.msra.mxu0 %v1402
        %1411 = vmatprep.subr.bf16.mxu0 0
        %1412 = vmatpush1.bf16.msra.mxu0 %v1403
        %1413 = vmatprep.subr.bf16.mxu0 0
        %1414 = vmatpush1.bf16.msra.mxu0 0
        %1415 = vmatprep.subr.bf16.mxu0 0
        %1416 = vmatpush1.bf16.msra.mxu0 0
        %1417 = vmatprep.subr.bf16.mxu0 0
        %1418 = vmatpush1.bf16.msra.mxu0 0
        %1419 = vmatprep.subr.bf16.mxu0 0
        %1420 = vmatpush1.bf16.msra.mxu0 0
        %1421 = vmatprep.subr.bf16.mxu0 0
        %1422 = vmatpush1.bf16.msra.mxu0 0
        %1423 = vmatprep.subr.bf16.mxu0 0
        %1424 = vmatpush1.bf16.msra.mxu0 0
        %1425 = vmatprep.subr.bf16.mxu0 0
        %1426 = vmatpush1.bf16.msra.mxu0 0
        %1427 = vmatprep.subr.bf16.mxu0 0
        %1428 = vmatpush1.bf16.msra.mxu0 0
        %1429 = vmatprep.subr.bf16.mxu0 0
        %1430 = vmatpush1.bf16.msra.mxu0 0
        %1431 = vmatprep.subr.bf16.mxu0 0
        %1432 = vmatpush1.bf16.msra.mxu0 0
        %1433 = vmatprep.subr.bf16.mxu0 0
        %1434 = vmatpush1.bf16.msra.mxu0 0
        %1435 = vmatprep.subr.bf16.mxu0 0
        %1436 = vmatpush1.bf16.msra.mxu0 0
        %1437 = vmatprep.subr.bf16.mxu0 0
        %1438 = vmatpush1.bf16.msra.mxu0 0
        %1439 = vmatprep.subr.bf16.mxu0 0
        %1440 = vmatpush1.bf16.msra.mxu0 0
        %1441 = vmatprep.mubr.bf16.mxu0 0
        %1442 = vmatmul.mubr.bf16.gmra.mrb[0].mxu0 %v1407
        %v1443 = vpop.f32.mrb[0].mxu0
        %v1444 = vadd.f32 %v1392, %v1443
        %v1445 = vpop.f32.mrb[0].mxu0
        %v1446 = vpop.f32.mrb[0].mxu0
        %v1447 = vpop.f32.mrb[0].mxu0
        %1448 = vdwg.mxu0
        %v1449 = vmax.f32 %v1444, 0.0
        %v1450 = vpack.c.bf16 %v1449, %v1449
        %v1451 = vld [vmem:[%s15] sm:$0xf]
        %v1452 = vld [vmem:[%s15 + $0x4] sm:$0xf]
        %v1453 = vld [vmem:[%s15 + $0x8] sm:$0xf]
        %v1454 = vld [vmem:[%s15 + $0xc] sm:$0xf]
        %v1455 = vld [vmem:[%s15 + $0x10] sm:$0xf]
        %v1456 = vld [vmem:[%s15 + $0x14] sm:$0xf]
        %v1457 = vld [vmem:[%s15 + $0x18] sm:$0xf]
        %v1458 = vld [vmem:[%s15 + $0x1c] sm:$0xf]
        %v1459 = vld [vmem:[%s15 + $0x20] sm:$0xf]
        %v1460 = vld [vmem:[%s15 + $0x24] sm:$0xf]
        %v1461 = vld [vmem:[%s15 + $0x28] sm:$0xf]
        %v1462 = vld [vmem:[%s15 + $0x2c] sm:$0xf]
        %v1463 = vld [vmem:[%s15 + $0x30] sm:$0xf]
        %v1464 = vld [vmem:[%s15 + $0x34] sm:$0xf]
        %v1465 = vld [vmem:[%s15 + $0x38] sm:$0xf]
        %v1466 = vld [vmem:[%s15 + $0x3c] sm:$0xf]
        %v1468 = vlaneseq
        %v1469 = vshrl.u32 %v1468, 7
        %v1470 = vsub.s32 0, %v1469
        %v1471 = vrot.slane %v592, %v1470
        %v1489 = vunpack.c.l.b16 %v1451
        %v1490 = vunpack.c.l.b16 %v1452
        %v1491 = vunpack.c.l.b16 %v1453
        %v1492 = vunpack.c.l.b16 %v1454
        %v1493 = vunpack.c.l.b16 %v1455
        %v1494 = vunpack.c.l.b16 %v1456
        %v1495 = vunpack.c.l.b16 %v1457
        %v1496 = vunpack.c.l.b16 %v1458
        %v1497 = vunpack.c.l.b16 %v1459
        %v1498 = vunpack.c.l.b16 %v1460
        %v1499 = vunpack.c.l.b16 %v1461
        %v1500 = vunpack.c.l.b16 %v1462
        %v1501 = vunpack.c.l.b16 %v1463
        %v1502 = vunpack.c.l.b16 %v1464
        %v1503 = vunpack.c.l.b16 %v1465
        %v1504 = vunpack.c.l.b16 %v1466
        %v1505 = vpack.c.b16 %v1490, %v1489
        %v1506 = vpack.c.b16 %v1492, %v1491
        %v1507 = vpack.c.b16 %v1494, %v1493
        %v1508 = vpack.c.b16 %v1496, %v1495
        %v1509 = vpack.c.b16 %v1498, %v1497
        %v1510 = vpack.c.b16 %v1500, %v1499
        %v1511 = vpack.c.b16 %v1502, %v1501
        %v1512 = vpack.c.b16 %v1504, %v1503
        %1521 = vmatprep.subr.bf16.mxu0 0
        %1522 = vmatpush1.bf16.msra.mxu0 %v1505
        %1523 = vmatprep.subr.bf16.mxu0 0
        %1524 = vmatpush1.bf16.msra.mxu0 %v1506
        %1525 = vmatprep.subr.bf16.mxu0 0
        %1526 = vmatpush1.bf16.msra.mxu0 %v1507
        %1527 = vmatprep.subr.bf16.mxu0 0
        %1528 = vmatpush1.bf16.msra.mxu0 %v1508
        %1529 = vmatprep.subr.bf16.mxu0 0
        %1530 = vmatpush1.bf16.msra.mxu0 %v1509
        %1531 = vmatprep.subr.bf16.mxu0 0
        %1532 = vmatpush1.bf16.msra.mxu0 %v1510
        %1533 = vmatprep.subr.bf16.mxu0 0
        %1534 = vmatpush1.bf16.msra.mxu0 %v1511
        %1535 = vmatprep.subr.bf16.mxu0 0
        %1536 = vmatpush1.bf16.msra.mxu0 %v1512
        %1537 = vmatprep.subr.bf16.mxu0 0
        %1538 = vmatpush1.bf16.msra.mxu0 0
        %1539 = vmatprep.subr.bf16.mxu0 0
        %1540 = vmatpush1.bf16.msra.mxu0 0
        %1541 = vmatprep.subr.bf16.mxu0 0
        %1542 = vmatpush1.bf16.msra.mxu0 0
        %1543 = vmatprep.subr.bf16.mxu0 0
        %1544 = vmatpush1.bf16.msra.mxu0 0
        %1545 = vmatprep.subr.bf16.mxu0 0
        %1546 = vmatpush1.bf16.msra.mxu0 0
        %1547 = vmatprep.subr.bf16.mxu0 0
        %1548 = vmatpush1.bf16.msra.mxu0 0
        %1549 = vmatprep.subr.bf16.mxu0 0
        %1550 = vmatpush1.bf16.msra.mxu0 0
        %1551 = vmatprep.subr.bf16.mxu0 0
        %1552 = vmatpush1.bf16.msra.mxu0 0
        %1553 = vmatprep.mubr.bf16.mxu0 0
        %1554 = vmatmul.mubr.bf16.gmra.mrb[0].mxu0 %v1450
        %v1555 = vpop.f32.mrb[0].mxu0
        %v1556 = vadd.f32 %v1471, %v1555
        %v1557 = vpop.f32.mrb[0].mxu0
        %v1558 = vpop.f32.mrb[0].mxu0
        %v1559 = vpop.f32.mrb[0].mxu0
        %1560 = vdwg.mxu0
        %v1561 = vadd.f32 %v1355, %v1556
        %1562 = vst.msk [vmem:[%s577] sm:$0xff] %vm594, %v1561
        %s1563 = sand.u32 %s403, 1
        %s1564 = scalar_lea.sflag [#allocation5], %s1563
        %s1565 = sand.u32 %s403, 1
        %s1566 = smul.addr %s1565, 8
        %s1567 = scalar_lea.vmem [#allocation9], %s1566
        // Predicated region
        $region101: #{tpu_custom_call.1} parent=87 // pred_check
          %p1568 = pneg %p413
        $region102: #{tpu_custom_call.1} parent=87 // pred_check_branch
          %1570 = sbr.rel (%p1568) target = $region104
        $region103: #{tpu_custom_call.1} parent=87 // pred_region
          %s1572 = ssub.s32 128, 128
          %1573 = vsyncadd %s1564, %s1572
          %s1574 = smul.addr %s33, 128
          %s1575 = scalar_lea.hbm %s17, %s1574
          %s1577 = sshll.u32 %s1567, 4
          %s1578 = int_to_ptr.vmem [resolvable:$true] %s1577
          %1580 = dma.vmem_to_hbm [thread:$0]  %s1578, 128, %s1575, %s1564
        $region104: #{tpu_custom_call.1} parent=87 // pred_fallthru
          _
      $region88: #{tpu_custom_call.1} parent=5 // pred_fallthru
        _
      %p1581 = scmp.le.s32.totalorder 2, %s28
      // Predicated region
      $region105: #{tpu_custom_call.1} parent=5 // pred_check
        %p1582 = pneg %p1581
      $region106: #{tpu_custom_call.1} parent=5 // pred_check_branch
        %1584 = sbr.rel (%p1582) target = $region108
      $region107: #{tpu_custom_call.1} parent=5 // pred_region
        %s1585 = ssub.s32 %s28, 2
        // Predicated region
        $region109: #{tpu_custom_call.1} parent=107 // pred_check
          %p1586 = pneg %p419
        $region110: #{tpu_custom_call.1} parent=107 // pred_check_branch
          %1588 = sbr.rel (%p1586) target = $region112
        $region111: #{tpu_custom_call.1} parent=107 // pred_region
          %s1589 = sand.u32 %s404, 1
          %s1590 = scalar_lea.sflag [#allocation5], %s1589
          %s1591 = sand.u32 %s404, 1
          %s1592 = smul.addr %s1591, 8
          %s1593 = scalar_lea.vmem [#allocation9], %s1592
          %1594 = dma.done %s1590, 128
        $region112: #{tpu_custom_call.1} parent=107 // pred_fallthru
          _
      $region108: #{tpu_custom_call.1} parent=5 // pred_fallthru
        _
    $region6: #{tpu_custom_call.1} parent=1 // loop_footer
      %s32 = sadd.s32 1, %s28
    $region7: #{tpu_custom_call.1} parent=1 // loop_footer_branch
      %27 = sbr.rel target = $region3
    $region8: #{tpu_custom_call.1} parent=1 // loop_exit
      _
    %1595 = vsyncpa [#allocation4], 1
    %s1596 = scalar_lea.sflag [#allocation4], 1
    %1597 = vsyncpa %s1596, 1
    %1598 = vsyncpa [#allocation7], 1
    %1599 = vsyncpa [#allocation5], 1
    %s1600 = scalar_lea.sflag [#allocation5], 1
    %1601 = vsyncpa %s1600, 1

// kernel: tpu_custom_call.1
$region0: #{tpu_custom_call.1}
  #allocation0 [shape = 'u32[]', space=smem, size = 0x4, offset = 0x4, fixed_abs, tag = 'smem constant byte address 0x4 - core index']
  #allocation1 [shape = 'u32[144,128]{1,0:T(1,128)}', space=vmem, size = 0x12000, scoped, tag = 'internal scratch']
  #allocation2 [shape = 'bf16[8,32]{1,0:T(8,128)(2,1)}', space=vmem, size = 0x800, scoped, tag = 'scratch operand']
  %s0 = inlined_call_operand.vmem [shape: f32[16,32], index: 0, kind: input, shape index: {}]
  %s1 = inlined_call_operand.vmem [shape: f32[1,32], index: 1, kind: input, shape index: {}]
  %s2 = inlined_call_operand.vmem [shape: f32[1,32], index: 2, kind: input, shape index: {}]
  %s3 = inlined_call_operand.vmem [shape: bf16[32,32], index: 3, kind: input, shape index: {}]
  %s4 = inlined_call_operand.hbm [shape: f32[1,32], index: 4, kind: input, shape index: {}]
  %s5 = inlined_call_operand.vmem [shape: bf16[32,32], index: 5, kind: input, shape index: {}]
  %s6 = inlined_call_operand.hbm [shape: f32[1,32], index: 6, kind: input, shape index: {}]
  %s7 = inlined_call_operand.vmem [shape: bf16[32,32], index: 7, kind: input, shape index: {}]
  %s8 = inlined_call_operand.hbm [shape: f32[1,32], index: 8, kind: input, shape index: {}]
  %s9 = inlined_call_operand.vmem [shape: bf16[32,32], index: 9, kind: input, shape index: {}]
  %s10 = inlined_call_operand.vmem [shape: f32[1,32], index: 10, kind: input, shape index: {}]
  %s11 = inlined_call_operand.vmem [shape: f32[1,32], index: 11, kind: input, shape index: {}]
  %s12 = inlined_call_operand.vmem [shape: f32[1,32], index: 12, kind: input, shape index: {}]
  %s13 = inlined_call_operand.vmem [shape: bf16[32,128], index: 13, kind: input, shape index: {}]
  %s14 = inlined_call_operand.vmem [shape: f32[1,128], index: 14, kind: input, shape index: {}]
  %s15 = inlined_call_operand.vmem [shape: bf16[128,32], index: 15, kind: input, shape index: {}]
  %s16 = inlined_call_operand.vmem [shape: f32[1,32], index: 16, kind: input, shape index: {}]
  %s17 = inlined_call_operand.hbm [shape: f32[16,32], index: 17, kind: output, shape index: {}]
  %s18 = sld [smem:[#allocation0]]
  $region113: #{tpu_custom_call.1} parent=0
    _
  %s20 = ssub.s32 1, %s18
  %s21 = scalar_select 0, %s20, %s18
  $region1: #{tpu_custom_call.1} parent=0
    #allocation3 [shape = 'u8[512]{0}', space=vmem, size = 0x400, scoped, tag = 'input window, operand 4, single buffered']
    #allocation4 [shape = 's32[2]{0}', space=sflag, size = 0x8, scoped, tag = 'scoped memory for tpu_custom_call.1']
    #allocation5 [shape = 's32[2]{0}', space=sflag, size = 0x8, scoped, tag = 'scoped memory for tpu_custom_call.1']
    #allocation6 [shape = 'u8[512]{0}', space=vmem, size = 0x400, scoped, tag = 'input window, operand 6, single buffered']
    #allocation7 [shape = 's32[1]{0}', space=sflag, size = 0x4, scoped, tag = 'scoped memory for tpu_custom_call.1']
    #allocation8 [shape = 'u8[512]{0}', space=vmem, size = 0x400, scoped, tag = 'input window, operand 8, single buffered']
    #allocation9 [shape = 'u8[8192]{0}', space=vmem, size = 0x2000, scoped, tag = 'output window, operand 0']
    %22 = vsyncpa [#allocation4], 0
    %23 = vsyncpa [#allocation7], 0
    %24 = vsyncpa [#allocation5], 0
    %s25 = scalar_lea.sflag [#allocation5], 1
    %26 = vsyncpa %s25, 0
    loop: start=0, step=1, limit=4
    $region2: #{tpu_custom_call.1} parent=1 // loop_pre_header
      _
    $region3: #{tpu_custom_call.1} parent=1 // loop_header
      %s28 = sphi 0, %s32
      %p29 = scmp.ge.s32.totalorder %s28, 4
      %s38 = sphi 0, %s40
      %s41 = sphi 0, %s38
      %s42 = sphi 0, %s41
      %s58 = sphi 0, %s42
      %s62 = sphi 0, %s62
      %s64 = sphi 0, %s62
      %s65 = sphi 0, %s64
      %s79 = sphi 0, %s65
      %s83 = sphi 0, %s83
      %s85 = sphi 0, %s83
      %s86 = sphi 0, %s85
      %s100 = sphi 0, %s86
      %s104 = sphi 0, %s104
      %s106 = sphi 0, %s104
      %s107 = sphi 0, %s106
      %s121 = sphi 0, %s107
      %s125 = sphi 0, %s125
      %s127 = sphi 0, %s125
      %s128 = sphi 0, %s127
      %s142 = sphi 0, %s128
      %s146 = sphi 0, %s146
      %s148 = sphi 0, %s146
      %s149 = sphi 0, %s148
      %s163 = sphi 0, %s149
      %s167 = sphi 0, %s167
      %s169 = sphi 0, %s167
      %s170 = sphi 0, %s169
      %s184 = sphi 0, %s170
      %s188 = sphi 0, %s188
      %s190 = sphi 0, %s188
      %s191 = sphi 0, %s190
      %s205 = sphi 0, %s191
      %s209 = sphi 0, %s209
      %s211 = sphi 0, %s209
      %s212 = sphi 0, %s211
      %s226 = sphi 0, %s212
      %s230 = sphi 0, %s230
      %s232 = sphi 0, %s230
      %s233 = sphi 0, %s232
      %s247 = sphi 0, %s233
      %s251 = sphi 0, %s251
      %s253 = sphi 0, %s251
      %s254 = sphi 0, %s253
      %s268 = sphi 0, %s254
      %s272 = sphi 0, %s272
      %s274 = sphi 0, %s272
      %s275 = sphi 0, %s274
      %s289 = sphi 0, %s275
      %s293 = sphi 0, %s293
      %s295 = sphi 0, %s293
      %s296 = sphi 0, %s295
      %s310 = sphi 0, %s296
      %s314 = sphi 0, %s314
      %s316 = sphi 0, %s314
      %s317 = sphi 0, %s316
      %s331 = sphi 0, %s317
      %s335 = sphi 0, %s335
      %s337 = sphi 0, %s335
      %s338 = sphi 0, %s337
      %s352 = sphi 0, %s338
      %s356 = sphi 0, %s356
      %s358 = sphi 0, %s356
      %s359 = sphi 0, %s358
      %s373 = sphi 0, %s359
      %s377 = sphi 0, %s377
      %s379 = sphi 0, %s377
      %s380 = sphi 0, %s379
      %s394 = sphi 0, %s380
      %s400 = sphi 0, %s402
      %s403 = sphi 0, %s400
      %s404 = sphi 0, %s403
      %s420 = sphi 0, %s404
    $region4: #{tpu_custom_call.1} parent=1 // loop_header_branch
      %31 = sbr.rel (%p29) target = $region8
    $region5: #{tpu_custom_call.1} parent=1 // loop_body
      %s33 = ssub.s32 %s28, 1
      %s34 = ssub.s32 %s28, 2
      %s35 = sadd.s32 %s28, 1
      %s36 = ssub.s32 %s28, %s35
      %p37 = scmp.eq.s32.totalorder %s36, 0
      %s39 = sadd.s32 %s38, 1
      %s40 = scalar_select %p37, %s38, %s39
      %p43 = pneg %p37
      %p44 = scmp.eq.s32.totalorder %s28, 1
      %p45 = por %p43, %p44
      %p46 = scmp.ne.s32.totalorder %s38, %s41
      %p47 = scmp.eq.s32.totalorder %s28, 0
      %p48 = por %p46, %p47
      %p49 = scmp.ne.s32.totalorder %s38, %s41
      %p50 = scmp.eq.s32.totalorder %s33, 1
      %p51 = por %p49, %p50
      %p52 = scmp.ne.s32.totalorder %s41, %s42
      %p53 = scmp.eq.s32.totalorder %s33, 0
      %p54 = por %p52, %p53
      %p55 = scmp.ne.s32.totalorder %s41, %s42
      %p56 = scmp.eq.s32.totalorder %s34, 1
      %p57 = por %p55, %p56
      %p59 = scmp.ne.s32.totalorder %s42, %s58
      %p60 = scmp.eq.s32.totalorder %s34, 0
      %p61 = por %p59, %p60
      %s63 = sadd.s32 %s62, 1
      %p66 = scmp.eq.s32.totalorder %s28, 1
      %p67 = scmp.ne.s32.totalorder %s62, %s64
      %p68 = scmp.eq.s32.totalorder %s28, 0
      %p69 = por %p67, %p68
      %p70 = scmp.ne.s32.totalorder %s62, %s64
      %p71 = scmp.eq.s32.totalorder %s33, 1
      %p72 = por %p70, %p71
      %p73 = scmp.ne.s32.totalorder %s64, %s65
      %p74 = scmp.eq.s32.totalorder %s33, 0
      %p75 = por %p73, %p74
      %p76 = scmp.ne.s32.totalorder %s64, %s65
      %p77 = scmp.eq.s32.totalorder %s34, 1
      %p78 = por %p76, %p77
      %p80 = scmp.ne.s32.totalorder %s65, %s79
      %p81 = scmp.eq.s32.totalorder %s34, 0
      %p82 = por %p80, %p81
      %s84 = sadd.s32 %s83, 1
      %p87 = scmp.eq.s32.totalorder %s28, 1
      %p88 = scmp.ne.s32.totalorder %s83, %s85
      %p89 = scmp.eq.s32.totalorder %s28, 0
      %p90 = por %p88, %p89
      %p91 = scmp.ne.s32.totalorder %s83, %s85
      %p92 = scmp.eq.s32.totalorder %s33, 1
      %p93 = por %p91, %p92
      %p94 = scmp.ne.s32.totalorder %s85, %s86
      %p95 = scmp.eq.s32.totalorder %s33, 0
      %p96 = por %p94, %p95
      %p97 = scmp.ne.s32.totalorder %s85, %s86
      %p98 = scmp.eq.s32.totalorder %s34, 1
      %p99 = por %p97, %p98
      %p101 = scmp.ne.s32.totalorder %s86, %s100
      %p102 = scmp.eq.s32.totalorder %s34, 0
      %p103 = por %p101, %p102
      %s105 = sadd.s32 %s104, 1
      %p108 = scmp.eq.s32.totalorder %s28, 1
      %p109 = scmp.ne.s32.totalorder %s104, %s106
      %p110 = scmp.eq.s32.totalorder %s28, 0
      %p111 = por %p109, %p110
      %p112 = scmp.ne.s32.totalorder %s104, %s106
      %p113 = scmp.eq.s32.totalorder %s33, 1
      %p114 = por %p112, %p113
      %p115 = scmp.ne.s32.totalorder %s106, %s107
      %p116 = scmp.eq.s32.totalorder %s33, 0
      %p117 = por %p115, %p116
      %p118 = scmp.ne.s32.totalorder %s106, %s107
      %p119 = scmp.eq.s32.totalorder %s34, 1
      %p120 = por %p118, %p119
      %p122 = scmp.ne.s32.totalorder %s107, %s121
      %p123 = scmp.eq.s32.totalorder %s34, 0
      %p124 = por %p122, %p123
      %s126 = sadd.s32 %s125, 1
      %p129 = scmp.eq.s32.totalorder %s28, 1
      %p130 = scmp.ne.s32.totalorder %s125, %s127
      %p131 = scmp.eq.s32.totalorder %s28, 0
      %p132 = por %p130, %p131
      %p133 = scmp.ne.s32.totalorder %s125, %s127
      %p134 = scmp.eq.s32.totalorder %s33, 1
      %p135 = por %p133, %p134
      %p136 = scmp.ne.s32.totalorder %s127, %s128
      %p137 = scmp.eq.s32.totalorder %s33, 0
      %p138 = por %p136, %p137
      %p139 = scmp.ne.s32.totalorder %s127, %s128
      %p140 = scmp.eq.s32.totalorder %s34, 1
      %p141 = por %p139, %p140
      %p143 = scmp.ne.s32.totalorder %s128, %s142
      %p144 = scmp.eq.s32.totalorder %s34, 0
      %p145 = por %p143, %p144
      %s147 = sadd.s32 %s146, 1
      %p150 = scmp.eq.s32.totalorder %s28, 1
      %p151 = scmp.ne.s32.totalorder %s146, %s148
      %p152 = scmp.eq.s32.totalorder %s28, 0
      %p153 = por %p151, %p152
      %p154 = scmp.ne.s32.totalorder %s146, %s148
      %p155 = scmp.eq.s32.totalorder %s33, 1
      %p156 = por %p154, %p155
      %p157 = scmp.ne.s32.totalorder %s148, %s149
      %p158 = scmp.eq.s32.totalorder %s33, 0
      %p159 = por %p157, %p158
      %p160 = scmp.ne.s32.totalorder %s148, %s149
      %p161 = scmp.eq.s32.totalorder %s34, 1
      %p162 = por %p160, %p161
      %p164 = scmp.ne.s32.totalorder %s149, %s163
      %p165 = scmp.eq.s32.totalorder %s34, 0
      %p166 = por %p164, %p165
      %s168 = sadd.s32 %s167, 1
      %p171 = scmp.eq.s32.totalorder %s28, 1
      %p172 = scmp.ne.s32.totalorder %s167, %s169
      %p173 = scmp.eq.s32.totalorder %s28, 0
      %p174 = por %p172, %p173
      %p175 = scmp.ne.s32.totalorder %s167, %s169
      %p176 = scmp.eq.s32.totalorder %s33, 1
      %p177 = por %p175, %p176
      %p178 = scmp.ne.s32.totalorder %s169, %s170
      %p179 = scmp.eq.s32.totalorder %s33, 0
      %p180 = por %p178, %p179
      %p181 = scmp.ne.s32.totalorder %s169, %s170
      %p182 = scmp.eq.s32.totalorder %s34, 1
      %p183 = por %p181, %p182
      %p185 = scmp.ne.s32.totalorder %s170, %s184
      %p186 = scmp.eq.s32.totalorder %s34, 0
      %p187 = por %p185, %p186
      %s189 = sadd.s32 %s188, 1
      %p192 = scmp.eq.s32.totalorder %s28, 1
      %p193 = scmp.ne.s32.totalorder %s188, %s190
      %p194 = scmp.eq.s32.totalorder %s28, 0
      %p195 = por %p193, %p194
      %p196 = scmp.ne.s32.totalorder %s188, %s190
      %p197 = scmp.eq.s32.totalorder %s33, 1
      %p198 = por %p196, %p197
      %p199 = scmp.ne.s32.totalorder %s190, %s191
      %p200 = scmp.eq.s32.totalorder %s33, 0
      %p201 = por %p199, %p200
      %p202 = scmp.ne.s32.totalorder %s190, %s191
      %p203 = scmp.eq.s32.totalorder %s34, 1
      %p204 = por %p202, %p203
      %p206 = scmp.ne.s32.totalorder %s191, %s205
      %p207 = scmp.eq.s32.totalorder %s34, 0
      %p208 = por %p206, %p207
      %s210 = sadd.s32 %s209, 1
      %p213 = scmp.eq.s32.totalorder %s28, 1
      %p214 = scmp.ne.s32.totalorder %s209, %s211
      %p215 = scmp.eq.s32.totalorder %s28, 0
      %p216 = por %p214, %p215
      %p217 = scmp.ne.s32.totalorder %s209, %s211
      %p218 = scmp.eq.s32.totalorder %s33, 1
      %p219 = por %p217, %p218
      %p220 = scmp.ne.s32.totalorder %s211, %s212
      %p221 = scmp.eq.s32.totalorder %s33, 0
      %p222 = por %p220, %p221
      %p223 = scmp.ne.s32.totalorder %s211, %s212
      %p224 = scmp.eq.s32.totalorder %s34, 1
      %p225 = por %p223, %p224
      %p227 = scmp.ne.s32.totalorder %s212, %s226
      %p228 = scmp.eq.s32.totalorder %s34, 0
      %p229 = por %p227, %p228
      %s231 = sadd.s32 %s230, 1
      %p234 = scmp.eq.s32.totalorder %s28, 1
      %p235 = scmp.ne.s32.totalorder %s230, %s232
      %p236 = scmp.eq.s32.totalorder %s28, 0
      %p237 = por %p235, %p236
      %p238 = scmp.ne.s32.totalorder %s230, %s232
      %p239 = scmp.eq.s32.totalorder %s33, 1
      %p240 = por %p238, %p239
      %p241 = scmp.ne.s32.totalorder %s232, %s233
      %p242 = scmp.eq.s32.totalorder %s33, 0
      %p243 = por %p241, %p242
      %p244 = scmp.ne.s32.totalorder %s232, %s233
      %p245 = scmp.eq.s32.totalorder %s34, 1
      %p246 = por %p244, %p245
      %p248 = scmp.ne.s32.totalorder %s233, %s247
      %p249 = scmp.eq.s32.totalorder %s34, 0
      %p250 = por %p248, %p249
      %s252 = sadd.s32 %s251, 1
      %p255 = scmp.eq.s32.totalorder %s28, 1
      %p256 = scmp.ne.s32.totalorder %s251, %s253
      %p257 = scmp.eq.s32.totalorder %s28, 0
      %p258 = por %p256, %p257
      %p259 = scmp.ne.s32.totalorder %s251, %s253
      %p260 = scmp.eq.s32.totalorder %s33, 1
      %p261 = por %p259, %p260
      %p262 = scmp.ne.s32.totalorder %s253, %s254
      %p263 = scmp.eq.s32.totalorder %s33, 0
      %p264 = por %p262, %p263
      %p265 = scmp.ne.s32.totalorder %s253, %s254
      %p266 = scmp.eq.s32.totalorder %s34, 1
      %p267 = por %p265, %p266
      %p269 = scmp.ne.s32.totalorder %s254, %s268
      %p270 = scmp.eq.s32.totalorder %s34, 0
      %p271 = por %p269, %p270
      %s273 = sadd.s32 %s272, 1
      %p276 = scmp.eq.s32.totalorder %s28, 1
      %p277 = scmp.ne.s32.totalorder %s272, %s274
      %p278 = scmp.eq.s32.totalorder %s28, 0
      %p279 = por %p277, %p278
      %p280 = scmp.ne.s32.totalorder %s272, %s274
      %p281 = scmp.eq.s32.totalorder %s33, 1
      %p282 = por %p280, %p281
      %p283 = scmp.ne.s32.totalorder %s274, %s275
      %p284 = scmp.eq.s32.totalorder %s33, 0
      %p285 = por %p283, %p284
      %p286 = scmp.ne.s32.totalorder %s274, %s275
      %p287 = scmp.eq.s32.totalorder %s34, 1
      %p288 = por %p286, %p287
      %p290 = scmp.ne.s32.totalorder %s275, %s289
      %p291 = scmp.eq.s32.totalorder %s34, 0
      %p292 = por %p290, %p291
      %s294 = sadd.s32 %s293, 1
      %p297 = scmp.eq.s32.totalorder %s28, 1
      %p298 = scmp.ne.s32.totalorder %s293, %s295
      %p299 = scmp.eq.s32.totalorder %s28, 0
      %p300 = por %p298, %p299
      %p301 = scmp.ne.s32.totalorder %s293, %s295
      %p302 = scmp.eq.s32.totalorder %s33, 1
      %p303 = por %p301, %p302
      %p304 = scmp.ne.s32.totalorder %s295, %s296
      %p305 = scmp.eq.s32.totalorder %s33, 0
      %p306 = por %p304, %p305
      %p307 = scmp.ne.s32.totalorder %s295, %s296
      %p308 = scmp.eq.s32.totalorder %s34, 1
      %p309 = por %p307, %p308
      %p311 = scmp.ne.s32.totalorder %s296, %s310
      %p312 = scmp.eq.s32.totalorder %s34, 0
      %p313 = por %p311, %p312
      %s315 = sadd.s32 %s314, 1
      %p318 = scmp.eq.s32.totalorder %s28, 1
      %p319 = scmp.ne.s32.totalorder %s314, %s316
      %p320 = scmp.eq.s32.totalorder %s28, 0
      %p321 = por %p319, %p320
      %p322 = scmp.ne.s32.totalorder %s314, %s316
      %p323 = scmp.eq.s32.totalorder %s33, 1
      %p324 = por %p322, %p323
      %p325 = scmp.ne.s32.totalorder %s316, %s317
      %p326 = scmp.eq.s32.totalorder %s33, 0
      %p327 = por %p325, %p326
      %p328 = scmp.ne.s32.totalorder %s316, %s317
      %p329 = scmp.eq.s32.totalorder %s34, 1
      %p330 = por %p328, %p329
      %p332 = scmp.ne.s32.totalorder %s317, %s331
      %p333 = scmp.eq.s32.totalorder %s34, 0
      %p334 = por %p332, %p333
      %s336 = sadd.s32 %s335, 1
      %p339 = scmp.eq.s32.totalorder %s28, 1
      %p340 = scmp.ne.s32.totalorder %s335, %s337
      %p341 = scmp.eq.s32.totalorder %s28, 0
      %p342 = por %p340, %p341
      %p343 = scmp.ne.s32.totalorder %s335, %s337
      %p344 = scmp.eq.s32.totalorder %s33, 1
      %p345 = por %p343, %p344
      %p346 = scmp.ne.s32.totalorder %s337, %s338
      %p347 = scmp.eq.s32.totalorder %s33, 0
      %p348 = por %p346, %p347
      %p349 = scmp.ne.s32.totalorder %s337, %s338
      %p350 = scmp.eq.s32.totalorder %s34, 1
      %p351 = por %p349, %p350
      %p353 = scmp.ne.s32.totalorder %s338, %s352
      %p354 = scmp.eq.s32.totalorder %s34, 0
      %p355 = por %p353, %p354
      %s357 = sadd.s32 %s356, 1
      %p360 = scmp.eq.s32.totalorder %s28, 1
      %p361 = scmp.ne.s32.totalorder %s356, %s358
      %p362 = scmp.eq.s32.totalorder %s28, 0
      %p363 = por %p361, %p362
      %p364 = scmp.ne.s32.totalorder %s356, %s358
      %p365 = scmp.eq.s32.totalorder %s33, 1
      %p366 = por %p364, %p365
      %p367 = scmp.ne.s32.totalorder %s358, %s359
      %p368 = scmp.eq.s32.totalorder %s33, 0
      %p369 = por %p367, %p368
      %p370 = scmp.ne.s32.totalorder %s358, %s359
      %p371 = scmp.eq.s32.totalorder %s34, 1
      %p372 = por %p370, %p371
      %p374 = scmp.ne.s32.totalorder %s359, %s373
      %p375 = scmp.eq.s32.totalorder %s34, 0
      %p376 = por %p374, %p375
      %s378 = sadd.s32 %s377, 1
      %p381 = scmp.eq.s32.totalorder %s28, 1
      %p382 = scmp.ne.s32.totalorder %s377, %s379
      %p383 = scmp.eq.s32.totalorder %s28, 0
      %p384 = por %p382, %p383
      %p385 = scmp.ne.s32.totalorder %s377, %s379
      %p386 = scmp.eq.s32.totalorder %s33, 1
      %p387 = por %p385, %p386
      %p388 = scmp.ne.s32.totalorder %s379, %s380
      %p389 = scmp.eq.s32.totalorder %s33, 0
      %p390 = por %p388, %p389
      %p391 = scmp.ne.s32.totalorder %s379, %s380
      %p392 = scmp.eq.s32.totalorder %s34, 1
      %p393 = por %p391, %p392
      %p395 = scmp.ne.s32.totalorder %s380, %s394
      %p396 = scmp.eq.s32.totalorder %s34, 0
      %p397 = por %p395, %p396
      %s398 = ssub.s32 %s28, %s35
      %p399 = scmp.eq.s32.totalorder %s398, 0
      %s401 = sadd.s32 %s400, 1
      %s402 = scalar_select %p399, %s400, %s401
      %p405 = pneg %p399
      %p406 = scmp.eq.s32.totalorder %s28, 1
      %p407 = por %p405, %p406
      %p408 = scmp.ne.s32.totalorder %s400, %s403
      %p409 = scmp.eq.s32.totalorder %s28, 0
      %p410 = por %p408, %p409
      %p411 = scmp.ne.s32.totalorder %s400, %s403
      %p412 = scmp.eq.s32.totalorder %s33, 1
      %p413 = por %p411, %p412
      %p414 = scmp.ne.s32.totalorder %s403, %s404
      %p415 = scmp.eq.s32.totalorder %s33, 0
      %p416 = por %p414, %p415
      %p417 = scmp.ne.s32.totalorder %s403, %s404
      %p418 = scmp.eq.s32.totalorder %s34, 1
      %p419 = por %p417, %p418
      %p421 = scmp.ne.s32.totalorder %s404, %s420
      %p422 = scmp.eq.s32.totalorder %s34, 0
      %p423 = por %p421, %p422
      %p424 = scmp.le.s32.totalorder 1, %s28
      %p425 = scmp.lt.s32.totalorder %s28, 3
      %p426 = pnand %p424, %p425
      %p427 = pneg %p426
      // Predicated region
      $region9: #{tpu_custom_call.1} parent=5 // pred_check
        _
      $region10: #{tpu_custom_call.1} parent=5 // pred_check_branch
        %429 = sbr.rel (%p426) target = $region12
      $region11: #{tpu_custom_call.1} parent=5 // pred_region
        %s430 = ssub.s32 %s28, 1
        // Predicated region
        $region13: #{tpu_custom_call.1} parent=11 // pred_check
          %p431 = pneg %p75
        $region14: #{tpu_custom_call.1} parent=11 // pred_check_branch
          %433 = sbr.rel (%p431) target = $region16
        $region15: #{tpu_custom_call.1} parent=11 // pred_region
          _
        $region16: #{tpu_custom_call.1} parent=11 // pred_fallthru
          _
        // Predicated region
        $region17: #{tpu_custom_call.1} parent=11 // pred_check
          %p434 = pneg %p96
        $region18: #{tpu_custom_call.1} parent=11 // pred_check_branch
          %436 = sbr.rel (%p434) target = $region20
        $region19: #{tpu_custom_call.1} parent=11 // pred_region
          _
        $region20: #{tpu_custom_call.1} parent=11 // pred_fallthru
          _
        // Predicated region
        $region21: #{tpu_custom_call.1} parent=11 // pred_check
          %p437 = pneg %p117
        $region22: #{tpu_custom_call.1} parent=11 // pred_check_branch
          %439 = sbr.rel (%p437) target = $region24
        $region23: #{tpu_custom_call.1} parent=11 // pred_region
          _
        $region24: #{tpu_custom_call.1} parent=11 // pred_fallthru
          _
        // Predicated region
        $region25: #{tpu_custom_call.1} parent=11 // pred_check
          %p440 = pneg %p138
        $region26: #{tpu_custom_call.1} parent=11 // pred_check_branch
          %442 = sbr.rel (%p440) target = $region28
        $region27: #{tpu_custom_call.1} parent=11 // pred_region
          %s444 = ssub.s32 16, 16
          %445 = vsyncadd [#allocation4], %s444
          %s447 = sshll.u32 [#allocation3], 4
          %s448 = int_to_ptr.vmem [resolvable:$true] %s447
          %450 = dma.hbm_to_vmem [thread:$0]  %s4, 16, %s448, [#allocation4]
        $region28: #{tpu_custom_call.1} parent=11 // pred_fallthru
          _
        // Predicated region
        $region29: #{tpu_custom_call.1} parent=11 // pred_check
          %p451 = pneg %p159
        $region30: #{tpu_custom_call.1} parent=11 // pred_check_branch
          %453 = sbr.rel (%p451) target = $region32
        $region31: #{tpu_custom_call.1} parent=11 // pred_region
          _
        $region32: #{tpu_custom_call.1} parent=11 // pred_fallthru
          _
        // Predicated region
        $region33: #{tpu_custom_call.1} parent=11 // pred_check
          %p454 = pneg %p180
        $region34: #{tpu_custom_call.1} parent=11 // pred_check_branch
          %456 = sbr.rel (%p454) target = $region36
        $region35: #{tpu_custom_call.1} parent=11 // pred_region
          %s458 = ssub.s32 16, 16
          %459 = vsyncadd [#allocation7], %s458
          %s461 = sshll.u32 [#allocation6], 4
          %s462 = int_to_ptr.vmem [resolvable:$true] %s461
          %464 = dma.hbm_to_vmem [thread:$0]  %s6, 16, %s462, [#allocation7]
        $region36: #{tpu_custom_call.1} parent=11 // pred_fallthru
          _
        // Predicated region
        $region37: #{tpu_custom_call.1} parent=11 // pred_check
          %p465 = pneg %p201
        $region38: #{tpu_custom_call.1} parent=11 // pred_check_branch
          %467 = sbr.rel (%p465) target = $region40
        $region39: #{tpu_custom_call.1} parent=11 // pred_region
          _
        $region40: #{tpu_custom_call.1} parent=11 // pred_fallthru
          _
        // Predicated region
        $region41: #{tpu_custom_call.1} parent=11 // pred_check
          %p468 = pneg %p222
        $region42: #{tpu_custom_call.1} parent=11 // pred_check_branch
          %470 = sbr.rel (%p468) target = $region44
        $region43: #{tpu_custom_call.1} parent=11 // pred_region
          %s472 = ssub.s32 16, 16
          %473 = vsyncadd [#allocation7], %s472
          %s475 = sshll.u32 [#allocation8], 4
          %s476 = int_to_ptr.vmem [resolvable:$true] %s475
          %478 = dma.hbm_to_vmem [thread:$0]  %s8, 16, %s476, [#allocation7]
        $region44: #{tpu_custom_call.1} parent=11 // pred_fallthru
          _
        // Predicated region
        $region45: #{tpu_custom_call.1} parent=11 // pred_check
          %p479 = pneg %p243
        $region46: #{tpu_custom_call.1} parent=11 // pred_check_branch
          %481 = sbr.rel (%p479) target = $region48
        $region47: #{tpu_custom_call.1} parent=11 // pred_region
          _
        $region48: #{tpu_custom_call.1} parent=11 // pred_fallthru
          _
        // Predicated region
        $region49: #{tpu_custom_call.1} parent=11 // pred_check
          %p482 = pneg %p264
        $region50: #{tpu_custom_call.1} parent=11 // pred_check_branch
          %484 = sbr.rel (%p482) target = $region52
        $region51: #{tpu_custom_call.1} parent=11 // pred_region
          _
        $region52: #{tpu_custom_call.1} parent=11 // pred_fallthru
          _
        // Predicated region
        $region53: #{tpu_custom_call.1} parent=11 // pred_check
          %p485 = pneg %p285
        $region54: #{tpu_custom_call.1} parent=11 // pred_check_branch
          %487 = sbr.rel (%p485) target = $region56
        $region55: #{tpu_custom_call.1} parent=11 // pred_region
          _
        $region56: #{tpu_custom_call.1} parent=11 // pred_fallthru
          _
        // Predicated region
        $region57: #{tpu_custom_call.1} parent=11 // pred_check
          %p488 = pneg %p306
        $region58: #{tpu_custom_call.1} parent=11 // pred_check_branch
          %490 = sbr.rel (%p488) target = $region60
        $region59: #{tpu_custom_call.1} parent=11 // pred_region
          _
        $region60: #{tpu_custom_call.1} parent=11 // pred_fallthru
          _
        // Predicated region
        $region61: #{tpu_custom_call.1} parent=11 // pred_check
          %p491 = pneg %p327
        $region62: #{tpu_custom_call.1} parent=11 // pred_check_branch
          %493 = sbr.rel (%p491) target = $region64
        $region63: #{tpu_custom_call.1} parent=11 // pred_region
          _
        $region64: #{tpu_custom_call.1} parent=11 // pred_fallthru
          _
        // Predicated region
        $region65: #{tpu_custom_call.1} parent=11 // pred_check
          %p494 = pneg %p348
        $region66: #{tpu_custom_call.1} parent=11 // pred_check_branch
          %496 = sbr.rel (%p494) target = $region68
        $region67: #{tpu_custom_call.1} parent=11 // pred_region
          _
        $region68: #{tpu_custom_call.1} parent=11 // pred_fallthru
          _
        // Predicated region
        $region69: #{tpu_custom_call.1} parent=11 // pred_check
          %p497 = pneg %p369
        $region70: #{tpu_custom_call.1} parent=11 // pred_check_branch
          %499 = sbr.rel (%p497) target = $region72
        $region71: #{tpu_custom_call.1} parent=11 // pred_region
          _
        $region72: #{tpu_custom_call.1} parent=11 // pred_fallthru
          _
        // Predicated region
        $region73: #{tpu_custom_call.1} parent=11 // pred_check
          %p500 = pneg %p390
        $region74: #{tpu_custom_call.1} parent=11 // pred_check_branch
          %502 = sbr.rel (%p500) target = $region76
        $region75: #{tpu_custom_call.1} parent=11 // pred_region
          _
        $region76: #{tpu_custom_call.1} parent=11 // pred_fallthru
          _
      $region12: #{tpu_custom_call.1} parent=5 // pred_fallthru
        _
      %p503 = scmp.lt.s32.totalorder %s28, 2
      // Predicated region
      $region77: #{tpu_custom_call.1} parent=5 // pred_check
        %p504 = pneg %p503
      $region78: #{tpu_custom_call.1} parent=5 // pred_check_branch
        %506 = sbr.rel (%p504) target = $region80
      $region79: #{tpu_custom_call.1} parent=5 // pred_region
        // Predicated region
        $region81: #{tpu_custom_call.1} parent=79 // pred_check
          %p507 = pneg %p48
        $region82: #{tpu_custom_call.1} parent=79 // pred_check_branch
          %509 = sbr.rel (%p507) target = $region84
        $region83: #{tpu_custom_call.1} parent=79 // pred_region
          %p510 = scmp.lt.s32.totalorder %s28, 1
          %s511 = scalar_select %p510, %s28, 1
          %s512 = smul.addr %s511, 8
          %s513 = scalar_lea.vmem %s0, %s512
        $region84: #{tpu_custom_call.1} parent=79 // pred_fallthru
          _
      $region80: #{tpu_custom_call.1} parent=5 // pred_fallthru
        _
      %p514 = scmp.le.s32.totalorder 1, %s28
      %p515 = scmp.lt.s32.totalorder %s28, 3
      %p516 = pnand %p514, %p515
      %p517 = pneg %p516
      // Predicated region
      $region85: #{tpu_custom_call.1} parent=5 // pred_check
        _
      $region86: #{tpu_custom_call.1} parent=5 // pred_check_branch
        %519 = sbr.rel (%p516) target = $region88
      $region87: #{tpu_custom_call.1} parent=5 // pred_region
        %s520 = ssub.s32 %s28, 1
        // Predicated region
        $region89: #{tpu_custom_call.1} parent=87 // pred_check
          %p521 = pneg %p138
        $region90: #{tpu_custom_call.1} parent=87 // pred_check_branch
          %523 = sbr.rel (%p521) target = $region92
        $region91: #{tpu_custom_call.1} parent=87 // pred_region
          %524 = dma.done [#allocation4], 16
        $region92: #{tpu_custom_call.1} parent=87 // pred_fallthru
          _
        // Predicated region
        $region93: #{tpu_custom_call.1} parent=87 // pred_check
          %p525 = pneg %p180
        $region94: #{tpu_custom_call.1} parent=87 // pred_check_branch
          %527 = sbr.rel (%p525) target = $region96
        $region95: #{tpu_custom_call.1} parent=87 // pred_region
          %528 = dma.done [#allocation7], 16
        $region96: #{tpu_custom_call.1} parent=87 // pred_fallthru
          _
        // Predicated region
        $region97: #{tpu_custom_call.1} parent=87 // pred_check
          %p529 = pneg %p222
        $region98: #{tpu_custom_call.1} parent=87 // pred_check_branch
          %531 = sbr.rel (%p529) target = $region100
        $region99: #{tpu_custom_call.1} parent=87 // pred_region
          %532 = dma.done [#allocation7], 16
        $region100: #{tpu_custom_call.1} parent=87 // pred_fallthru
          _
        %p533 = scmp.lt.s32.totalorder %s33, 1
        %s534 = scalar_select %p533, %s33, 1
        %s535 = smul.addr %s534, 8
        %s536 = scalar_lea.vmem %s0, %s535
        %p537 = pneg %p54
        %p538 = pneg %p51
        %p539 = pneg %p75
        %p540 = pneg %p72
        %p541 = pneg %p96
        %p542 = pneg %p93
        %p543 = pneg %p117
        %p544 = pneg %p114
        %p545 = pneg %p138
        %p546 = pneg %p135
        %p547 = pneg %p159
        %p548 = pneg %p156
        %p549 = pneg %p180
        %p550 = pneg %p177
        %p551 = pneg %p201
        %p552 = pneg %p198
        %p553 = pneg %p222
        %p554 = pneg %p219
        %p555 = pneg %p243
        %p556 = pneg %p240
        %p557 = pneg %p264
        %p558 = pneg %p261
        %p559 = pneg %p285
        %p560 = pneg %p282
        %p561 = pneg %p306
        %p562 = pneg %p303
        %p563 = pneg %p327
        %p564 = pneg %p324
        %p565 = pneg %p348
        %p566 = pneg %p345
        %p567 = pneg %p369
        %p568 = pneg %p366
        %p569 = pneg %p390
        %p570 = pneg %p387
        %p571 = pneg %p416
        %p572 = pneg %p413
        %s573 = sand.u32 %s403, 1
        %s574 = scalar_lea.sflag [#allocation5], %s573
        %s575 = sand.u32 %s403, 1
        %s576 = smul.addr %s575, 8
        %s577 = scalar_lea.vmem [#allocation9], %s576
        %p578 = scmp.lt.s32.totalorder %s33, 1
        %s579 = scalar_select %p578, %s33, 1
        %s580 = smul.addr %s579, 8
        %s581 = scalar_lea.vmem %s0, %s580
        %v583 = vld [vmem:[%s1] sm:$0x1]
        %v584 = vld [vmem:[%s2] sm:$0x1]
        %v585 = vld [vmem:[%s11] sm:$0x1]
        %v586 = vld [vmem:[%s12] sm:$0x1]
        %v587 = vld [vmem:[#allocation3] sm:$0x1]
        %v588 = vld [vmem:[#allocation6] sm:$0x1]
        %v589 = vld [vmem:[#allocation8] sm:$0x1]
        %v590 = vld [vmem:[%s10] sm:$0x1]
        %v591 = vld [vmem:[%s14] sm:$0x1]
        %v592 = vld [vmem:[%s16] sm:$0x1]
        %v593 = vld [vmem:[%s581] sm:$0xff]
        %vm594 = vcmask 261120
        %v595 = vsel %vm594, %v593, 0.0
        %596 = vadd.xlane.f32.xlu0 %v595
        %v597 = vpop.xlane.xlu0 %596
        %v598 = vrcp.pop 32.0
        %v599 = vmul.f32 %v597, %v598
        %v600 = vsub.f32 %v593, %v599
        %v601 = vmul.f32 %v600, %v600
        %v602 = vsel %vm594, %v601, 0.0
        %603 = vadd.xlane.f32.xlu0 %v602
        %v604 = vpop.xlane.xlu0 %603
        %v605 = vmul.f32 %v604, %v598
        %v606 = vadd.f32 %v605, 1e-05
        %v607 = vrsqrt.pop %v606
        %v608 = vmul.f32 %v600, %v607
        %v610 = vlaneseq
        %v611 = vshrl.u32 %v610, 7
        %v612 = vsub.s32 0, %v611
        %v613 = vrot.slane %v583, %v612
        %v615 = vmul.f32 %v608, %v613
        %v617 = vlaneseq
        %v618 = vshrl.u32 %v617, 7
        %v619 = vsub.s32 0, %v618
        %v620 = vrot.slane %v584, %v619
        %v622 = vadd.f32 %v615, %v620
        %v623 = vpack.c.bf16 %v622, %v622
        %v624 = vld [vmem:[%s3] sm:$0xf]
        %v625 = vld [vmem:[%s3 + $0x4] sm:$0xf]
        %v626 = vld [vmem:[%s3 + $0x8] sm:$0xf]
        %v627 = vld [vmem:[%s3 + $0xc] sm:$0xf]
        %v629 = vlaneseq
        %v630 = vshrl.u32 %v629, 7
        %v631 = vsub.s32 0, %v630
        %v632 = vrot.slane %v587, %v631
        %v638 = vunpack.c.l.b16 %v624
        %v639 = vunpack.c.l.b16 %v625
        %v640 = vunpack.c.l.b16 %v626
        %v641 = vunpack.c.l.b16 %v627
        %v642 = vpack.c.b16 %v639, %v638
        %v643 = vpack.c.b16 %v641, %v640
        %v647 = vsel %vm594, %v623, 0
        %649 = vmatprep.subr.bf16.mxu0 0
        %650 = vmatpush1.bf16.msra.mxu0 %v642
        %651 = vmatprep.subr.bf16.mxu0 0
        %652 = vmatpush1.bf16.msra.mxu0 %v643
        %653 = vmatprep.subr.bf16.mxu0 0
        %654 = vmatpush1.bf16.msra.mxu0 0
        %655 = vmatprep.subr.bf16.mxu0 0
        %656 = vmatpush1.bf16.msra.mxu0 0
        %657 = vmatprep.subr.bf16.mxu0 0
        %658 = vmatpush1.bf16.msra.mxu0 0
        %659 = vmatprep.subr.bf16.mxu0 0
        %660 = vmatpush1.bf16.msra.mxu0 0
        %661 = vmatprep.subr.bf16.mxu0 0
        %662 = vmatpush1.bf16.msra.mxu0 0
        %663 = vmatprep.subr.bf16.mxu0 0
        %664 = vmatpush1.bf16.msra.mxu0 0
        %665 = vmatprep.subr.bf16.mxu0 0
        %666 = vmatpush1.bf16.msra.mxu0 0
        %667 = vmatprep.subr.bf16.mxu0 0
        %668 = vmatpush1.bf16.msra.mxu0 0
        %669 = vmatprep.subr.bf16.mxu0 0
        %670 = vmatpush1.bf16.msra.mxu0 0
        %671 = vmatprep.subr.bf16.mxu0 0
        %672 = vmatpush1.bf16.msra.mxu0 0
        %673 = vmatprep.subr.bf16.mxu0 0
        %674 = vmatpush1.bf16.msra.mxu0 0
        %675 = vmatprep.subr.bf16.mxu0 0
        %676 = vmatpush1.bf16.msra.mxu0 0
        %677 = vmatprep.subr.bf16.mxu0 0
        %678 = vmatpush1.bf16.msra.mxu0 0
        %679 = vmatprep.subr.bf16.mxu0 0
        %680 = vmatpush1.bf16.msra.mxu0 0
        %681 = vmatprep.mubr.bf16.mxu0 0
        %682 = vmatmul.mubr.bf16.gmra.mrb[0].mxu0 %v647
        %v683 = vpop.f32.mrb[0].mxu0
        %v684 = vadd.f32 %v632, %v683
        %v685 = vpop.f32.mrb[0].mxu0
        %v686 = vpop.f32.mrb[0].mxu0
        %v687 = vpop.f32.mrb[0].mxu0
        %688 = vdwg.mxu0
        %v689 = vpack.c.bf16 %v684, %v684
        %v690 = vld [vmem:[%s5] sm:$0xf]
        %v691 = vld [vmem:[%s5 + $0x4] sm:$0xf]
        %v692 = vld [vmem:[%s5 + $0x8] sm:$0xf]
        %v693 = vld [vmem:[%s5 + $0xc] sm:$0xf]
        %v695 = vlaneseq
        %v696 = vshrl.u32 %v695, 7
        %v697 = vsub.s32 0, %v696
        %v698 = vrot.slane %v588, %v697
        %v704 = vunpack.c.l.b16 %v690
        %v705 = vunpack.c.l.b16 %v691
        %v706 = vunpack.c.l.b16 %v692
        %v707 = vunpack.c.l.b16 %v693
        %v708 = vpack.c.b16 %v705, %v704
        %v709 = vpack.c.b16 %v707, %v706
        %712 = vmatprep.subr.bf16.mxu0 0
        %713 = vmatpush1.bf16.msra.mxu0 %v708
        %714 = vmatprep.subr.bf16.mxu0 0
        %715 = vmatpush1.bf16.msra.mxu0 %v709
        %716 = vmatprep.subr.bf16.mxu0 0
        %717 = vmatpush1.bf16.msra.mxu0 0
        %718 = vmatprep.subr.bf16.mxu0 0
        %719 = vmatpush1.bf16.msra.mxu0 0
        %720 = vmatprep.subr.bf16.mxu0 0
        %721 = vmatpush1.bf16.msra.mxu0 0
        %722 = vmatprep.subr.bf16.mxu0 0
        %723 = vmatpush1.bf16.msra.mxu0 0
        %724 = vmatprep.subr.bf16.mxu0 0
        %725 = vmatpush1.bf16.msra.mxu0 0
        %726 = vmatprep.subr.bf16.mxu0 0
        %727 = vmatpush1.bf16.msra.mxu0 0
        %728 = vmatprep.subr.bf16.mxu0 0
        %729 = vmatpush1.bf16.msra.mxu0 0
        %730 = vmatprep.subr.bf16.mxu0 0
        %731 = vmatpush1.bf16.msra.mxu0 0
        %732 = vmatprep.subr.bf16.mxu0 0
        %733 = vmatpush1.bf16.msra.mxu0 0
        %734 = vmatprep.subr.bf16.mxu0 0
        %735 = vmatpush1.bf16.msra.mxu0 0
        %736 = vmatprep.subr.bf16.mxu0 0
        %737 = vmatpush1.bf16.msra.mxu0 0
        %738 = vmatprep.subr.bf16.mxu0 0
        %739 = vmatpush1.bf16.msra.mxu0 0
        %740 = vmatprep.subr.bf16.mxu0 0
        %741 = vmatpush1.bf16.msra.mxu0 0
        %742 = vmatprep.subr.bf16.mxu0 0
        %743 = vmatpush1.bf16.msra.mxu0 0
        %744 = vmatprep.mubr.bf16.mxu0 0
        %745 = vmatmul.mubr.bf16.gmra.mrb[0].mxu0 %v647
        %v746 = vpop.f32.mrb[0].mxu0
        %v747 = vadd.f32 %v698, %v746
        %v748 = vpop.f32.mrb[0].mxu0
        %v749 = vpop.f32.mrb[0].mxu0
        %v750 = vpop.f32.mrb[0].mxu0
        %751 = vdwg.mxu0
        %v752 = vpack.c.bf16 %v747, %v747
        %v753 = vld [vmem:[%s7] sm:$0xf]
        %v754 = vld [vmem:[%s7 + $0x4] sm:$0xf]
        %v755 = vld [vmem:[%s7 + $0x8] sm:$0xf]
        %v756 = vld [vmem:[%s7 + $0xc] sm:$0xf]
        %v758 = vlaneseq
        %v759 = vshrl.u32 %v758, 7
        %v760 = vsub.s32 0, %v759
        %v761 = vrot.slane %v589, %v760
        %v767 = vunpack.c.l.b16 %v753
        %v768 = vunpack.c.l.b16 %v754
        %v769 = vunpack.c.l.b16 %v755
        %v770 = vunpack.c.l.b16 %v756
        %v771 = vpack.c.b16 %v768, %v767
        %v772 = vpack.c.b16 %v770, %v769
        %775 = vmatprep.subr.bf16.mxu0 0
        %776 = vmatpush1.bf16.msra.mxu0 %v771
        %777 = vmatprep.subr.bf16.mxu0 0
        %778 = vmatpush1.bf16.msra.mxu0 %v772
        %779 = vmatprep.subr.bf16.mxu0 0
        %780 = vmatpush1.bf16.msra.mxu0 0
        %781 = vmatprep.subr.bf16.mxu0 0
        %782 = vmatpush1.bf16.msra.mxu0 0
        %783 = vmatprep.subr.bf16.mxu0 0
        %784 = vmatpush1.bf16.msra.mxu0 0
        %785 = vmatprep.subr.bf16.mxu0 0
        %786 = vmatpush1.bf16.msra.mxu0 0
        %787 = vmatprep.subr.bf16.mxu0 0
        %788 = vmatpush1.bf16.msra.mxu0 0
        %789 = vmatprep.subr.bf16.mxu0 0
        %790 = vmatpush1.bf16.msra.mxu0 0
        %791 = vmatprep.subr.bf16.mxu0 0
        %792 = vmatpush1.bf16.msra.mxu0 0
        %793 = vmatprep.subr.bf16.mxu0 0
        %794 = vmatpush1.bf16.msra.mxu0 0
        %795 = vmatprep.subr.bf16.mxu0 0
        %796 = vmatpush1.bf16.msra.mxu0 0
        %797 = vmatprep.subr.bf16.mxu0 0
        %798 = vmatpush1.bf16.msra.mxu0 0
        %799 = vmatprep.subr.bf16.mxu0 0
        %800 = vmatpush1.bf16.msra.mxu0 0
        %801 = vmatprep.subr.bf16.mxu0 0
        %802 = vmatpush1.bf16.msra.mxu0 0
        %803 = vmatprep.subr.bf16.mxu0 0
        %804 = vmatpush1.bf16.msra.mxu0 0
        %805 = vmatprep.subr.bf16.mxu0 0
        %806 = vmatpush1.bf16.msra.mxu0 0
        %807 = vmatprep.mubr.bf16.mxu0 0
        %808 = vmatmul.mubr.bf16.gmra.mrb[0].mxu0 %v647
        %v809 = vpop.f32.mrb[0].mxu0
        %v810 = vadd.f32 %v761, %v809
        %v811 = vpop.f32.mrb[0].mxu0
        %v812 = vpop.f32.mrb[0].mxu0
        %v813 = vpop.f32.mrb[0].mxu0
        %814 = vdwg.mxu0
        %v815 = vpack.c.bf16 %v810, %v810
        %vm816 = vcmask 64512
        %v818 = vsel %vm816, %v689, 0
        %v821 = vsel %vm816, %v752, 0
        %823 = vmatprep.subr.bf16.mxu0 0
        %824 = vmatpush1.bf16.xpose.msra.mxu0 %v821
        %825 = vmatprep.subr.bf16.mxu0 0
        %826 = vmatpush1.bf16.xpose.msra.mxu0 0
        %827 = vmatprep.subr.bf16.mxu0 0
        %828 = vmatpush1.bf16.xpose.msra.mxu0 0
        %829 = vmatprep.subr.bf16.mxu0 0
        %830 = vmatpush1.bf16.xpose.msra.mxu0 0
        %831 = vmatprep.subr.bf16.mxu0 0
        %832 = vmatpush1.bf16.xpose.msra.mxu0 0
        %833 = vmatprep.subr.bf16.mxu0 0
        %834 = vmatpush1.bf16.xpose.msra.mxu0 0
        %835 = vmatprep.subr.bf16.mxu0 0
        %836 = vmatpush1.bf16.xpose.msra.mxu0 0
        %837 = vmatprep.subr.bf16.mxu0 0
        %838 = vmatpush1.bf16.xpose.msra.mxu0 0
        %839 = vmatprep.subr.bf16.mxu0 0
        %840 = vmatpush1.bf16.xpose.msra.mxu0 0
        %841 = vmatprep.subr.bf16.mxu0 0
        %842 = vmatpush1.bf16.xpose.msra.mxu0 0
        %843 = vmatprep.subr.bf16.mxu0 0
        %844 = vmatpush1.bf16.xpose.msra.mxu0 0
        %845 = vmatprep.subr.bf16.mxu0 0
        %846 = vmatpush1.bf16.xpose.msra.mxu0 0
        %847 = vmatprep.subr.bf16.mxu0 0
        %848 = vmatpush1.bf16.xpose.msra.mxu0 0
        %849 = vmatprep.subr.bf16.mxu0 0
        %850 = vmatpush1.bf16.xpose.msra.mxu0 0
        %851 = vmatprep.subr.bf16.mxu0 0
        %852 = vmatpush1.bf16.xpose.msra.mxu0 0
        %853 = vmatprep.subr.bf16.mxu0 0
        %854 = vmatpush1.bf16.xpose.msra.mxu0 0
        %855 = vmatprep.mubr.bf16.mxu0 0
        %856 = vmatmul.mubr.bf16.gmra.mrb[0].mxu0 %v818
        %v857 = vpop.f32.mrb[0].mxu0
        %v858 = vadd.f32 0.0, %v857
        %v859 = vpop.f32.mrb[0].mxu0
        %v860 = vpop.f32.mrb[0].mxu0
        %v861 = vpop.f32.mrb[0].mxu0
        %862 = vdwg.mxu0
        %v863 = vmul.f32 %v858, 0.35355338
        %v864 = vsel %vm816, %v863, -inf
        %865 = vmax.xlane.f32.xlu0 %v864
        %v866 = vpop.xlane.xlu0 %865
        %v867 = vsub.f32 %v863, %v866
        %v868 = vmul.f32 %v867, 1.442695
        %v869 = vpow.pop %v868
        %v870 = vsel %vm816, %v869, 0.0
        %871 = vadd.xlane.f32.xlu0 %v870
        %v872 = vpop.xlane.xlu0 %871
        %v873 = vrcp.pop %v872
        %v874 = vmul.f32 %v869, %v873
        %v875 = vpack.c.bf16 %v874, %v874
        %v877 = vsel %vm816, %v875, 0
        %vm879 = vcmask 1043456
        %v881 = vsel %vm879, %v815, 0
        %883 = vmatprep.subr.bf16.mxu0 0
        %884 = vmatpush1.bf16.msra.mxu0 %v881
        %885 = vmatprep.subr.bf16.mxu0 0
        %886 = vmatpush1.bf16.msra.mxu0 0
        %887 = vmatprep.subr.bf16.mxu0 0
        %888 = vmatpush1.bf16.msra.mxu0 0
        %889 = vmatprep.subr.bf16.mxu0 0
        %890 = vmatpush1.bf16.msra.mxu0 0
        %891 = vmatprep.subr.bf16.mxu0 0
        %892 = vmatpush1.bf16.msra.mxu0 0
        %893 = vmatprep.subr.bf16.mxu0 0
        %894 = vmatpush1.bf16.msra.mxu0 0
        %895 = vmatprep.subr.bf16.mxu0 0
        %896 = vmatpush1.bf16.msra.mxu0 0
        %897 = vmatprep.subr.bf16.mxu0 0
        %898 = vmatpush1.bf16.msra.mxu0 0
        %899 = vmatprep.subr.bf16.mxu0 0
        %900 = vmatpush1.bf16.msra.mxu0 0
        %901 = vmatprep.subr.bf16.mxu0 0
        %902 = vmatpush1.bf16.msra.mxu0 0
        %903 = vmatprep.subr.bf16.mxu0 0
        %904 = vmatpush1.bf16.msra.mxu0 0
        %905 = vmatprep.subr.bf16.mxu0 0
        %906 = vmatpush1.bf16.msra.mxu0 0
        %907 = vmatprep.subr.bf16.mxu0 0
        %908 = vmatpush1.bf16.msra.mxu0 0
        %909 = vmatprep.subr.bf16.mxu0 0
        %910 = vmatpush1.bf16.msra.mxu0 0
        %911 = vmatprep.subr.bf16.mxu0 0
        %912 = vmatpush1.bf16.msra.mxu0 0
        %913 = vmatprep.subr.bf16.mxu0 0
        %914 = vmatpush1.bf16.msra.mxu0 0
        %915 = vmatprep.mubr.bf16.mxu0 0
        %916 = vmatmul.mubr.bf16.gmra.mrb[0].mxu0 %v877
        %v917 = vpop.f32.mrb[0].mxu0
        %v918 = vadd.f32 0.0, %v917
        %v919 = vpop.f32.mrb[0].mxu0
        %v920 = vpop.f32.mrb[0].mxu0
        %v921 = vpop.f32.mrb[0].mxu0
        %922 = vdwg.mxu0
        %v923 = vpack.c.bf16 %v918, %v918
        %vm924 = vcmask 60416
        %925 = vst.msk [vmem:[#allocation2] sm:$0xf] %vm924, %v923
        %927 = vrot.lane.b32.xlu0 %v689, 120
        %v928 = vpop.permute.xlu0 %927
        %930 = vrot.lane.b32.xlu0 %v752, 120
        %v931 = vpop.permute.xlu0 %930
        %v933 = vsel %vm816, %v928, 0
        %v936 = vsel %vm816, %v931, 0
        %938 = vmatprep.subr.bf16.mxu0 0
        %939 = vmatpush1.bf16.xpose.msra.mxu0 %v936
        %940 = vmatprep.subr.bf16.mxu0 0
        %941 = vmatpush1.bf16.xpose.msra.mxu0 0
        %942 = vmatprep.subr.bf16.mxu0 0
        %943 = vmatpush1.bf16.xpose.msra.mxu0 0
        %944 = vmatprep.subr.bf16.mxu0 0
        %945 = vmatpush1.bf16.xpose.msra.mxu0 0
        %946 = vmatprep.subr.bf16.mxu0 0
        %947 = vmatpush1.bf16.xpose.msra.mxu0 0
        %948 = vmatprep.subr.bf16.mxu0 0
        %949 = vmatpush1.bf16.xpose.msra.mxu0 0
        %950 = vmatprep.subr.bf16.mxu0 0
        %951 = vmatpush1.bf16.xpose.msra.mxu0 0
        %952 = vmatprep.subr.bf16.mxu0 0
        %953 = vmatpush1.bf16.xpose.msra.mxu0 0
        %954 = vmatprep.subr.bf16.mxu0 0
        %955 = vmatpush1.bf16.xpose.msra.mxu0 0
        %956 = vmatprep.subr.bf16.mxu0 0
        %957 = vmatpush1.bf16.xpose.msra.mxu0 0
        %958 = vmatprep.subr.bf16.mxu0 0
        %959 = vmatpush1.bf16.xpose.msra.mxu0 0
        %960 = vmatprep.subr.bf16.mxu0 0
        %961 = vmatpush1.bf16.xpose.msra.mxu0 0
        %962 = vmatprep.subr.bf16.mxu0 0
        %963 = vmatpush1.bf16.xpose.msra.mxu0 0
        %964 = vmatprep.subr.bf16.mxu0 0
        %965 = vmatpush1.bf16.xpose.msra.mxu0 0
        %966 = vmatprep.subr.bf16.mxu0 0
        %967 = vmatpush1.bf16.xpose.msra.mxu0 0
        %968 = vmatprep.subr.bf16.mxu0 0
        %969 = vmatpush1.bf16.xpose.msra.mxu0 0
        %970 = vmatprep.mubr.bf16.mxu0 0
        %971 = vmatmul.mubr.bf16.gmra.mrb[0].mxu0 %v933
        %v972 = vpop.f32.mrb[0].mxu0
        %v973 = vadd.f32 0.0, %v972
        %v974 = vpop.f32.mrb[0].mxu0
        %v975 = vpop.f32.mrb[0].mxu0
        %v976 = vpop.f32.mrb[0].mxu0
        %977 = vdwg.mxu0
        %v978 = vmul.f32 %v973, 0.35355338
        %v979 = vsel %vm816, %v978, -inf
        %980 = vmax.xlane.f32.xlu0 %v979
        %v981 = vpop.xlane.xlu0 %980
        %v982 = vsub.f32 %v978, %v981
        %v983 = vmul.f32 %v982, 1.442695
        %v984 = vpow.pop %v983
        %v985 = vsel %vm816, %v984, 0.0
        %986 = vadd.xlane.f32.xlu0 %v985
        %v987 = vpop.xlane.xlu0 %986
        %v988 = vrcp.pop %v987
        %v989 = vmul.f32 %v984, %v988
        %v990 = vpack.c.bf16 %v989, %v989
        %992 = vrot.lane.b32.xlu0 %v815, 120
        %v993 = vpop.permute.xlu0 %992
        %v995 = vsel %vm816, %v990, 0
        %v998 = vsel %vm879, %v993, 0
        %1000 = vmatprep.subr.bf16.mxu0 0
        %1001 = vmatpush1.bf16.msra.mxu0 %v998
        %1002 = vmatprep.subr.bf16.mxu0 0
        %1003 = vmatpush1.bf16.msra.mxu0 0
        %1004 = vmatprep.subr.bf16.mxu0 0
        %1005 = vmatpush1.bf16.msra.mxu0 0
        %1006 = vmatprep.subr.bf16.mxu0 0
        %1007 = vmatpush1.bf16.msra.mxu0 0
        %1008 = vmatprep.subr.bf16.mxu0 0
        %1009 = vmatpush1.bf16.msra.mxu0 0
        %1010 = vmatprep.subr.bf16.mxu0 0
        %1011 = vmatpush1.bf16.msra.mxu0 0
        %1012 = vmatprep.subr.bf16.mxu0 0
        %1013 = vmatpush1.bf16.msra.mxu0 0
        %1014 = vmatprep.subr.bf16.mxu0 0
        %1015 = vmatpush1.bf16.msra.mxu0 0
        %1016 = vmatprep.subr.bf16.mxu0 0
        %1017 = vmatpush1.bf16.msra.mxu0 0
        %1018 = vmatprep.subr.bf16.mxu0 0
        %1019 = vmatpush1.bf16.msra.mxu0 0
        %1020 = vmatprep.subr.bf16.mxu0 0
        %1021 = vmatpush1.bf16.msra.mxu0 0
        %1022 = vmatprep.subr.bf16.mxu0 0
        %1023 = vmatpush1.bf16.msra.mxu0 0
        %1024 = vmatprep.subr.bf16.mxu0 0
        %1025 = vmatpush1.bf16.msra.mxu0 0
        %1026 = vmatprep.subr.bf16.mxu0 0
        %1027 = vmatpush1.bf16.msra.mxu0 0
        %1028 = vmatprep.subr.bf16.mxu0 0
        %1029 = vmatpush1.bf16.msra.mxu0 0
        %1030 = vmatprep.subr.bf16.mxu0 0
        %1031 = vmatpush1.bf16.msra.mxu0 0
        %1032 = vmatprep.mubr.bf16.mxu0 0
        %1033 = vmatmul.mubr.bf16.gmra.mrb[0].mxu0 %v995
        %v1034 = vpop.f32.mrb[0].mxu0
        %v1035 = vadd.f32 0.0, %v1034
        %v1036 = vpop.f32.mrb[0].mxu0
        %v1037 = vpop.f32.mrb[0].mxu0
        %v1038 = vpop.f32.mrb[0].mxu0
        %1039 = vdwg.mxu0
        %v1040 = vpack.c.bf16 %v1035, %v1035
        %v1042 = vunpack.c.l.b16 %v1040
        %v1043 = vpack.c.b16 %v1042, %v1042
        %1044 = vrot.lane.b32.xlu0 %v1043, 8
        %v1045 = vpop.permute.xlu0 %1044
        %vm1047 = vcmask 126016
        %1048 = vst.msk [vmem:[#allocation2] sm:$0xf] %vm1047, %v1045
        %1049 = vrot.lane.b32.xlu0 %v689, 112
        %v1050 = vpop.permute.xlu0 %1049
        %1051 = vrot.lane.b32.xlu0 %v752, 112
        %v1052 = vpop.permute.xlu0 %1051
        %v1054 = vsel %vm816, %v1050, 0
        %v1057 = vsel %vm816, %v1052, 0
        %1059 = vmatprep.subr.bf16.mxu0 0
        %1060 = vmatpush1.bf16.xpose.msra.mxu0 %v1057
        %1061 = vmatprep.subr.bf16.mxu0 0
        %1062 = vmatpush1.bf16.xpose.msra.mxu0 0
        %1063 = vmatprep.subr.bf16.mxu0 0
        %1064 = vmatpush1.bf16.xpose.msra.mxu0 0
        %1065 = vmatprep.subr.bf16.mxu0 0
        %1066 = vmatpush1.bf16.xpose.msra.mxu0 0
        %1067 = vmatprep.subr.bf16.mxu0 0
        %1068 = vmatpush1.bf16.xpose.msra.mxu0 0
        %1069 = vmatprep.subr.bf16.mxu0 0
        %1070 = vmatpush1.bf16.xpose.msra.mxu0 0
        %1071 = vmatprep.subr.bf16.mxu0 0
        %1072 = vmatpush1.bf16.xpose.msra.mxu0 0
        %1073 = vmatprep.subr.bf16.mxu0 0
        %1074 = vmatpush1.bf16.xpose.msra.mxu0 0
        %1075 = vmatprep.subr.bf16.mxu0 0
        %1076 = vmatpush1.bf16.xpose.msra.mxu0 0
        %1077 = vmatprep.subr.bf16.mxu0 0
        %1078 = vmatpush1.bf16.xpose.msra.mxu0 0
        %1079 = vmatprep.subr.bf16.mxu0 0
        %1080 = vmatpush1.bf16.xpose.msra.mxu0 0
        %1081 = vmatprep.subr.bf16.mxu0 0
        %1082 = vmatpush1.bf16.xpose.msra.mxu0 0
        %1083 = vmatprep.subr.bf16.mxu0 0
        %1084 = vmatpush1.bf16.xpose.msra.mxu0 0
        %1085 = vmatprep.subr.bf16.mxu0 0
        %1086 = vmatpush1.bf16.xpose.msra.mxu0 0
        %1087 = vmatprep.subr.bf16.mxu0 0
        %1088 = vmatpush1.bf16.xpose.msra.mxu0 0
        %1089 = vmatprep.subr.bf16.mxu0 0
        %1090 = vmatpush1.bf16.xpose.msra.mxu0 0
        %1091 = vmatprep.mubr.bf16.mxu0 0
        %1092 = vmatmul.mubr.bf16.gmra.mrb[0].mxu0 %v1054
        %v1093 = vpop.f32.mrb[0].mxu0
        %v1094 = vadd.f32 0.0, %v1093
        %v1095 = vpop.f32.mrb[0].mxu0
        %v1096 = vpop.f32.mrb[0].mxu0
        %v1097 = vpop.f32.mrb[0].mxu0
        %1098 = vdwg.mxu0
        %v1099 = vmul.f32 %v1094, 0.35355338
        %v1100 = vsel %vm816, %v1099, -inf
        %1101 = vmax.xlane.f32.xlu0 %v1100
        %v1102 = vpop.xlane.xlu0 %1101
        %v1103 = vsub.f32 %v1099, %v1102
        %v1104 = vmul.f32 %v1103, 1.442695
        %v1105 = vpow.pop %v1104
        %v1106 = vsel %vm816, %v1105, 0.0
        %1107 = vadd.xlane.f32.xlu0 %v1106
        %v1108 = vpop.xlane.xlu0 %1107
        %v1109 = vrcp.pop %v1108
        %v1110 = vmul.f32 %v1105, %v1109
        %v1111 = vpack.c.bf16 %v1110, %v1110
        %1112 = vrot.lane.b32.xlu0 %v815, 112
        %v1113 = vpop.permute.xlu0 %1112
        %v1115 = vsel %vm816, %v1111, 0
        %v1118 = vsel %vm879, %v1113, 0
        %1120 = vmatprep.subr.bf16.mxu0 0
        %1121 = vmatpush1.bf16.msra.mxu0 %v1118
        %1122 = vmatprep.subr.bf16.mxu0 0
        %1123 = vmatpush1.bf16.msra.mxu0 0
        %1124 = vmatprep.subr.bf16.mxu0 0
        %1125 = vmatpush1.bf16.msra.mxu0 0
        %1126 = vmatprep.subr.bf16.mxu0 0
        %1127 = vmatpush1.bf16.msra.mxu0 0
        %1128 = vmatprep.subr.bf16.mxu0 0
        %1129 = vmatpush1.bf16.msra.mxu0 0
        %1130 = vmatprep.subr.bf16.mxu0 0
        %1131 = vmatpush1.bf16.msra.mxu0 0
        %1132 = vmatprep.subr.bf16.mxu0 0
        %1133 = vmatpush1.bf16.msra.mxu0 0
        %1134 = vmatprep.subr.bf16.mxu0 0
        %1135 = vmatpush1.bf16.msra.mxu0 0
        %1136 = vmatprep.subr.bf16.mxu0 0
        %1137 = vmatpush1.bf16.msra.mxu0 0
        %1138 = vmatprep.subr.bf16.mxu0 0
        %1139 = vmatpush1.bf16.msra.mxu0 0
        %1140 = vmatprep.subr.bf16.mxu0 0
        %1141 = vmatpush1.bf16.msra.mxu0 0
        %1142 = vmatprep.subr.bf16.mxu0 0
        %1143 = vmatpush1.bf16.msra.mxu0 0
        %1144 = vmatprep.subr.bf16.mxu0 0
        %1145 = vmatpush1.bf16.msra.mxu0 0
        %1146 = vmatprep.subr.bf16.mxu0 0
        %1147 = vmatpush1.bf16.msra.mxu0 0
        %1148 = vmatprep.subr.bf16.mxu0 0
        %1149 = vmatpush1.bf16.msra.mxu0 0
        %1150 = vmatprep.subr.bf16.mxu0 0
        %1151 = vmatpush1.bf16.msra.mxu0 0
        %1152 = vmatprep.mubr.bf16.mxu0 0
        %1153 = vmatmul.mubr.bf16.gmra.mrb[0].mxu0 %v1115
        %v1154 = vpop.f32.mrb[0].mxu0
        %v1155 = vadd.f32 0.0, %v1154
        %v1156 = vpop.f32.mrb[0].mxu0
        %v1157 = vpop.f32.mrb[0].mxu0
        %v1158 = vpop.f32.mrb[0].mxu0
        %1159 = vdwg.mxu0
        %v1160 = vpack.c.bf16 %v1155, %v1155
        %v1162 = vunpack.c.l.b16 %v1160
        %v1163 = vpack.c.b16 %v1162, %v1162
        %1164 = vrot.lane.b32.xlu0 %v1163, 16
        %v1165 = vpop.permute.xlu0 %1164
        %vm1167 = vcmask 191616
        %1168 = vst.msk [vmem:[#allocation2] sm:$0xf] %vm1167, %v1165
        %1169 = vrot.lane.b32.xlu0 %v689, 104
        %v1170 = vpop.permute.xlu0 %1169
        %1171 = vrot.lane.b32.xlu0 %v752, 104
        %v1172 = vpop.permute.xlu0 %1171
        %v1174 = vsel %vm816, %v1170, 0
        %v1177 = vsel %vm816, %v1172, 0
        %1179 = vmatprep.subr.bf16.mxu0 0
        %1180 = vmatpush1.bf16.xpose.msra.mxu0 %v1177
        %1181 = vmatprep.subr.bf16.mxu0 0
        %1182 = vmatpush1.bf16.xpose.msra.mxu0 0
        %1183 = vmatprep.subr.bf16.mxu0 0
        %1184 = vmatpush1.bf16.xpose.msra.mxu0 0
        %1185 = vmatprep.subr.bf16.mxu0 0
        %1186 = vmatpush1.bf16.xpose.msra.mxu0 0
        %1187 = vmatprep.subr.bf16.mxu0 0
        %1188 = vmatpush1.bf16.xpose.msra.mxu0 0
        %1189 = vmatprep.subr.bf16.mxu0 0
        %1190 = vmatpush1.bf16.xpose.msra.mxu0 0
        %1191 = vmatprep.subr.bf16.mxu0 0
        %1192 = vmatpush1.bf16.xpose.msra.mxu0 0
        %1193 = vmatprep.subr.bf16.mxu0 0
        %1194 = vmatpush1.bf16.xpose.msra.mxu0 0
        %1195 = vmatprep.subr.bf16.mxu0 0
        %1196 = vmatpush1.bf16.xpose.msra.mxu0 0
        %1197 = vmatprep.subr.bf16.mxu0 0
        %1198 = vmatpush1.bf16.xpose.msra.mxu0 0
        %1199 = vmatprep.subr.bf16.mxu0 0
        %1200 = vmatpush1.bf16.xpose.msra.mxu0 0
        %1201 = vmatprep.subr.bf16.mxu0 0
        %1202 = vmatpush1.bf16.xpose.msra.mxu0 0
        %1203 = vmatprep.subr.bf16.mxu0 0
        %1204 = vmatpush1.bf16.xpose.msra.mxu0 0
        %1205 = vmatprep.subr.bf16.mxu0 0
        %1206 = vmatpush1.bf16.xpose.msra.mxu0 0
        %1207 = vmatprep.subr.bf16.mxu0 0
        %1208 = vmatpush1.bf16.xpose.msra.mxu0 0
        %1209 = vmatprep.subr.bf16.mxu0 0
        %1210 = vmatpush1.bf16.xpose.msra.mxu0 0
        %1211 = vmatprep.mubr.bf16.mxu0 0
        %1212 = vmatmul.mubr.bf16.gmra.mrb[0].mxu0 %v1174
        %v1213 = vpop.f32.mrb[0].mxu0
        %v1214 = vadd.f32 0.0, %v1213
        %v1215 = vpop.f32.mrb[0].mxu0
        %v1216 = vpop.f32.mrb[0].mxu0
        %v1217 = vpop.f32.mrb[0].mxu0
        %1218 = vdwg.mxu0
        %v1219 = vmul.f32 %v1214, 0.35355338
        %v1220 = vsel %vm816, %v1219, -inf
        %1221 = vmax.xlane.f32.xlu0 %v1220
        %v1222 = vpop.xlane.xlu0 %1221
        %v1223 = vsub.f32 %v1219, %v1222
        %v1224 = vmul.f32 %v1223, 1.442695
        %v1225 = vpow.pop %v1224
        %v1226 = vsel %vm816, %v1225, 0.0
        %1227 = vadd.xlane.f32.xlu0 %v1226
        %v1228 = vpop.xlane.xlu0 %1227
        %v1229 = vrcp.pop %v1228
        %v1230 = vmul.f32 %v1225, %v1229
        %v1231 = vpack.c.bf16 %v1230, %v1230
        %1232 = vrot.lane.b32.xlu0 %v815, 104
        %v1233 = vpop.permute.xlu0 %1232
        %v1235 = vsel %vm816, %v1231, 0
        %v1238 = vsel %vm879, %v1233, 0
        %1240 = vmatprep.subr.bf16.mxu0 0
        %1241 = vmatpush1.bf16.msra.mxu0 %v1238
        %1242 = vmatprep.subr.bf16.mxu0 0
        %1243 = vmatpush1.bf16.msra.mxu0 0
        %1244 = vmatprep.subr.bf16.mxu0 0
        %1245 = vmatpush1.bf16.msra.mxu0 0
        %1246 = vmatprep.subr.bf16.mxu0 0
        %1247 = vmatpush1.bf16.msra.mxu0 0
        %1248 = vmatprep.subr.bf16.mxu0 0
        %1249 = vmatpush1.bf16.msra.mxu0 0
        %1250 = vmatprep.subr.bf16.mxu0 0
        %1251 = vmatpush1.bf16.msra.mxu0 0
        %1252 = vmatprep.subr.bf16.mxu0 0
        %1253 = vmatpush1.bf16.msra.mxu0 0
        %1254 = vmatprep.subr.bf16.mxu0 0
        %1255 = vmatpush1.bf16.msra.mxu0 0
        %1256 = vmatprep.subr.bf16.mxu0 0
        %1257 = vmatpush1.bf16.msra.mxu0 0
        %1258 = vmatprep.subr.bf16.mxu0 0
        %1259 = vmatpush1.bf16.msra.mxu0 0
        %1260 = vmatprep.subr.bf16.mxu0 0
        %1261 = vmatpush1.bf16.msra.mxu0 0
        %1262 = vmatprep.subr.bf16.mxu0 0
        %1263 = vmatpush1.bf16.msra.mxu0 0
        %1264 = vmatprep.subr.bf16.mxu0 0
        %1265 = vmatpush1.bf16.msra.mxu0 0
        %1266 = vmatprep.subr.bf16.mxu0 0
        %1267 = vmatpush1.bf16.msra.mxu0 0
        %1268 = vmatprep.subr.bf16.mxu0 0
        %1269 = vmatpush1.bf16.msra.mxu0 0
        %1270 = vmatprep.subr.bf16.mxu0 0
        %1271 = vmatpush1.bf16.msra.mxu0 0
        %1272 = vmatprep.mubr.bf16.mxu0 0
        %1273 = vmatmul.mubr.bf16.gmra.mrb[0].mxu0 %v1235
        %v1274 = vpop.f32.mrb[0].mxu0
        %v1275 = vadd.f32 0.0, %v1274
        %v1276 = vpop.f32.mrb[0].mxu0
        %v1277 = vpop.f32.mrb[0].mxu0
        %v1278 = vpop.f32.mrb[0].mxu0
        %1279 = vdwg.mxu0
        %v1280 = vpack.c.bf16 %v1275, %v1275
        %v1282 = vunpack.c.l.b16 %v1280
        %v1283 = vpack.c.b16 %v1282, %v1282
        %1284 = vrot.lane.b32.xlu0 %v1283, 24
        %v1285 = vpop.permute.xlu0 %1284
        %vm1287 = vcmask 257216
        %1288 = vst.msk [vmem:[#allocation2] sm:$0xf] %vm1287, %v1285
        %v1289 = vld [vmem:[#allocation2] sm:$0xf]
        %v1290 = vld [vmem:[%s9] sm:$0xf]
        %v1291 = vld [vmem:[%s9 + $0x4] sm:$0xf]
        %v1292 = vld [vmem:[%s9 + $0x8] sm:$0xf]
        %v1293 = vld [vmem:[%s9 + $0xc] sm:$0xf]
        %v1295 = vlaneseq
        %v1296 = vshrl.u32 %v1295, 7
        %v1297 = vsub.s32 0, %v1296
        %v1298 = vrot.slane %v590, %v1297
        %v1304 = vunpack.c.l.b16 %v1290
        %v1305 = vunpack.c.l.b16 %v1291
        %v1306 = vunpack.c.l.b16 %v1292
        %v1307 = vunpack.c.l.b16 %v1293
        %v1308 = vpack.c.b16 %v1305, %v1304
        %v1309 = vpack.c.b16 %v1307, %v1306
        %v1313 = vsel %vm594, %v1289, 0
        %1315 = vmatprep.subr.bf16.mxu0 0
        %1316 = vmatpush1.bf16.msra.mxu0 %v1308
        %1317 = vmatprep.subr.bf16.mxu0 0
        %1318 = vmatpush1.bf16.msra.mxu0 %v1309
        %1319 = vmatprep.subr.bf16.mxu0 0
        %1320 = vmatpush1.bf16.msra.mxu0 0
        %1321 = vmatprep.subr.bf16.mxu0 0
        %1322 = vmatpush1.bf16.msra.mxu0 0
        %1323 = vmatprep.subr.bf16.mxu0 0
        %1324 = vmatpush1.bf16.msra.mxu0 0
        %1325 = vmatprep.subr.bf16.mxu0 0
        %1326 = vmatpush1.bf16.msra.mxu0 0
        %1327 = vmatprep.subr.bf16.mxu0 0
        %1328 = vmatpush1.bf16.msra.mxu0 0
        %1329 = vmatprep.subr.bf16.mxu0 0
        %1330 = vmatpush1.bf16.msra.mxu0 0
        %1331 = vmatprep.subr.bf16.mxu0 0
        %1332 = vmatpush1.bf16.msra.mxu0 0
        %1333 = vmatprep.subr.bf16.mxu0 0
        %1334 = vmatpush1.bf16.msra.mxu0 0
        %1335 = vmatprep.subr.bf16.mxu0 0
        %1336 = vmatpush1.bf16.msra.mxu0 0
        %1337 = vmatprep.subr.bf16.mxu0 0
        %1338 = vmatpush1.bf16.msra.mxu0 0
        %1339 = vmatprep.subr.bf16.mxu0 0
        %1340 = vmatpush1.bf16.msra.mxu0 0
        %1341 = vmatprep.subr.bf16.mxu0 0
        %1342 = vmatpush1.bf16.msra.mxu0 0
        %1343 = vmatprep.subr.bf16.mxu0 0
        %1344 = vmatpush1.bf16.msra.mxu0 0
        %1345 = vmatprep.subr.bf16.mxu0 0
        %1346 = vmatpush1.bf16.msra.mxu0 0
        %1347 = vmatprep.mubr.bf16.mxu0 0
        %1348 = vmatmul.mubr.bf16.gmra.mrb[0].mxu0 %v1313
        %v1349 = vpop.f32.mrb[0].mxu0
        %v1350 = vadd.f32 %v1298, %v1349
        %v1351 = vpop.f32.mrb[0].mxu0
        %v1352 = vpop.f32.mrb[0].mxu0
        %v1353 = vpop.f32.mrb[0].mxu0
        %1354 = vdwg.mxu0
        %v1355 = vadd.f32 %v593, %v1350
        %v1356 = vsel %vm594, %v1355, 0.0
        %1357 = vadd.xlane.f32.xlu0 %v1356
        %v1358 = vpop.xlane.xlu0 %1357
        %v1359 = vmul.f32 %v1358, %v598
        %v1360 = vsub.f32 %v1355, %v1359
        %v1361 = vmul.f32 %v1360, %v1360
        %v1362 = vsel %vm594, %v1361, 0.0
        %1363 = vadd.xlane.f32.xlu0 %v1362
        %v1364 = vpop.xlane.xlu0 %1363
        %v1365 = vmul.f32 %v1364, %v598
        %v1366 = vadd.f32 %v1365, 1e-05
        %v1367 = vrsqrt.pop %v1366
        %v1368 = vmul.f32 %v1360, %v1367
        %v1370 = vlaneseq
        %v1371 = vshrl.u32 %v1370, 7
        %v1372 = vsub.s32 0, %v1371
        %v1373 = vrot.slane %v585, %v1372
        %v1375 = vmul.f32 %v1368, %v1373
        %v1377 = vlaneseq
        %v1378 = vshrl.u32 %v1377, 7
        %v1379 = vsub.s32 0, %v1378
        %v1380 = vrot.slane %v586, %v1379
        %v1382 = vadd.f32 %v1375, %v1380
        %v1383 = vpack.c.bf16 %v1382, %v1382
        %v1384 = vld [vmem:[%s13] sm:$0xf]
        %v1385 = vld [vmem:[%s13 + $0x4] sm:$0xf]
        %v1386 = vld [vmem:[%s13 + $0x8] sm:$0xf]
        %v1387 = vld [vmem:[%s13 + $0xc] sm:$0xf]
        %v1389 = vlaneseq
        %v1390 = vshrl.u32 %v1389, 7
        %v1391 = vsub.s32 0, %v1390
        %v1392 = vrot.slane %v591, %v1391
        %v1398 = vunpack.c.l.b16 %v1384
        %v1399 = vunpack.c.l.b16 %v1385
        %v1400 = vunpack.c.l.b16 %v1386
        %v1401 = vunpack.c.l.b16 %v1387
        %v1402 = vpack.c.b16 %v1399, %v1398
        %v1403 = vpack.c.b16 %v1401, %v1400
        %v1407 = vsel %vm594, %v1383, 0
        %1409 = vmatprep.subr.bf16.mxu0 0
        %1410 = vmatpush1.bf16.msra.mxu0 %v1402
        %1411 = vmatprep.subr.bf16.mxu0 0
        %1412 = vmatpush1.bf16.msra.mxu0 %v1403
        %1413 = vmatprep.subr.bf16.mxu0 0
        %1414 = vmatpush1.bf16.msra.mxu0 0
        %1415 = vmatprep.subr.bf16.mxu0 0
        %1416 = vmatpush1.bf16.msra.mxu0 0
        %1417 = vmatprep.subr.bf16.mxu0 0
        %1418 = vmatpush1.bf16.msra.mxu0 0
        %1419 = vmatprep.subr.bf16.mxu0 0
        %1420 = vmatpush1.bf16.msra.mxu0 0
        %1421 = vmatprep.subr.bf16.mxu0 0
        %1422 = vmatpush1.bf16.msra.mxu0 0
        %1423 = vmatprep.subr.bf16.mxu0 0
        %1424 = vmatpush1.bf16.msra.mxu0 0
        %1425 = vmatprep.subr.bf16.mxu0 0
        %1426 = vmatpush1.bf16.msra.mxu0 0
        %1427 = vmatprep.subr.bf16.mxu0 0
        %1428 = vmatpush1.bf16.msra.mxu0 0
        %1429 = vmatprep.subr.bf16.mxu0 0
        %1430 = vmatpush1.bf16.msra.mxu0 0
        %1431 = vmatprep.subr.bf16.mxu0 0
        %1432 = vmatpush1.bf16.msra.mxu0 0
        %1433 = vmatprep.subr.bf16.mxu0 0
        %1434 = vmatpush1.bf16.msra.mxu0 0
        %1435 = vmatprep.subr.bf16.mxu0 0
        %1436 = vmatpush1.bf16.msra.mxu0 0
        %1437 = vmatprep.subr.bf16.mxu0 0
        %1438 = vmatpush1.bf16.msra.mxu0 0
        %1439 = vmatprep.subr.bf16.mxu0 0
        %1440 = vmatpush1.bf16.msra.mxu0 0
        %1441 = vmatprep.mubr.bf16.mxu0 0
        %1442 = vmatmul.mubr.bf16.gmra.mrb[0].mxu0 %v1407
        %v1443 = vpop.f32.mrb[0].mxu0
        %v1444 = vadd.f32 %v1392, %v1443
        %v1445 = vpop.f32.mrb[0].mxu0
        %v1446 = vpop.f32.mrb[0].mxu0
        %v1447 = vpop.f32.mrb[0].mxu0
        %1448 = vdwg.mxu0
        %v1449 = vmax.f32 %v1444, 0.0
        %v1450 = vpack.c.bf16 %v1449, %v1449
        %v1451 = vld [vmem:[%s15] sm:$0xf]
        %v1452 = vld [vmem:[%s15 + $0x4] sm:$0xf]
        %v1453 = vld [vmem:[%s15 + $0x8] sm:$0xf]
        %v1454 = vld [vmem:[%s15 + $0xc] sm:$0xf]
        %v1455 = vld [vmem:[%s15 + $0x10] sm:$0xf]
        %v1456 = vld [vmem:[%s15 + $0x14] sm:$0xf]
        %v1457 = vld [vmem:[%s15 + $0x18] sm:$0xf]
        %v1458 = vld [vmem:[%s15 + $0x1c] sm:$0xf]
        %v1459 = vld [vmem:[%s15 + $0x20] sm:$0xf]
        %v1460 = vld [vmem:[%s15 + $0x24] sm:$0xf]
        %v1461 = vld [vmem:[%s15 + $0x28] sm:$0xf]
        %v1462 = vld [vmem:[%s15 + $0x2c] sm:$0xf]
        %v1463 = vld [vmem:[%s15 + $0x30] sm:$0xf]
        %v1464 = vld [vmem:[%s15 + $0x34] sm:$0xf]
        %v1465 = vld [vmem:[%s15 + $0x38] sm:$0xf]
        %v1466 = vld [vmem:[%s15 + $0x3c] sm:$0xf]
        %v1468 = vlaneseq
        %v1469 = vshrl.u32 %v1468, 7
        %v1470 = vsub.s32 0, %v1469
        %v1471 = vrot.slane %v592, %v1470
        %v1489 = vunpack.c.l.b16 %v1451
        %v1490 = vunpack.c.l.b16 %v1452
        %v1491 = vunpack.c.l.b16 %v1453
        %v1492 = vunpack.c.l.b16 %v1454
        %v1493 = vunpack.c.l.b16 %v1455
        %v1494 = vunpack.c.l.b16 %v1456
        %v1495 = vunpack.c.l.b16 %v1457
        %v1496 = vunpack.c.l.b16 %v1458
        %v1497 = vunpack.c.l.b16 %v1459
        %v1498 = vunpack.c.l.b16 %v1460
        %v1499 = vunpack.c.l.b16 %v1461
        %v1500 = vunpack.c.l.b16 %v1462
        %v1501 = vunpack.c.l.b16 %v1463
        %v1502 = vunpack.c.l.b16 %v1464
        %v1503 = vunpack.c.l.b16 %v1465
        %v1504 = vunpack.c.l.b16 %v1466
        %v1505 = vpack.c.b16 %v1490, %v1489
        %v1506 = vpack.c.b16 %v1492, %v1491
        %v1507 = vpack.c.b16 %v1494, %v1493
        %v1508 = vpack.c.b16 %v1496, %v1495
        %v1509 = vpack.c.b16 %v1498, %v1497
        %v1510 = vpack.c.b16 %v1500, %v1499
        %v1511 = vpack.c.b16 %v1502, %v1501
        %v1512 = vpack.c.b16 %v1504, %v1503
        %1521 = vmatprep.subr.bf16.mxu0 0
        %1522 = vmatpush1.bf16.msra.mxu0 %v1505
        %1523 = vmatprep.subr.bf16.mxu0 0
        %1524 = vmatpush1.bf16.msra.mxu0 %v1506
        %1525 = vmatprep.subr.bf16.mxu0 0
        %1526 = vmatpush1.bf16.msra.mxu0 %v1507
        %1527 = vmatprep.subr.bf16.mxu0 0
        %1528 = vmatpush1.bf16.msra.mxu0 %v1508
        %1529 = vmatprep.subr.bf16.mxu0 0
        %1530 = vmatpush1.bf16.msra.mxu0 %v1509
        %1531 = vmatprep.subr.bf16.mxu0 0
        %1532 = vmatpush1.bf16.msra.mxu0 %v1510
        %1533 = vmatprep.subr.bf16.mxu0 0
        %1534 = vmatpush1.bf16.msra.mxu0 %v1511
        %1535 = vmatprep.subr.bf16.mxu0 0
        %1536 = vmatpush1.bf16.msra.mxu0 %v1512
        %1537 = vmatprep.subr.bf16.mxu0 0
        %1538 = vmatpush1.bf16.msra.mxu0 0
        %1539 = vmatprep.subr.bf16.mxu0 0
        %1540 = vmatpush1.bf16.msra.mxu0 0
        %1541 = vmatprep.subr.bf16.mxu0 0
        %1542 = vmatpush1.bf16.msra.mxu0 0
        %1543 = vmatprep.subr.bf16.mxu0 0
        %1544 = vmatpush1.bf16.msra.mxu0 0
        %1545 = vmatprep.subr.bf16.mxu0 0
        %1546 = vmatpush1.bf16.msra.mxu0 0
        %1547 = vmatprep.subr.bf16.mxu0 0
        %1548 = vmatpush1.bf16.msra.mxu0 0
        %1549 = vmatprep.subr.bf16.mxu0 0
        %1550 = vmatpush1.bf16.msra.mxu0 0
        %1551 = vmatprep.subr.bf16.mxu0 0
        %1552 = vmatpush1.bf16.msra.mxu0 0
        %1553 = vmatprep.mubr.bf16.mxu0 0
        %1554 = vmatmul.mubr.bf16.gmra.mrb[0].mxu0 %v1450
        %v1555 = vpop.f32.mrb[0].mxu0
        %v1556 = vadd.f32 %v1471, %v1555
        %v1557 = vpop.f32.mrb[0].mxu0
        %v1558 = vpop.f32.mrb[0].mxu0
        %v1559 = vpop.f32.mrb[0].mxu0
        %1560 = vdwg.mxu0
        %v1561 = vadd.f32 %v1355, %v1556
        %1562 = vst.msk [vmem:[%s577] sm:$0xff] %vm594, %v1561
        %s1563 = sand.u32 %s403, 1
        %s1564 = scalar_lea.sflag [#allocation5], %s1563
        %s1565 = sand.u32 %s403, 1
        %s1566 = smul.addr %s1565, 8
        %s1567 = scalar_lea.vmem [#allocation9], %s1566
        // Predicated region
        $region101: #{tpu_custom_call.1} parent=87 // pred_check
          %p1568 = pneg %p413
        $region102: #{tpu_custom_call.1} parent=87 // pred_check_branch
          %1570 = sbr.rel (%p1568) target = $region104
        $region103: #{tpu_custom_call.1} parent=87 // pred_region
          %s1572 = ssub.s32 128, 128
          %1573 = vsyncadd %s1564, %s1572
          %s1574 = smul.addr %s33, 128
          %s1575 = scalar_lea.hbm %s17, %s1574
          %s1577 = sshll.u32 %s1567, 4
          %s1578 = int_to_ptr.vmem [resolvable:$true] %s1577
          %1580 = dma.vmem_to_hbm [thread:$0]  %s1578, 128, %s1575, %s1564
        $region104: #{tpu_custom_call.1} parent=87 // pred_fallthru
          _
      $region88: #{tpu_custom_call.1} parent=5 // pred_fallthru
        _
      %p1581 = scmp.le.s32.totalorder 2, %s28
      // Predicated region
      $region105: #{tpu_custom_call.1} parent=5 // pred_check
        %p1582 = pneg %p1581
      $region106: #{tpu_custom_call.1} parent=5 // pred_check_branch
        %1584 = sbr.rel (%p1582) target = $region108
      $region107: #{tpu_custom_call.1} parent=5 // pred_region
        %s1585 = ssub.s32 %s28, 2
        // Predicated region
        $region109: #{tpu_custom_call.1} parent=107 // pred_check
          %p1586 = pneg %p419
        $region110: #{tpu_custom_call.1} parent=107 // pred_check_branch
          %1588 = sbr.rel (%p1586) target = $region112
        $region111: #{tpu_custom_call.1} parent=107 // pred_region
          %s1589 = sand.u32 %s404, 1
          %s1590 = scalar_lea.sflag [#allocation5], %s1589
          %s1591 = sand.u32 %s404, 1
          %s1592 = smul.addr %s1591, 8
          %s1593 = scalar_lea.vmem [#allocation9], %s1592
          %1594 = dma.done %s1590, 128
        $region112: #{tpu_custom_call.1} parent=107 // pred_fallthru
          _
      $region108: #{tpu_custom_call.1} parent=5 // pred_fallthru
        _
    $region6: #{tpu_custom_call.1} parent=1 // loop_footer
      %s32 = sadd.s32 1, %s28
    $region7: #{tpu_custom_call.1} parent=1 // loop_footer_branch
      %27 = sbr.rel target = $region3
    $region8: #{tpu_custom_call.1} parent=1 // loop_exit
      _
    %1595 = vsyncpa [#allocation4], 1
    %s1596 = scalar_lea.sflag [#allocation4], 1
    %1597 = vsyncpa %s1596, 1
    %1598 = vsyncpa [#allocation7], 1
    %1599 = vsyncpa [#allocation5], 1
    %s1600 = scalar_lea.sflag [#allocation5], 1
    %1601 = vsyncpa %s1600, 1

</llo_original>
